<compile_context>
chip_gen: v7x
topology: tpu7x:2x2x1
jax: 0.10.0
libtpu: 0.0.40
codegen_flags: <defaults>
</compile_context>

<pallas_src>
import math

import jax
import jax.numpy as jnp
from jax import lax
from jax.experimental import pallas as pl
from jax.experimental.pallas import tpu as pltpu

_ROW_TILE_TARGET = 1024   # target output pixels per conv grid step (review: 512-1024 tiles)
_AFFINE_TILE = 1024       # row tile for the fused BN-affine elementwise kernels


def _round_up(x, m):
    return (x + m - 1) // m * m


def _largest_divisor_leq(n, cap):
    cap = max(1, min(n, cap))
    for d in range(cap, 0, -1):
        if n % d == 0:
            return d
    return 1


# --------------------------------------------------------------------------------------
# Fused conv (implicit im2col on the MXU) + BatchNorm sum / sum-of-squares partial sums
# --------------------------------------------------------------------------------------

def _make_conv_kernel(n_taps, kw, th, wo, wop, cout):
    """x_ref: (1, Hi, Wi, Cin) bf16 (one batch element, fully VMEM resident)
       w_ref: (n_taps, Cin, Cout) bf16
       y_ref: (1, th, wo, cout) bf16 output block for grid point (n, h_tile)
       st_ref: (1, 1, 2, cout) f32 partial [sum, sumsq] for this grid point."""

    def kernel(x_ref, w_ref, y_ref, st_ref):
        h0 = pl.program_id(1) * th

        def row_body(hh, carry):
            s_acc, q_acc = carry
            acc = None
            for t in range(n_taps):            # static tap loop -> unrolled MXU dots
                i, j = divmod(t, kw)
                lhs = x_ref[0, h0 + hh + i, pl.ds(j, wop), :]        # (wop, cin) bf16
                d = jnp.dot(lhs, w_ref[t], preferred_element_type=jnp.float32)
                acc = d if acc is None else acc + d
            valid = acc if wo == wop else acc[:wo, :]                # drop alignment columns
            y_ref[0, hh] = valid.astype(y_ref.dtype)
            s_acc = s_acc + jnp.sum(valid, axis=0, keepdims=True)
            q_acc = q_acc + jnp.sum(valid * valid, axis=0, keepdims=True)
            return s_acc, q_acc

        init = (jnp.zeros((1, cout), jnp.float32), jnp.zeros((1, cout), jnp.float32))
        s_acc, q_acc = lax.fori_loop(0, th, row_body, init)
        st_ref[0, 0, 0:1, :] = s_acc
        st_ref[0, 0, 1:2, :] = q_acc

    return kernel


def _conv2d_bnstats(x, w, kh, kw, stride, pad):
    """x: (N, H, W, C) bf16 NHWC.  w: kernel-ready (n_taps, cin_eff, cout) bf16 (already
    space-to-depth rearranged when stride == 2).  Returns the conv output (N, Ho, Wo, cout)
    bf16 plus fused per-channel batch sum / sum-of-squares (f32) and the pixel count."""
    N, H, W, C = x.shape
    cout = w.shape[-1]
    Ho = (H + 2 * pad - kh) // stride + 1
    Wo = (W + 2 * pad - kw) // stride + 1
    wop = _round_up(Wo, 8)                      # sublane-aligned output width inside the kernel

    if stride == 2:
        # space-to-depth: stride-2 conv -> stride-1 conv over 4*C channels (one copy of x)
        kh_e, kw_e = (kh + 1) // 2, (kw + 1) // 2
        Hs, Ws = Ho + kh_e - 1, wop + kw_e - 1
        xp = jnp.pad(x, ((0, 0), (pad, 2 * Hs - H - pad), (pad, 2 * Ws - W - pad), (0, 0)))
        xs = xp.reshape(N, Hs, 2, Ws, 2, C).transpose(0, 1, 3, 2, 4, 5).reshape(N, Hs, Ws, 4 * C)
    else:
        assert stride == 1
        kh_e, kw_e = kh, kw
        Hi, Wi = Ho + kh - 1, wop + kw - 1
        xs = jnp.pad(x, ((0, 0), (pad, Hi - H - pad), (pad, Wi - W - pad), (0, 0)))

    n_taps = kh_e * kw_e
    assert w.shape[0] == n_taps and w.shape[1] == xs.shape[-1]

    th = _largest_divisor_leq(Ho, max(1, _ROW_TILE_TARGET // wop))   # exact H tiling
    n_hb = Ho // th
    kernel = _make_conv_kernel(n_taps, kw_e, th, Wo, wop, cout)

    y, st = pl.pallas_call(
        kernel,
        out_shape=(jax.ShapeDtypeStruct((N, Ho, Wo, cout), jnp.bfloat16),
                   jax.ShapeDtypeStruct((N, n_hb, 2, cout), jnp.float32)),
        grid=(N, n_hb),
        in_specs=[pl.BlockSpec((1,) + xs.shape[1:], lambda n, h: (n, 0, 0, 0)),
                  pl.BlockSpec(w.shape, lambda n, h: (0, 0, 0))],
        out_specs=(pl.BlockSpec((1, th, Wo, cout), lambda n, h: (n, h, 0, 0)),
                   pl.BlockSpec((1, 1, 2, cout), lambda n, h: (n, h, 0, 0))),
        compiler_params=pltpu.CompilerParams(
            dimension_semantics=("parallel", "parallel")),
    )(xs, w)

    st = jnp.sum(st, axis=(0, 1))               # tiny (2, cout) reduction of partial sums
    return y, st[0], st[1], N * Ho * Wo


# --------------------------------------------------------------------------------------
# Fused BatchNorm affine (+ residual) (+ ReLU) elementwise kernel
# --------------------------------------------------------------------------------------

def _make_affine_kernel(relu, has_res):
    if has_res:
        def kernel(x_ref, s_ref, b_ref, r_ref, o_ref):
            y = x_ref[...].astype(jnp.float32) * s_ref[...] + b_ref[...]
            y = y + r_ref[...].astype(jnp.float32)
            if relu:
                y = jnp.maximum(y, 0.0)
            o_ref[...] = y.astype(o_ref.dtype)
    else:
        def kernel(x_ref, s_ref, b_ref, o_ref):
            y = x_ref[...].astype(jnp.float32) * s_ref[...] + b_ref[...]
            if relu:
                y = jnp.maximum(y, 0.0)
            o_ref[...] = y.astype(o_ref.dtype)
    return kernel


def _bn_scale_shift(s, ss, count, gamma, beta, eps=1e-5):
    mean = s / count
    var = jnp.maximum(ss / count - mean * mean, 0.0)   # guard against cancellation
    scale = gamma / jnp.sqrt(var + eps)
    return scale, beta - mean * scale


def _bn_affine(x, scale, shift, relu=False, residual=None):
    """y = maybe_relu(x * scale + shift [+ residual]); x (N,H,W,C) bf16 -> bf16."""
    N, H, W, C = x.shape
    M = N * H * W
    # fold sublanes into lanes for narrow channel counts -> lane-dense stores
    f = 1
    if C < 128 and 128 % C == 0:
        f = 128 // C
        while f > 1 and M % f != 0:
            f //= 2
    Mf, Cf = M // f, C * f
    x2 = x.reshape(Mf, Cf)
    s2 = jnp.tile(scale.astype(jnp.float32), f).reshape(1, Cf)
    b2 = jnp.tile(shift.astype(jnp.float32), f).reshape(1, Cf)

    tm = Mf if Mf <= _AFFINE_TILE else _AFFINE_TILE
    in_specs = [pl.BlockSpec((tm, Cf), lambda i: (i, 0)),
                pl.BlockSpec((1, Cf), lambda i: (0, 0)),
                pl.BlockSpec((1, Cf), lambda i: (0, 0))]
    args = [x2, s2, b2]
    if residual is not None:
        args.append(residual.reshape(Mf, Cf))
        in_specs.append(pl.BlockSpec((tm, Cf), lambda i: (i, 0)))

    out = pl.pallas_call(
        _make_affine_kernel(relu, residual is not None),
        out_shape=jax.ShapeDtypeStruct((Mf, Cf), jnp.bfloat16),
        grid=(pl.cdiv(Mf, tm),),
        in_specs=in_specs,
        out_specs=pl.BlockSpec((tm, Cf), lambda i: (i, 0)),
        compiler_params=pltpu.CompilerParams(dimension_semantics=("parallel",)),
    )(*args)
    return out.reshape(N, H, W, C)


# --------------------------------------------------------------------------------------
# MaxPool2d(kernel_size=3, stride=2, padding=1)
# --------------------------------------------------------------------------------------

def _make_maxpool_kernel(th, wo):
    def kernel(p00, p01, p10, p11, o_ref):
        h0 = pl.program_id(1) * th

        def sl(ref, dh, dw):
            return ref[0, pl.ds(h0 + dh, th), dw:dw + wo, :]

        m = sl(p00, 0, 0)
        for ref, dh, dw in ((p01, 0, 0), (p00, 0, 1),
                            (p10, 0, 0), (p11, 0, 0), (p10, 0, 1),
                            (p00, 1, 0), (p01, 1, 0), (p00, 1, 1)):
            m = jnp.maximum(m, sl(ref, dh, dw))
        o_ref[0] = m

    return kernel


def _maxpool_3x3_s2(x):
    N, H, W, C = x.shape
    Ho, Wo = (H + 2 - 3) // 2 + 1, (W + 2 - 3) // 2 + 1
    Hp, Wp = 2 * (Ho + 1), 2 * (Wo + 1)
    xp = jnp.pad(x, ((0, 0), (1, Hp - H - 1), (1, Wp - W - 1), (0, 0)),
                 constant_values=-jnp.inf)
    # even/odd phase planes (one copy of the map) instead of a 9x im2col stack
    p00 = xp[:, 0::2, 0::2, :]
    p01 = xp[:, 0::2, 1::2, :]
    p10 = xp[:, 1::2, 0::2, :]
    p11 = xp[:, 1::2, 1::2, :]

    th = _largest_divisor_leq(Ho, max(1, 512 // Wo))
    spec = lambda a: pl.BlockSpec((1,) + a.shape[1:], lambda n, h: (n, 0, 0, 0))
    out = pl.pallas_call(
        _make_maxpool_kernel(th, Wo),
        out_shape=jax.ShapeDtypeStruct((N, Ho, Wo, C), x.dtype),
        grid=(N, Ho // th),
        in_specs=[spec(p00), spec(p01), spec(p10), spec(p11)],
        out_specs=pl.BlockSpec((1, th, Wo, C), lambda n, h: (n, h, 0, 0)),
        compiler_params=pltpu.CompilerParams(
            dimension_semantics=("parallel", "parallel")),
    )(p00, p01, p10, p11)
    return out


def _global_avgpool(x):
    # AvgPool2d(7) on the final 7x7 map + Flatten: ~100 KB reduction, cheaper in plain XLA
    # than a dedicated pallas_call (per perf review).
    return jnp.mean(x.astype(jnp.float32), axis=(1, 2))


# --------------------------------------------------------------------------------------
# Parameters / model
# --------------------------------------------------------------------------------------

def _prep_conv_weight(key, cin, cout, kh, kw, stride):
    """PyTorch init_layer: normal(0, sqrt(2/(kh*kw*cout))), layout (cout, cin, kh, kw); the
    weight is reshaped ONCE here into the kernel layout (n_taps, cin_eff, cout) bf16, with the
    space-to-depth rearrangement baked in for stride-2 convs."""
    n = kh * kw * cout
    w = jax.random.normal(key, (cout, cin, kh, kw), jnp.float32) * math.sqrt(2.0 / float(n))
    w = jnp.transpose(w, (2, 3, 1, 0))                       # (kh, kw, cin, cout)
    if stride == 2:
        kh2, kw2 = (kh + 1) // 2, (kw + 1) // 2
        w = jnp.pad(w, ((0, 2 * kh2 - kh), (0, 2 * kw2 - kw), (0, 0), (0, 0)))
        w = w.reshape(kh2, 2, kw2, 2, cin, cout).transpose(0, 2, 1, 3, 4, 5)
        w = w.reshape(kh2 * kw2, 4 * cin, cout)              # taps (a,b), channels (p,q,cin)
    else:
        w = w.reshape(kh * kw, cin, cout)
    return w.astype(jnp.bfloat16)


def _bn_init(c):
    return dict(g=jnp.ones((c,), jnp.float32), b=jnp.zeros((c,), jnp.float32))


def init_params(key, list_of_num_layers, list_of_out_dims, flatten=True):
    assert len(list_of_num_layers) == 4, "Can have only four stages"
    keys = iter(jax.random.split(key, 64))
    params = {"flatten": flatten}
    params["conv1"] = dict(w=_prep_conv_weight(next(keys), 3, 64, 7, 7, 2),
                           kh=7, kw=7, stride=2, pad=3)
    params["bn1"] = _bn_init(64)
    blocks = []
    indim = 64
    for i in range(4):
        for j in range(list_of_num_layers[i]):
            half_res = (i >= 1) and (j == 0)
            outdim = list_of_out_dims[i]
            stride = 2 if half_res else 1
            bp = {
                "half_res": half_res,
                "identity": indim == outdim,
                "c1": dict(w=_prep_conv_weight(next(keys), indim, outdim, 3, 3, stride),
                           kh=3, kw=3, stride=stride, pad=1),
                "bn1": _bn_init(outdim),
                "c2": dict(w=_prep_conv_weight(next(keys), outdim, outdim, 3, 3, 1),
                           kh=3, kw=3, stride=1, pad=1),
                "bn2": _bn_init(outdim),
            }
            if indim != outdim:
                # the 1x1 shortcut conv runs on the stride-subsampled input -> stride-1 layout
                bp["sc"] = dict(w=_prep_conv_weight(next(keys), indim, outdim, 1, 1, 1),
                                kh=1, kw=1, stride=1, pad=0)
                bp["bnsc"] = _bn_init(outdim)
            blocks.append(bp)
            indim = outdim
    params["blocks"] = blocks
    params["final_feat_dim"] = indim if flatten else [indim, 7, 7]
    return params


def _conv_bn(x, conv, bn, relu, residual=None):
    y, s, ss, cnt = _conv2d_bnstats(x, conv["w"], conv["kh"], conv["kw"],
                                    conv["stride"], conv["pad"])
    scale, shift = _bn_scale_shift(s, ss, cnt, bn["g"], bn["b"])
    return _bn_affine(y, scale, shift, relu=relu, residual=residual)


def simple_block_forward(x, bp):
    # SimpleBlock: relu( BN2(conv2( relu(BN1(conv1(x))) )) + shortcut(x) )
    h = _conv_bn(x, bp["c1"], bp["bn1"], relu=True)
    if bp["identity"]:
        short = x
    else:
        xs = x[:, ::2, ::2, :] if bp["half_res"] else x
        short = _conv_bn(xs, bp["sc"], bp["bnsc"], relu=False)
    return _conv_bn(h, bp["c2"], bp["bn2"], relu=True, residual=short)


def resnet_forward(params, x_nchw):
    # NCHW (PyTorch) -> NHWC (channels on the TPU lane dim), bf16 activations
    x = jnp.transpose(x_nchw, (0, 2, 3, 1)).astype(jnp.bfloat16)
    x = _conv_bn(x, params["conv1"], params["bn1"], relu=True)
    x = _maxpool_3x3_s2(x)
    for bp in params["blocks"]:
        x = simple_block_forward(x, bp)
    if params["flatten"]:
        return _global_avgpool(x)                    # (N, final_feat_dim) f32
    return jnp.transpose(x, (0, 3, 1, 2)).astype(jnp.float32)


if __name__ == "__main__":
    key = jax.random.PRNGKey(0)
    pkey, xkey = jax.random.split(key)
    # ResNet-10: ResNet(SimpleBlock, [1,1,1,1], [64,128,256,512]); 224x224 input so the
    # trailing AvgPool2d(7) sees the 7x7 map the module implies.  Batch kept small (2).
    params = init_params(pkey, [1, 1, 1, 1], [64, 128, 256, 512], flatten=True)
    x = jax.random.normal(xkey, (2, 3, 224, 224), jnp.float32)   # NCHW like PyTorch
    out = jax.block_until_ready(resnet_forward(params, x))
    assert out.shape == (2, 512), out.shape
    assert bool(jnp.all(jnp.isfinite(out)))
    print("KERNEL_OK")
</pallas_src>

<mosaic_0001>
module attributes {stable_mosaic.version = 11 : i64} {
  func.func @kernel(%arg0: i32, %arg1: i32, %arg2: memref<1x115x115x12xbf16, #tpu.memory_space<vmem>>, %arg3: memref<16x12x64xbf16, #tpu.memory_space<vmem>>, %arg4: memref<1x8x112x64xbf16, #tpu.memory_space<vmem>>, %arg5: memref<1x1x2x64xf32, #tpu.memory_space<vmem>>) attributes {dimension_semantics = [#tpu.dimension_semantics<parallel>, #tpu.dimension_semantics<parallel>], iteration_bounds = array<i64: 2, 14>, scalar_prefetch = 0 : i64, scratch_operands = 0 : i64, tpu.core_type = #tpu.core_type<tc>, window_params = [{transform_indices = @transform_0, window_bounds = array<i64: 1, 115, 115, 12>}, {pipeline_mode = #tpu.pipeline_mode<synchronous>, transform_indices = @transform_1, window_bounds = array<i64: 16, 12, 64>}, {transform_indices = @transform_2, window_bounds = array<i64: 1, 8, 112, 64>}, {transform_indices = @transform_3, window_bounds = array<i64: 1, 1, 2, 64>}]} {
    %c8_i32 = arith.constant 8 : i32
    %0 = arith.muli %arg1, %c8_i32 : i32
    %cst = arith.constant 0.000000e+00 : f32
    %1 = vector.broadcast %cst : f32 to vector<1x64xf32>
    %cst_0 = arith.constant 0.000000e+00 : f32
    %2 = vector.broadcast %cst_0 : f32 to vector<1x64xf32>
    %c0_i32 = arith.constant 0 : i32
    %c8_i32_1 = arith.constant 8 : i32
    %3 = arith.addi %c0_i32, %c8_i32_1 : i32
    %c1_i32 = arith.constant 1 : i32
    %4:2 = scf.for %arg6 = %c0_i32 to %3 step %c1_i32 iter_args(%arg7 = %1, %arg8 = %2) -> (vector<1x64xf32>, vector<1x64xf32>)  : i32 {
      %11 = arith.addi %0, %arg6 : i32
      %c0_i32_9 = arith.constant 0 : i32
      %12 = arith.addi %11, %c0_i32_9 : i32
      %c0_10 = arith.constant 0 : index
      %13 = arith.index_cast %12 : i32 to index
      %c0_11 = arith.constant 0 : index
      %c0_12 = arith.constant 0 : index
      %14 = vector.load %arg2[%c0_10, %13, %c0_11, %c0_12] : memref<1x115x115x12xbf16, #tpu.memory_space<vmem>>, vector<1x1x112x12xbf16>
      %15 = vector.shape_cast %14 : vector<1x1x112x12xbf16> to vector<112x12xbf16>
      %c0_13 = arith.constant 0 : index
      %c0_14 = arith.constant 0 : index
      %c0_15 = arith.constant 0 : index
      %16 = vector.load %arg3[%c0_13, %c0_14, %c0_15] : memref<16x12x64xbf16, #tpu.memory_space<vmem>>, vector<1x12x64xbf16>
      %17 = vector.shape_cast %16 : vector<1x12x64xbf16> to vector<12x64xbf16>
      %cst_16 = arith.constant dense<0.000000e+00> : vector<112x64xf32>
      %18 = tpu.matmul %15, %17, %cst_16 {dimension_numbers = #tpu.dot_dimension_numbers<[1], [0], [0], [1], [0, 0, 1, 1], [], []>} : vector<112x12xbf16>, vector<12x64xbf16>, vector<112x64xf32> -> vector<112x64xf32>
      %19 = arith.addi %0, %arg6 : i32
      %c0_i32_17 = arith.constant 0 : i32
      %20 = arith.addi %19, %c0_i32_17 : i32
      %c0_18 = arith.constant 0 : index
      %21 = arith.index_cast %20 : i32 to index
      %c1_19 = arith.constant 1 : index
      %c0_20 = arith.constant 0 : index
      %22 = vector.load %arg2[%c0_18, %21, %c1_19, %c0_20] : memref<1x115x115x12xbf16, #tpu.memory_space<vmem>>, vector<1x1x112x12xbf16>
      %23 = vector.shape_cast %22 : vector<1x1x112x12xbf16> to vector<112x12xbf16>
      %c1_21 = arith.constant 1 : index
      %c0_22 = arith.constant 0 : index
      %c0_23 = arith.constant 0 : index
      %24 = vector.load %arg3[%c1_21, %c0_22, %c0_23] : memref<16x12x64xbf16, #tpu.memory_space<vmem>>, vector<1x12x64xbf16>
      %25 = vector.shape_cast %24 : vector<1x12x64xbf16> to vector<12x64xbf16>
      %cst_24 = arith.constant dense<0.000000e+00> : vector<112x64xf32>
      %26 = tpu.matmul %23, %25, %cst_24 {dimension_numbers = #tpu.dot_dimension_numbers<[1], [0], [0], [1], [0, 0, 1, 1], [], []>} : vector<112x12xbf16>, vector<12x64xbf16>, vector<112x64xf32> -> vector<112x64xf32>
      %27 = arith.addf %18, %26 : vector<112x64xf32>
      %28 = arith.addi %0, %arg6 : i32
      %c0_i32_25 = arith.constant 0 : i32
      %29 = arith.addi %28, %c0_i32_25 : i32
      %c0_26 = arith.constant 0 : index
      %30 = arith.index_cast %29 : i32 to index
      %c2 = arith.constant 2 : index
      %c0_27 = arith.constant 0 : index
      %31 = vector.load %arg2[%c0_26, %30, %c2, %c0_27] : memref<1x115x115x12xbf16, #tpu.memory_space<vmem>>, vector<1x1x112x12xbf16>
      %32 = vector.shape_cast %31 : vector<1x1x112x12xbf16> to vector<112x12xbf16>
      %c2_28 = arith.constant 2 : index
      %c0_29 = arith.constant 0 : index
      %c0_30 = arith.constant 0 : index
      %33 = vector.load %arg3[%c2_28, %c0_29, %c0_30] : memref<16x12x64xbf16, #tpu.memory_space<vmem>>, vector<1x12x64xbf16>
      %34 = vector.shape_cast %33 : vector<1x12x64xbf16> to vector<12x64xbf16>
      %cst_31 = arith.constant dense<0.000000e+00> : vector<112x64xf32>
      %35 = tpu.matmul %32, %34, %cst_31 {dimension_numbers = #tpu.dot_dimension_numbers<[1], [0], [0], [1], [0, 0, 1, 1], [], []>} : vector<112x12xbf16>, vector<12x64xbf16>, vector<112x64xf32> -> vector<112x64xf32>
      %36 = arith.addf %27, %35 : vector<112x64xf32>
      %37 = arith.addi %0, %arg6 : i32
      %c0_i32_32 = arith.constant 0 : i32
      %38 = arith.addi %37, %c0_i32_32 : i32
      %c0_33 = arith.constant 0 : index
      %39 = arith.index_cast %38 : i32 to index
      %c3 = arith.constant 3 : index
      %c0_34 = arith.constant 0 : index
      %40 = vector.load %arg2[%c0_33, %39, %c3, %c0_34] : memref<1x115x115x12xbf16, #tpu.memory_space<vmem>>, vector<1x1x112x12xbf16>
      %41 = vector.shape_cast %40 : vector<1x1x112x12xbf16> to vector<112x12xbf16>
      %c3_35 = arith.constant 3 : index
      %c0_36 = arith.constant 0 : index
      %c0_37 = arith.constant 0 : index
      %42 = vector.load %arg3[%c3_35, %c0_36, %c0_37] : memref<16x12x64xbf16, #tpu.memory_space<vmem>>, vector<1x12x64xbf16>
      %43 = vector.shape_cast %42 : vector<1x12x64xbf16> to vector<12x64xbf16>
      %cst_38 = arith.constant dense<0.000000e+00> : vector<112x64xf32>
      %44 = tpu.matmul %41, %43, %cst_38 {dimension_numbers = #tpu.dot_dimension_numbers<[1], [0], [0], [1], [0, 0, 1, 1], [], []>} : vector<112x12xbf16>, vector<12x64xbf16>, vector<112x64xf32> -> vector<112x64xf32>
      %45 = arith.addf %36, %44 : vector<112x64xf32>
      %46 = arith.addi %0, %arg6 : i32
      %c1_i32_39 = arith.constant 1 : i32
      %47 = arith.addi %46, %c1_i32_39 : i32
      %c0_40 = arith.constant 0 : index
      %48 = arith.index_cast %47 : i32 to index
      %c0_41 = arith.constant 0 : index
      %c0_42 = arith.constant 0 : index
      %49 = vector.load %arg2[%c0_40, %48, %c0_41, %c0_42] : memref<1x115x115x12xbf16, #tpu.memory_space<vmem>>, vector<1x1x112x12xbf16>
      %50 = vector.shape_cast %49 : vector<1x1x112x12xbf16> to vector<112x12xbf16>
      %c4 = arith.constant 4 : index
      %c0_43 = arith.constant 0 : index
      %c0_44 = arith.constant 0 : index
      %51 = vector.load %arg3[%c4, %c0_43, %c0_44] : memref<16x12x64xbf16, #tpu.memory_space<vmem>>, vector<1x12x64xbf16>
      %52 = vector.shape_cast %51 : vector<1x12x64xbf16> to vector<12x64xbf16>
      %cst_45 = arith.constant dense<0.000000e+00> : vector<112x64xf32>
      %53 = tpu.matmul %50, %52, %cst_45 {dimension_numbers = #tpu.dot_dimension_numbers<[1], [0], [0], [1], [0, 0, 1, 1], [], []>} : vector<112x12xbf16>, vector<12x64xbf16>, vector<112x64xf32> -> vector<112x64xf32>
      %54 = arith.addf %45, %53 : vector<112x64xf32>
      %55 = arith.addi %0, %arg6 : i32
      %c1_i32_46 = arith.constant 1 : i32
      %56 = arith.addi %55, %c1_i32_46 : i32
      %c0_47 = arith.constant 0 : index
      %57 = arith.index_cast %56 : i32 to index
      %c1_48 = arith.constant 1 : index
      %c0_49 = arith.constant 0 : index
      %58 = vector.load %arg2[%c0_47, %57, %c1_48, %c0_49] : memref<1x115x115x12xbf16, #tpu.memory_space<vmem>>, vector<1x1x112x12xbf16>
      %59 = vector.shape_cast %58 : vector<1x1x112x12xbf16> to vector<112x12xbf16>
      %c5 = arith.constant 5 : index
      %c0_50 = arith.constant 0 : index
      %c0_51 = arith.constant 0 : index
      %60 = vector.load %arg3[%c5, %c0_50, %c0_51] : memref<16x12x64xbf16, #tpu.memory_space<vmem>>, vector<1x12x64xbf16>
      %61 = vector.shape_cast %60 : vector<1x12x64xbf16> to vector<12x64xbf16>
      %cst_52 = arith.constant dense<0.000000e+00> : vector<112x64xf32>
      %62 = tpu.matmul %59, %61, %cst_52 {dimension_numbers = #tpu.dot_dimension_numbers<[1], [0], [0], [1], [0, 0, 1, 1], [], []>} : vector<112x12xbf16>, vector<12x64xbf16>, vector<112x64xf32> -> vector<112x64xf32>
      %63 = arith.addf %54, %62 : vector<112x64xf32>
      %64 = arith.addi %0, %arg6 : i32
      %c1_i32_53 = arith.constant 1 : i32
      %65 = arith.addi %64, %c1_i32_53 : i32
      %c0_54 = arith.constant 0 : index
      %66 = arith.index_cast %65 : i32 to index
      %c2_55 = arith.constant 2 : index
      %c0_56 = arith.constant 0 : index
      %67 = vector.load %arg2[%c0_54, %66, %c2_55, %c0_56] : memref<1x115x115x12xbf16, #tpu.memory_space<vmem>>, vector<1x1x112x12xbf16>
      %68 = vector.shape_cast %67 : vector<1x1x112x12xbf16> to vector<112x12xbf16>
      %c6 = arith.constant 6 : index
      %c0_57 = arith.constant 0 : index
      %c0_58 = arith.constant 0 : index
      %69 = vector.load %arg3[%c6, %c0_57, %c0_58] : memref<16x12x64xbf16, #tpu.memory_space<vmem>>, vector<1x12x64xbf16>
      %70 = vector.shape_cast %69 : vector<1x12x64xbf16> to vector<12x64xbf16>
      %cst_59 = arith.constant dense<0.000000e+00> : vector<112x64xf32>
      %71 = tpu.matmul %68, %70, %cst_59 {dimension_numbers = #tpu.dot_dimension_numbers<[1], [0], [0], [1], [0, 0, 1, 1], [], []>} : vector<112x12xbf16>, vector<12x64xbf16>, vector<112x64xf32> -> vector<112x64xf32>
      %72 = arith.addf %63, %71 : vector<112x64xf32>
      %73 = arith.addi %0, %arg6 : i32
      %c1_i32_60 = arith.constant 1 : i32
      %74 = arith.addi %73, %c1_i32_60 : i32
      %c0_61 = arith.constant 0 : index
      %75 = arith.index_cast %74 : i32 to index
      %c3_62 = arith.constant 3 : index
      %c0_63 = arith.constant 0 : index
      %76 = vector.load %arg2[%c0_61, %75, %c3_62, %c0_63] : memref<1x115x115x12xbf16, #tpu.memory_space<vmem>>, vector<1x1x112x12xbf16>
      %77 = vector.shape_cast %76 : vector<1x1x112x12xbf16> to vector<112x12xbf16>
      %c7 = arith.constant 7 : index
      %c0_64 = arith.constant 0 : index
      %c0_65 = arith.constant 0 : index
      %78 = vector.load %arg3[%c7, %c0_64, %c0_65] : memref<16x12x64xbf16, #tpu.memory_space<vmem>>, vector<1x12x64xbf16>
      %79 = vector.shape_cast %78 : vector<1x12x64xbf16> to vector<12x64xbf16>
      %cst_66 = arith.constant dense<0.000000e+00> : vector<112x64xf32>
      %80 = tpu.matmul %77, %79, %cst_66 {dimension_numbers = #tpu.dot_dimension_numbers<[1], [0], [0], [1], [0, 0, 1, 1], [], []>} : vector<112x12xbf16>, vector<12x64xbf16>, vector<112x64xf32> -> vector<112x64xf32>
      %81 = arith.addf %72, %80 : vector<112x64xf32>
      %82 = arith.addi %0, %arg6 : i32
      %c2_i32 = arith.constant 2 : i32
      %83 = arith.addi %82, %c2_i32 : i32
      %c0_67 = arith.constant 0 : index
      %84 = arith.index_cast %83 : i32 to index
      %c0_68 = arith.constant 0 : index
      %c0_69 = arith.constant 0 : index
      %85 = vector.load %arg2[%c0_67, %84, %c0_68, %c0_69] : memref<1x115x115x12xbf16, #tpu.memory_space<vmem>>, vector<1x1x112x12xbf16>
      %86 = vector.shape_cast %85 : vector<1x1x112x12xbf16> to vector<112x12xbf16>
      %c8 = arith.constant 8 : index
      %c0_70 = arith.constant 0 : index
      %c0_71 = arith.constant 0 : index
      %87 = vector.load %arg3[%c8, %c0_70, %c0_71] : memref<16x12x64xbf16, #tpu.memory_space<vmem>>, vector<1x12x64xbf16>
      %88 = vector.shape_cast %87 : vector<1x12x64xbf16> to vector<12x64xbf16>
      %cst_72 = arith.constant dense<0.000000e+00> : vector<112x64xf32>
      %89 = tpu.matmul %86, %88, %cst_72 {dimension_numbers = #tpu.dot_dimension_numbers<[1], [0], [0], [1], [0, 0, 1, 1], [], []>} : vector<112x12xbf16>, vector<12x64xbf16>, vector<112x64xf32> -> vector<112x64xf32>
      %90 = arith.addf %81, %89 : vector<112x64xf32>
      %91 = arith.addi %0, %arg6 : i32
      %c2_i32_73 = arith.constant 2 : i32
      %92 = arith.addi %91, %c2_i32_73 : i32
      %c0_74 = arith.constant 0 : index
      %93 = arith.index_cast %92 : i32 to index
      %c1_75 = arith.constant 1 : index
      %c0_76 = arith.constant 0 : index
      %94 = vector.load %arg2[%c0_74, %93, %c1_75, %c0_76] : memref<1x115x115x12xbf16, #tpu.memory_space<vmem>>, vector<1x1x112x12xbf16>
      %95 = vector.shape_cast %94 : vector<1x1x112x12xbf16> to vector<112x12xbf16>
      %c9 = arith.constant 9 : index
      %c0_77 = arith.constant 0 : index
      %c0_78 = arith.constant 0 : index
      %96 = vector.load %arg3[%c9, %c0_77, %c0_78] : memref<16x12x64xbf16, #tpu.memory_space<vmem>>, vector<1x12x64xbf16>
      %97 = vector.shape_cast %96 : vector<1x12x64xbf16> to vector<12x64xbf16>
      %cst_79 = arith.constant dense<0.000000e+00> : vector<112x64xf32>
      %98 = tpu.matmul %95, %97, %cst_79 {dimension_numbers = #tpu.dot_dimension_numbers<[1], [0], [0], [1], [0, 0, 1, 1], [], []>} : vector<112x12xbf16>, vector<12x64xbf16>, vector<112x64xf32> -> vector<112x64xf32>
      %99 = arith.addf %90, %98 : vector<112x64xf32>
      %100 = arith.addi %0, %arg6 : i32
      %c2_i32_80 = arith.constant 2 : i32
      %101 = arith.addi %100, %c2_i32_80 : i32
      %c0_81 = arith.constant 0 : index
      %102 = arith.index_cast %101 : i32 to index
      %c2_82 = arith.constant 2 : index
      %c0_83 = arith.constant 0 : index
      %103 = vector.load %arg2[%c0_81, %102, %c2_82, %c0_83] : memref<1x115x115x12xbf16, #tpu.memory_space<vmem>>, vector<1x1x112x12xbf16>
      %104 = vector.shape_cast %103 : vector<1x1x112x12xbf16> to vector<112x12xbf16>
      %c10 = arith.constant 10 : index
      %c0_84 = arith.constant 0 : index
      %c0_85 = arith.constant 0 : index
      %105 = vector.load %arg3[%c10, %c0_84, %c0_85] : memref<16x12x64xbf16, #tpu.memory_space<vmem>>, vector<1x12x64xbf16>
      %106 = vector.shape_cast %105 : vector<1x12x64xbf16> to vector<12x64xbf16>
      %cst_86 = arith.constant dense<0.000000e+00> : vector<112x64xf32>
      %107 = tpu.matmul %104, %106, %cst_86 {dimension_numbers = #tpu.dot_dimension_numbers<[1], [0], [0], [1], [0, 0, 1, 1], [], []>} : vector<112x12xbf16>, vector<12x64xbf16>, vector<112x64xf32> -> vector<112x64xf32>
      %108 = arith.addf %99, %107 : vector<112x64xf32>
      %109 = arith.addi %0, %arg6 : i32
      %c2_i32_87 = arith.constant 2 : i32
      %110 = arith.addi %109, %c2_i32_87 : i32
      %c0_88 = arith.constant 0 : index
      %111 = arith.index_cast %110 : i32 to index
      %c3_89 = arith.constant 3 : index
      %c0_90 = arith.constant 0 : index
      %112 = vector.load %arg2[%c0_88, %111, %c3_89, %c0_90] : memref<1x115x115x12xbf16, #tpu.memory_space<vmem>>, vector<1x1x112x12xbf16>
      %113 = vector.shape_cast %112 : vector<1x1x112x12xbf16> to vector<112x12xbf16>
      %c11 = arith.constant 11 : index
      %c0_91 = arith.constant 0 : index
      %c0_92 = arith.constant 0 : index
      %114 = vector.load %arg3[%c11, %c0_91, %c0_92] : memref<16x12x64xbf16, #tpu.memory_space<vmem>>, vector<1x12x64xbf16>
      %115 = vector.shape_cast %114 : vector<1x12x64xbf16> to vector<12x64xbf16>
      %cst_93 = arith.constant dense<0.000000e+00> : vector<112x64xf32>
      %116 = tpu.matmul %113, %115, %cst_93 {dimension_numbers = #tpu.dot_dimension_numbers<[1], [0], [0], [1], [0, 0, 1, 1], [], []>} : vector<112x12xbf16>, vector<12x64xbf16>, vector<112x64xf32> -> vector<112x64xf32>
      %117 = arith.addf %108, %116 : vector<112x64xf32>
      %118 = arith.addi %0, %arg6 : i32
      %c3_i32 = arith.constant 3 : i32
      %119 = arith.addi %118, %c3_i32 : i32
      %c0_94 = arith.constant 0 : index
      %120 = arith.index_cast %119 : i32 to index
      %c0_95 = arith.constant 0 : index
      %c0_96 = arith.constant 0 : index
      %121 = vector.load %arg2[%c0_94, %120, %c0_95, %c0_96] : memref<1x115x115x12xbf16, #tpu.memory_space<vmem>>, vector<1x1x112x12xbf16>
      %122 = vector.shape_cast %121 : vector<1x1x112x12xbf16> to vector<112x12xbf16>
      %c12 = arith.constant 12 : index
      %c0_97 = arith.constant 0 : index
      %c0_98 = arith.constant 0 : index
      %123 = vector.load %arg3[%c12, %c0_97, %c0_98] : memref<16x12x64xbf16, #tpu.memory_space<vmem>>, vector<1x12x64xbf16>
      %124 = vector.shape_cast %123 : vector<1x12x64xbf16> to vector<12x64xbf16>
      %cst_99 = arith.constant dense<0.000000e+00> : vector<112x64xf32>
      %125 = tpu.matmul %122, %124, %cst_99 {dimension_numbers = #tpu.dot_dimension_numbers<[1], [0], [0], [1], [0, 0, 1, 1], [], []>} : vector<112x12xbf16>, vector<12x64xbf16>, vector<112x64xf32> -> vector<112x64xf32>
      %126 = arith.addf %117, %125 : vector<112x64xf32>
      %127 = arith.addi %0, %arg6 : i32
      %c3_i32_100 = arith.constant 3 : i32
      %128 = arith.addi %127, %c3_i32_100 : i32
      %c0_101 = arith.constant 0 : index
      %129 = arith.index_cast %128 : i32 to index
      %c1_102 = arith.constant 1 : index
      %c0_103 = arith.constant 0 : index
      %130 = vector.load %arg2[%c0_101, %129, %c1_102, %c0_103] : memref<1x115x115x12xbf16, #tpu.memory_space<vmem>>, vector<1x1x112x12xbf16>
      %131 = vector.shape_cast %130 : vector<1x1x112x12xbf16> to vector<112x12xbf16>
      %c13 = arith.constant 13 : index
      %c0_104 = arith.constant 0 : index
      %c0_105 = arith.constant 0 : index
      %132 = vector.load %arg3[%c13, %c0_104, %c0_105] : memref<16x12x64xbf16, #tpu.memory_space<vmem>>, vector<1x12x64xbf16>
      %133 = vector.shape_cast %132 : vector<1x12x64xbf16> to vector<12x64xbf16>
      %cst_106 = arith.constant dense<0.000000e+00> : vector<112x64xf32>
      %134 = tpu.matmul %131, %133, %cst_106 {dimension_numbers = #tpu.dot_dimension_numbers<[1], [0], [0], [1], [0, 0, 1, 1], [], []>} : vector<112x12xbf16>, vector<12x64xbf16>, vector<112x64xf32> -> vector<112x64xf32>
      %135 = arith.addf %126, %134 : vector<112x64xf32>
      %136 = arith.addi %0, %arg6 : i32
      %c3_i32_107 = arith.constant 3 : i32
      %137 = arith.addi %136, %c3_i32_107 : i32
      %c0_108 = arith.constant 0 : index
      %138 = arith.index_cast %137 : i32 to index
      %c2_109 = arith.constant 2 : index
      %c0_110 = arith.constant 0 : index
      %139 = vector.load %arg2[%c0_108, %138, %c2_109, %c0_110] : memref<1x115x115x12xbf16, #tpu.memory_space<vmem>>, vector<1x1x112x12xbf16>
      %140 = vector.shape_cast %139 : vector<1x1x112x12xbf16> to vector<112x12xbf16>
      %c14 = arith.constant 14 : index
      %c0_111 = arith.constant 0 : index
      %c0_112 = arith.constant 0 : index
      %141 = vector.load %arg3[%c14, %c0_111, %c0_112] : memref<16x12x64xbf16, #tpu.memory_space<vmem>>, vector<1x12x64xbf16>
      %142 = vector.shape_cast %141 : vector<1x12x64xbf16> to vector<12x64xbf16>
      %cst_113 = arith.constant dense<0.000000e+00> : vector<112x64xf32>
      %143 = tpu.matmul %140, %142, %cst_113 {dimension_numbers = #tpu.dot_dimension_numbers<[1], [0], [0], [1], [0, 0, 1, 1], [], []>} : vector<112x12xbf16>, vector<12x64xbf16>, vector<112x64xf32> -> vector<112x64xf32>
      %144 = arith.addf %135, %143 : vector<112x64xf32>
      %145 = arith.addi %0, %arg6 : i32
      %c3_i32_114 = arith.constant 3 : i32
      %146 = arith.addi %145, %c3_i32_114 : i32
      %c0_115 = arith.constant 0 : index
      %147 = arith.index_cast %146 : i32 to index
      %c3_116 = arith.constant 3 : index
      %c0_117 = arith.constant 0 : index
      %148 = vector.load %arg2[%c0_115, %147, %c3_116, %c0_117] : memref<1x115x115x12xbf16, #tpu.memory_space<vmem>>, vector<1x1x112x12xbf16>
      %149 = vector.shape_cast %148 : vector<1x1x112x12xbf16> to vector<112x12xbf16>
      %c15 = arith.constant 15 : index
      %c0_118 = arith.constant 0 : index
      %c0_119 = arith.constant 0 : index
      %150 = vector.load %arg3[%c15, %c0_118, %c0_119] : memref<16x12x64xbf16, #tpu.memory_space<vmem>>, vector<1x12x64xbf16>
      %151 = vector.shape_cast %150 : vector<1x12x64xbf16> to vector<12x64xbf16>
      %cst_120 = arith.constant dense<0.000000e+00> : vector<112x64xf32>
      %152 = tpu.matmul %149, %151, %cst_120 {dimension_numbers = #tpu.dot_dimension_numbers<[1], [0], [0], [1], [0, 0, 1, 1], [], []>} : vector<112x12xbf16>, vector<12x64xbf16>, vector<112x64xf32> -> vector<112x64xf32>
      %153 = arith.addf %144, %152 : vector<112x64xf32>
      %154 = arith.truncf %153 : vector<112x64xf32> to vector<112x64xbf16>
      %c0_121 = arith.constant 0 : index
      %155 = arith.index_cast %arg6 : i32 to index
      %c0_122 = arith.constant 0 : index
      %c0_123 = arith.constant 0 : index
      %156 = vector.load %arg4[%c0_121, %155, %c0_122, %c0_123] : memref<1x8x112x64xbf16, #tpu.memory_space<vmem>>, vector<1x1x112x64xbf16>
      %157 = vector.shape_cast %156 : vector<1x1x112x64xbf16> to vector<112x64xbf16>
      %158 = vector.shape_cast %154 : vector<112x64xbf16> to vector<1x1x112x64xbf16>
      tpu.vector_store %arg4[%c0_121, %155, %c0_122, %c0_123], %158 {strides = array<i32>} : memref<1x8x112x64xbf16, #tpu.memory_space<vmem>>, vector<1x1x112x64xbf16>,
      %cst_124 = arith.constant dense<0.000000e+00> : vector<64xf32>
      %159 = vector.multi_reduction <add>, %153, %cst_124 [0] : vector<112x64xf32> to vector<64xf32>
      %160 = vector.shape_cast %159 : vector<64xf32> to vector<1x64xf32>
      %161 = arith.addf %arg7, %160 : vector<1x64xf32>
      %162 = arith.mulf %153, %153 : vector<112x64xf32>
      %cst_125 = arith.constant dense<0.000000e+00> : vector<64xf32>
      %163 = vector.multi_reduction <add>, %162, %cst_125 [0] : vector<112x64xf32> to vector<64xf32>
      %164 = vector.shape_cast %163 : vector<64xf32> to vector<1x64xf32>
      %165 = arith.addf %arg8, %164 : vector<1x64xf32>
      scf.yield %161, %165 : vector<1x64xf32>, vector<1x64xf32>
    }
    %c8_i32_2 = arith.constant 8 : i32
    %c0 = arith.constant 0 : index
    %c0_3 = arith.constant 0 : index
    %c0_4 = arith.constant 0 : index
    %c0_5 = arith.constant 0 : index
    %5 = vector.load %arg5[%c0, %c0_3, %c0_4, %c0_5] : memref<1x1x2x64xf32, #tpu.memory_space<vmem>>, vector<1x1x1x64xf32>
    %6 = vector.shape_cast %5 : vector<1x1x1x64xf32> to vector<1x64xf32>
    %7 = vector.shape_cast %4#0 : vector<1x64xf32> to vector<1x1x1x64xf32>
    tpu.vector_store %arg5[%c0, %c0_3, %c0_4, %c0_5], %7 {strides = array<i32>} : memref<1x1x2x64xf32, #tpu.memory_space<vmem>>, vector<1x1x1x64xf32>,
    %c0_6 = arith.constant 0 : index
    %c0_7 = arith.constant 0 : index
    %c1 = arith.constant 1 : index
    %c0_8 = arith.constant 0 : index
    %8 = vector.load %arg5[%c0_6, %c0_7, %c1, %c0_8] : memref<1x1x2x64xf32, #tpu.memory_space<vmem>>, vector<1x1x1x64xf32>
    %9 = vector.shape_cast %8 : vector<1x1x1x64xf32> to vector<1x64xf32>
    %10 = vector.shape_cast %4#1 : vector<1x64xf32> to vector<1x1x1x64xf32>
    tpu.vector_store %arg5[%c0_6, %c0_7, %c1, %c0_8], %10 {strides = array<i32>} : memref<1x1x2x64xf32, #tpu.memory_space<vmem>>, vector<1x1x1x64xf32>,
    return
  }
  func.func @transform_0(%arg0: i32, %arg1: i32) -> (i32, i32, i32, i32) {
    %c0_i32 = arith.constant 0 : i32
    %c0_i32_0 = arith.constant 0 : i32
    %c0_i32_1 = arith.constant 0 : i32
    %c0_i32_2 = arith.constant 0 : i32
    return %arg0, %c0_i32, %c0_i32_0, %c0_i32_1 : i32, i32, i32, i32
  }
  func.func @transform_1(%arg0: i32, %arg1: i32) -> (i32, i32, i32) {
    %c0_i32 = arith.constant 0 : i32
    %c0_i32_0 = arith.constant 0 : i32
    %c0_i32_1 = arith.constant 0 : i32
    %c0_i32_2 = arith.constant 0 : i32
    return %c0_i32, %c0_i32_0, %c0_i32_1 : i32, i32, i32
  }
  func.func @transform_2(%arg0: i32, %arg1: i32) -> (i32, i32, i32, i32) {
    %c0_i32 = arith.constant 0 : i32
    %c0_i32_0 = arith.constant 0 : i32
    %c0_i32_1 = arith.constant 0 : i32
    return %arg0, %arg1, %c0_i32, %c0_i32_0 : i32, i32, i32, i32
  }
  func.func @transform_3(%arg0: i32, %arg1: i32) -> (i32, i32, i32, i32) {
    %c0_i32 = arith.constant 0 : i32
    %c0_i32_0 = arith.constant 0 : i32
    %c0_i32_1 = arith.constant 0 : i32
    return %arg0, %arg1, %c0_i32, %c0_i32_0 : i32, i32, i32, i32
  }
}

</mosaic_0001>

<llo_original>
// kernel: tpu_custom_call.1
$region0: #{tpu_custom_call.1}
  #allocation0 [shape = 'u32[]', space=smem, size = 0x4, offset = 0x4, fixed_abs, tag = 'smem constant byte address 0x4 - core index']
  #allocation1 [shape = 'u32[144,128]{1,0:T(1,128)}', space=vmem, size = 0x12000, scoped, tag = 'internal scratch']
  %s0 = inlined_call_operand.vmem [shape: bf16[2,115,115,12], index: 0, kind: input, shape index: {}]
  %s1 = inlined_call_operand.vmem [shape: bf16[16,12,64], index: 1, kind: input, shape index: {}]
  %s2 = inlined_call_operand.vmem [shape: bf16[2,112,112,64], index: 2, kind: output, shape index: {0}]
  %s3 = inlined_call_operand.hbm [shape: f32[2,14,2,64], index: 3, kind: output, shape index: {1}]
  %4 = xla_tuple %s2, %s3
  %s5 = sld [smem:[#allocation0]]
  $region56: #{tpu_custom_call.1} parent=0
    _
  %s7 = ssub.s32 1, %s5
  %s8 = scalar_select 0, %s7, %s5
  $region1: #{tpu_custom_call.1} parent=0
    #allocation2 [shape = 'u8[2048]{0}', space=vmem, size = 0x800, scoped, tag = 'output window, operand 1']
    #allocation3 [shape = 's32[2]{0}', space=sflag, size = 0x8, scoped, tag = 'scoped memory for tpu_custom_call.1']
    %9 = vsyncpa [#allocation3], 0
    %s10 = scalar_lea.sflag [#allocation3], 1
    %11 = vsyncpa %s10, 0
    loop: start=0, step=1, limit=30
    $region2: #{tpu_custom_call.1} parent=1 // loop_pre_header
      _
    $region3: #{tpu_custom_call.1} parent=1 // loop_header
      %s13 = sphi 0, %s17
      %p14 = scmp.ge.s32.totalorder %s13, 30
      %s20 = sphi 0, %s32
      %s21 = sphi 0, %s28
      %s22 = sphi 0, %s20
      %s23 = sphi 0, %s21
      %s24 = sphi 0, %s22
      %s25 = sphi 0, %s23
      %s35 = sphi 0, %s37
      %s38 = sphi 0, %s35
      %s39 = sphi 0, %s38
      %s55 = sphi 0, %s39
      %s59 = sphi 0, %s59
      %s61 = sphi 0, %s59
      %s62 = sphi 0, %s61
      %s76 = sphi 0, %s62
      %s84 = sphi 0, %s86
      %s87 = sphi 0, %s84
      %s88 = sphi 0, %s87
      %s104 = sphi 0, %s88
      %s112 = sphi 0, %s114
      %s115 = sphi 0, %s112
      %s116 = sphi 0, %s115
      %s132 = sphi 0, %s116
    $region4: #{tpu_custom_call.1} parent=1 // loop_header_branch
      %16 = sbr.rel (%p14) target = $region8
    $region5: #{tpu_custom_call.1} parent=1 // loop_body
      %s18 = ssub.s32 %s13, 1
      %s19 = ssub.s32 %s13, 2
      %s26 = sadd.s32 1, %s21
      %p27 = scmp.ge.s32.totalorder %s26, 14
      %s28 = scalar_select %p27, 0, %s26
      %s29 = sadd.s32 1, %s20
      %s30 = scalar_select %p27, %s29, %s20
      %p31 = scmp.ge.s32.totalorder %s30, 2
      %s32 = scalar_select %p31, 0, %s30
      %s33 = ssub.s32 %s20, %s32
      %p34 = scmp.eq.s32.totalorder %s33, 0
      %s36 = sadd.s32 %s35, 1
      %s37 = scalar_select %p34, %s35, %s36
      %p40 = pneg %p34
      %p41 = scmp.eq.s32.totalorder %s13, 27
      %p42 = por %p40, %p41
      %p43 = scmp.ne.s32.totalorder %s35, %s38
      %p44 = scmp.eq.s32.totalorder %s13, 0
      %p45 = por %p43, %p44
      %p46 = scmp.ne.s32.totalorder %s35, %s38
      %p47 = scmp.eq.s32.totalorder %s18, 27
      %p48 = por %p46, %p47
      %p49 = scmp.ne.s32.totalorder %s38, %s39
      %p50 = scmp.eq.s32.totalorder %s18, 0
      %p51 = por %p49, %p50
      %p52 = scmp.ne.s32.totalorder %s38, %s39
      %p53 = scmp.eq.s32.totalorder %s19, 27
      %p54 = por %p52, %p53
      %p56 = scmp.ne.s32.totalorder %s39, %s55
      %p57 = scmp.eq.s32.totalorder %s19, 0
      %p58 = por %p56, %p57
      %s60 = sadd.s32 %s59, 1
      %p63 = scmp.eq.s32.totalorder %s13, 27
      %p64 = scmp.ne.s32.totalorder %s59, %s61
      %p65 = scmp.eq.s32.totalorder %s13, 0
      %p66 = por %p64, %p65
      %p67 = scmp.ne.s32.totalorder %s59, %s61
      %p68 = scmp.eq.s32.totalorder %s18, 27
      %p69 = por %p67, %p68
      %p70 = scmp.ne.s32.totalorder %s61, %s62
      %p71 = scmp.eq.s32.totalorder %s18, 0
      %p72 = por %p70, %p71
      %p73 = scmp.ne.s32.totalorder %s61, %s62
      %p74 = scmp.eq.s32.totalorder %s19, 27
      %p75 = por %p73, %p74
      %p77 = scmp.ne.s32.totalorder %s62, %s76
      %p78 = scmp.eq.s32.totalorder %s19, 0
      %p79 = por %p77, %p78
      %s80 = ssub.s32 %s20, %s32
      %s81 = ssub.s32 %s21, %s28
      %s82 = sor.u32 %s80, %s81
      %p83 = scmp.eq.s32.totalorder %s82, 0
      %s85 = sadd.s32 %s84, 1
      %s86 = scalar_select %p83, %s84, %s85
      %p89 = pneg %p83
      %p90 = scmp.eq.s32.totalorder %s13, 27
      %p91 = por %p89, %p90
      %p92 = scmp.ne.s32.totalorder %s84, %s87
      %p93 = scmp.eq.s32.totalorder %s13, 0
      %p94 = por %p92, %p93
      %p95 = scmp.ne.s32.totalorder %s84, %s87
      %p96 = scmp.eq.s32.totalorder %s18, 27
      %p97 = por %p95, %p96
      %p98 = scmp.ne.s32.totalorder %s87, %s88
      %p99 = scmp.eq.s32.totalorder %s18, 0
      %p100 = por %p98, %p99
      %p101 = scmp.ne.s32.totalorder %s87, %s88
      %p102 = scmp.eq.s32.totalorder %s19, 27
      %p103 = por %p101, %p102
      %p105 = scmp.ne.s32.totalorder %s88, %s104
      %p106 = scmp.eq.s32.totalorder %s19, 0
      %p107 = por %p105, %p106
      %s108 = ssub.s32 %s20, %s32
      %s109 = ssub.s32 %s21, %s28
      %s110 = sor.u32 %s108, %s109
      %p111 = scmp.eq.s32.totalorder %s110, 0
      %s113 = sadd.s32 %s112, 1
      %s114 = scalar_select %p111, %s112, %s113
      %p117 = pneg %p111
      %p118 = scmp.eq.s32.totalorder %s13, 27
      %p119 = por %p117, %p118
      %p120 = scmp.ne.s32.totalorder %s112, %s115
      %p121 = scmp.eq.s32.totalorder %s13, 0
      %p122 = por %p120, %p121
      %p123 = scmp.ne.s32.totalorder %s112, %s115
      %p124 = scmp.eq.s32.totalorder %s18, 27
      %p125 = por %p123, %p124
      %p126 = scmp.ne.s32.totalorder %s115, %s116
      %p127 = scmp.eq.s32.totalorder %s18, 0
      %p128 = por %p126, %p127
      %p129 = scmp.ne.s32.totalorder %s115, %s116
      %p130 = scmp.eq.s32.totalorder %s19, 27
      %p131 = por %p129, %p130
      %p133 = scmp.ne.s32.totalorder %s116, %s132
      %p134 = scmp.eq.s32.totalorder %s19, 0
      %p135 = por %p133, %p134
      %p136 = scmp.le.s32.totalorder 1, %s13
      %p137 = scmp.lt.s32.totalorder %s13, 29
      %p138 = pnand %p136, %p137
      %p139 = pneg %p138
      // Predicated region
      $region9: #{tpu_custom_call.1} parent=5 // pred_check
        _
      $region10: #{tpu_custom_call.1} parent=5 // pred_check_branch
        %141 = sbr.rel (%p138) target = $region12
      $region11: #{tpu_custom_call.1} parent=5 // pred_region
        %s142 = ssub.s32 %s13, 1
        // Predicated region
        $region13: #{tpu_custom_call.1} parent=11 // pred_check
          %p143 = pneg %p72
        $region14: #{tpu_custom_call.1} parent=11 // pred_check_branch
          %145 = sbr.rel (%p143) target = $region16
        $region15: #{tpu_custom_call.1} parent=11 // pred_region
          _
        $region16: #{tpu_custom_call.1} parent=11 // pred_fallthru
          _
      $region12: #{tpu_custom_call.1} parent=5 // pred_fallthru
        _
      %p146 = scmp.lt.s32.totalorder %s13, 28
      // Predicated region
      $region17: #{tpu_custom_call.1} parent=5 // pred_check
        %p147 = pneg %p146
      $region18: #{tpu_custom_call.1} parent=5 // pred_check_branch
        %149 = sbr.rel (%p147) target = $region20
      $region19: #{tpu_custom_call.1} parent=5 // pred_region
        // Predicated region
        $region21: #{tpu_custom_call.1} parent=19 // pred_check
          %p150 = pneg %p45
        $region22: #{tpu_custom_call.1} parent=19 // pred_check_branch
          %152 = sbr.rel (%p150) target = $region24
        $region23: #{tpu_custom_call.1} parent=19 // pred_region
          %p153 = scmp.lt.s32.totalorder %s20, 1
          %s154 = scalar_select %p153, %s20, 1
          %s155 = smul.addr %s154, 1725
          %s156 = smul.addr %s155, 4
          %s157 = scalar_lea.vmem %s0, %s156
        $region24: #{tpu_custom_call.1} parent=19 // pred_fallthru
          _
      $region20: #{tpu_custom_call.1} parent=5 // pred_fallthru
        _
      %p158 = scmp.le.s32.totalorder 1, %s13
      %p159 = scmp.lt.s32.totalorder %s13, 29
      %p160 = pnand %p158, %p159
      %p161 = pneg %p160
      // Predicated region
      $region25: #{tpu_custom_call.1} parent=5 // pred_check
        _
      $region26: #{tpu_custom_call.1} parent=5 // pred_check_branch
        %163 = sbr.rel (%p160) target = $region28
      $region27: #{tpu_custom_call.1} parent=5 // pred_region
        %s164 = ssub.s32 %s13, 1
        %p165 = scmp.lt.s32.totalorder %s22, 1
        %s166 = scalar_select %p165, %s22, 1
        %s167 = smul.addr %s166, 1725
        %s168 = smul.addr %s167, 4
        %s169 = scalar_lea.vmem %s0, %s168
        %p170 = pneg %p51
        %p171 = pneg %p48
        %p172 = pneg %p72
        %p173 = pneg %p69
        %p174 = pneg %p100
        %p175 = pneg %p97
        %s176 = smul.u32 8, %s23
        %p177 = scmp.lt.s32.totalorder %s22, 1
        %s178 = scalar_select %p177, %s22, 1
        %p179 = scmp.lt.s32.totalorder %s176, 111
        %s180 = scalar_select %p179, %s176, 111
        %s181 = smul.addr %s180, 14
        %s182 = smul.addr %s178, 1568
        %s183 = sadd.s32 %s181, %s182
        %s184 = smul.addr %s183, 4
        %s185 = scalar_lea.vmem %s2, %s184
        %p186 = pneg %p128
        %p187 = pneg %p125
        %s188 = sand.u32 %s115, 1
        %s189 = scalar_lea.sflag [#allocation3], %s188
        %s190 = sand.u32 %s115, 1
        %s191 = smul.addr %s190, 2
        %s192 = scalar_lea.vmem [#allocation2], %s191
        %p193 = scmp.lt.s32.totalorder %s22, 1
        %s194 = scalar_select %p193, %s22, 1
        %s195 = smul.addr %s194, 1725
        %s196 = smul.addr %s195, 4
        %s197 = scalar_lea.vmem %s0, %s196
        %s198 = smul.u32 8, %s23
        %p199 = scmp.lt.s32.totalorder %s22, 1
        %s200 = scalar_select %p199, %s22, 1
        %p201 = scmp.lt.s32.totalorder %s198, 111
        %s202 = scalar_select %p201, %s198, 111
        %s203 = smul.addr %s202, 14
        %s204 = smul.addr %s200, 1568
        %s205 = sadd.s32 %s203, %s204
        %s206 = smul.addr %s205, 4
        %s207 = scalar_lea.vmem %s2, %s206
        %s208 = smul.u32 8, %s23
        %s210 = smul.u32 %s23, 8
        loop: start=0, step=1, limit=8
        $region29: #{tpu_custom_call.1} parent=27 // loop_pre_header
          _
        $region30: #{tpu_custom_call.1} parent=27 // loop_header
          %s212 = sphi 0, %s216
          %p213 = scmp.ge.s32.totalorder %s212, 8
          %v217 = vphi 0.0, %v3327
          %v218 = vphi 0.0, %v3375
        $region31: #{tpu_custom_call.1} parent=27 // loop_header_branch
          %215 = sbr.rel (%p213) target = $region35
        $region32: #{tpu_custom_call.1} parent=27 // loop_body
          %s219 = sadd.s32 %s210, %s212
          %s220 = smul.u32 %s219, 15
          %s221 = smul.addr %s220, 4
          %s222 = scalar_lea.vmem %s197, %s221
          %v223 = vld [vmem:[%s222] sm:$0xf]
          %v224 = vld [vmem:[%s222 + $0x4] sm:$0xf]
          %v225 = vld [vmem:[%s222 + $0x8] sm:$0xf]
          %v226 = vld [vmem:[%s222 + $0xc] sm:$0xf]
          %v227 = vld [vmem:[%s222 + $0x10] sm:$0xf]
          %v228 = vld [vmem:[%s222 + $0x14] sm:$0xf]
          %v229 = vld [vmem:[%s222 + $0x18] sm:$0xf]
          %v230 = vld [vmem:[%s222 + $0x1c] sm:$0xf]
          %v231 = vld [vmem:[%s222 + $0x20] sm:$0xf]
          %v232 = vld [vmem:[%s222 + $0x24] sm:$0xf]
          %v233 = vld [vmem:[%s222 + $0x28] sm:$0xf]
          %v234 = vld [vmem:[%s222 + $0x2c] sm:$0xf]
          %v235 = vld [vmem:[%s222 + $0x30] sm:$0xf]
          %v236 = vld [vmem:[%s222 + $0x34] sm:$0xf]
          %v237 = vld [vmem:[%s1] sm:$0xf]
          %v238 = vld [vmem:[%s1 + $0x4] sm:$0x3]
          %v239 = vld [vmem:[%s222 + $0x38] sm:$0x1]
          %s240 = scalar_lea.vmem %s1, 8
          %v241 = vld [vmem:[%s240] sm:$0xf]
          %v242 = vld [vmem:[%s240 + $0x4] sm:$0x3]
          %v258 = vunpack.c.l.b16 %v223
          %v259 = vunpack.c.l.b16 %v224
          %v260 = vunpack.c.l.b16 %v225
          %v261 = vunpack.c.l.b16 %v226
          %v262 = vunpack.c.l.b16 %v227
          %v263 = vunpack.c.l.b16 %v228
          %v264 = vunpack.c.l.b16 %v229
          %v265 = vunpack.c.l.b16 %v230
          %v266 = vunpack.c.l.b16 %v231
          %v267 = vunpack.c.l.b16 %v232
          %v268 = vunpack.c.l.b16 %v233
          %v269 = vunpack.c.l.b16 %v234
          %v270 = vunpack.c.l.b16 %v235
          %v271 = vunpack.c.l.b16 %v236
          %v272 = vunpack.c.l.b16 %v239
          %v273 = vpack.c.b16 %v259, %v258
          %v274 = vpack.c.b16 %v261, %v260
          %v275 = vpack.c.b16 %v263, %v262
          %v276 = vpack.c.b16 %v265, %v264
          %v277 = vpack.c.b16 %v267, %v266
          %v278 = vpack.c.b16 %v269, %v268
          %v279 = vpack.c.b16 %v271, %v270
          %v280 = vpack.c.b16 %v272, %v272
          %vm281 = vsmask.f32 7424
          %v283 = vshrl.u32 %v273, 16
          %v285 = vshll.u32 %v273, 16
          %v287 = vrot.slane %v285, 1
          %v288 = vor.u32 %v283, %v287
          %v290 = vshll.u32 %v274, 16
          %v292 = vrot.slane %v290, 1
          %v293 = vsel %vm281, %v288, %v292
          %v294 = vshrl.u32 %v274, 16
          %v296 = vor.u32 %v294, %v292
          %v298 = vshll.u32 %v275, 16
          %v300 = vrot.slane %v298, 1
          %v301 = vsel %vm281, %v296, %v300
          %v302 = vshrl.u32 %v275, 16
          %v304 = vor.u32 %v302, %v300
          %v306 = vshll.u32 %v276, 16
          %v308 = vrot.slane %v306, 1
          %v309 = vsel %vm281, %v304, %v308
          %v310 = vshrl.u32 %v276, 16
          %v312 = vor.u32 %v310, %v308
          %v314 = vshll.u32 %v277, 16
          %v316 = vrot.slane %v314, 1
          %v317 = vsel %vm281, %v312, %v316
          %v318 = vshrl.u32 %v277, 16
          %v320 = vor.u32 %v318, %v316
          %v322 = vshll.u32 %v278, 16
          %v324 = vrot.slane %v322, 1
          %v325 = vsel %vm281, %v320, %v324
          %v326 = vshrl.u32 %v278, 16
          %v328 = vor.u32 %v326, %v324
          %v330 = vshll.u32 %v279, 16
          %v332 = vrot.slane %v330, 1
          %v333 = vsel %vm281, %v328, %v332
          %v334 = vshrl.u32 %v279, 16
          %v336 = vor.u32 %v334, %v332
          %v338 = vshll.u32 %v280, 16
          %v340 = vrot.slane %v338, 1
          %v341 = vsel %vm281, %v336, %v340
          %v344 = vunpack.c.l.b16 %v241
          %v345 = vunpack.c.l.b16 %v242
          %v346 = vpack.c.b16 %v345, %v344
          %vm347 = vcmask 97280
          %v349 = vsel %vm347, %v293, 0
          %v352 = vsel %vm347, %v301, 0
          %v355 = vsel %vm347, %v309, 0
          %v358 = vsel %vm347, %v317, 0
          %v361 = vsel %vm347, %v325, 0
          %v364 = vsel %vm347, %v333, 0
          %v367 = vsel %vm347, %v341, 0
          %vm369 = vcmask 1045504
          %v371 = vsel %vm369, %v346, 0
          %373 = vmatprep.subr.bf16.mxu0 0
          %374 = vmatpush1.bf16.msra.mxu0 %v371
          %375 = vmatprep.subr.bf16.mxu0 0
          %376 = vmatpush1.bf16.msra.mxu0 0
          %377 = vmatprep.subr.bf16.mxu0 0
          %378 = vmatpush1.bf16.msra.mxu0 0
          %379 = vmatprep.subr.bf16.mxu0 0
          %380 = vmatpush1.bf16.msra.mxu0 0
          %381 = vmatprep.subr.bf16.mxu0 0
          %382 = vmatpush1.bf16.msra.mxu0 0
          %383 = vmatprep.subr.bf16.mxu0 0
          %384 = vmatpush1.bf16.msra.mxu0 0
          %385 = vmatprep.subr.bf16.mxu0 0
          %386 = vmatpush1.bf16.msra.mxu0 0
          %387 = vmatprep.subr.bf16.mxu0 0
          %388 = vmatpush1.bf16.msra.mxu0 0
          %389 = vmatprep.subr.bf16.mxu0 0
          %390 = vmatpush1.bf16.msra.mxu0 0
          %391 = vmatprep.subr.bf16.mxu0 0
          %392 = vmatpush1.bf16.msra.mxu0 0
          %393 = vmatprep.subr.bf16.mxu0 0
          %394 = vmatpush1.bf16.msra.mxu0 0
          %395 = vmatprep.subr.bf16.mxu0 0
          %396 = vmatpush1.bf16.msra.mxu0 0
          %397 = vmatprep.subr.bf16.mxu0 0
          %398 = vmatpush1.bf16.msra.mxu0 0
          %399 = vmatprep.subr.bf16.mxu0 0
          %400 = vmatpush1.bf16.msra.mxu0 0
          %401 = vmatprep.subr.bf16.mxu0 0
          %402 = vmatpush1.bf16.msra.mxu0 0
          %403 = vmatprep.subr.bf16.mxu0 0
          %404 = vmatpush1.bf16.msra.mxu0 0
          %405 = vmatprep.mubr.bf16.mxu0 0
          %406 = vmatmul.mubr.bf16.gmra.mrb[0].mxu0 %v349
          %v407 = vpop.f32.mrb[0].mxu0
          %v408 = vadd.f32 0.0, %v407
          %v409 = vpop.f32.mrb[0].mxu0
          %v410 = vpop.f32.mrb[0].mxu0
          %v411 = vadd.f32 0.0, %v410
          %v412 = vpop.f32.mrb[0].mxu0
          %413 = vmatprep.mubr.bf16.mxu0 0
          %414 = vmatmul.mubr.bf16.gmra.mrb[0].mxu0 %v352
          %v415 = vpop.f32.mrb[0].mxu0
          %v416 = vadd.f32 0.0, %v415
          %v417 = vpop.f32.mrb[0].mxu0
          %v418 = vpop.f32.mrb[0].mxu0
          %v419 = vadd.f32 0.0, %v418
          %v420 = vpop.f32.mrb[0].mxu0
          %421 = vmatprep.mubr.bf16.mxu0 0
          %422 = vmatmul.mubr.bf16.gmra.mrb[0].mxu0 %v355
          %v423 = vpop.f32.mrb[0].mxu0
          %v424 = vadd.f32 0.0, %v423
          %v425 = vpop.f32.mrb[0].mxu0
          %v426 = vpop.f32.mrb[0].mxu0
          %v427 = vadd.f32 0.0, %v426
          %v428 = vpop.f32.mrb[0].mxu0
          %429 = vmatprep.mubr.bf16.mxu0 0
          %430 = vmatmul.mubr.bf16.gmra.mrb[0].mxu0 %v358
          %v431 = vpop.f32.mrb[0].mxu0
          %v432 = vadd.f32 0.0, %v431
          %v433 = vpop.f32.mrb[0].mxu0
          %v434 = vpop.f32.mrb[0].mxu0
          %v435 = vadd.f32 0.0, %v434
          %v436 = vpop.f32.mrb[0].mxu0
          %437 = vmatprep.mubr.bf16.mxu0 0
          %438 = vmatmul.mubr.bf16.gmra.mrb[0].mxu0 %v361
          %v439 = vpop.f32.mrb[0].mxu0
          %v440 = vadd.f32 0.0, %v439
          %v441 = vpop.f32.mrb[0].mxu0
          %v442 = vpop.f32.mrb[0].mxu0
          %v443 = vadd.f32 0.0, %v442
          %v444 = vpop.f32.mrb[0].mxu0
          %445 = vmatprep.mubr.bf16.mxu0 0
          %446 = vmatmul.mubr.bf16.gmra.mrb[0].mxu0 %v364
          %v447 = vpop.f32.mrb[0].mxu0
          %v448 = vadd.f32 0.0, %v447
          %v449 = vpop.f32.mrb[0].mxu0
          %v450 = vpop.f32.mrb[0].mxu0
          %v451 = vadd.f32 0.0, %v450
          %v452 = vpop.f32.mrb[0].mxu0
          %453 = vmatprep.mubr.bf16.mxu0 0
          %454 = vmatmul.mubr.bf16.gmra.mrb[0].mxu0 %v367
          %v455 = vpop.f32.mrb[0].mxu0
          %v456 = vadd.f32 0.0, %v455
          %v457 = vpop.f32.mrb[0].mxu0
          %v458 = vpop.f32.mrb[0].mxu0
          %v459 = vadd.f32 0.0, %v458
          %v460 = vpop.f32.mrb[0].mxu0
          %461 = vdwg.mxu0
          %v464 = vunpack.c.l.b16 %v237
          %v465 = vunpack.c.l.b16 %v238
          %v466 = vpack.c.b16 %v465, %v464
          %v467 = vsel %vm347, %v273, 0
          %v469 = vsel %vm347, %v274, 0
          %v471 = vsel %vm347, %v275, 0
          %v473 = vsel %vm347, %v276, 0
          %v475 = vsel %vm347, %v277, 0
          %v477 = vsel %vm347, %v278, 0
          %v479 = vsel %vm347, %v279, 0
          %v482 = vsel %vm369, %v466, 0
          %484 = vmatprep.subr.bf16.mxu0 0
          %485 = vmatpush1.bf16.msra.mxu0 %v482
          %486 = vmatprep.subr.bf16.mxu0 0
          %487 = vmatpush1.bf16.msra.mxu0 0
          %488 = vmatprep.subr.bf16.mxu0 0
          %489 = vmatpush1.bf16.msra.mxu0 0
          %490 = vmatprep.subr.bf16.mxu0 0
          %491 = vmatpush1.bf16.msra.mxu0 0
          %492 = vmatprep.subr.bf16.mxu0 0
          %493 = vmatpush1.bf16.msra.mxu0 0
          %494 = vmatprep.subr.bf16.mxu0 0
          %495 = vmatpush1.bf16.msra.mxu0 0
          %496 = vmatprep.subr.bf16.mxu0 0
          %497 = vmatpush1.bf16.msra.mxu0 0
          %498 = vmatprep.subr.bf16.mxu0 0
          %499 = vmatpush1.bf16.msra.mxu0 0
          %500 = vmatprep.subr.bf16.mxu0 0
          %501 = vmatpush1.bf16.msra.mxu0 0
          %502 = vmatprep.subr.bf16.mxu0 0
          %503 = vmatpush1.bf16.msra.mxu0 0
          %504 = vmatprep.subr.bf16.mxu0 0
          %505 = vmatpush1.bf16.msra.mxu0 0
          %506 = vmatprep.subr.bf16.mxu0 0
          %507 = vmatpush1.bf16.msra.mxu0 0
          %508 = vmatprep.subr.bf16.mxu0 0
          %509 = vmatpush1.bf16.msra.mxu0 0
          %510 = vmatprep.subr.bf16.mxu0 0
          %511 = vmatpush1.bf16.msra.mxu0 0
          %512 = vmatprep.subr.bf16.mxu0 0
          %513 = vmatpush1.bf16.msra.mxu0 0
          %514 = vmatprep.subr.bf16.mxu0 0
          %515 = vmatpush1.bf16.msra.mxu0 0
          %516 = vmatprep.mubr.bf16.mxu0 0
          %517 = vmatmul.mubr.bf16.gmra.mrb[0].mxu0 %v467
          %v518 = vpop.f32.mrb[0].mxu0
          %v519 = vadd.f32 %v408, %v518
          %v520 = vpop.f32.mrb[0].mxu0
          %v521 = vpop.f32.mrb[0].mxu0
          %v522 = vadd.f32 %v411, %v521
          %v523 = vpop.f32.mrb[0].mxu0
          %524 = vmatprep.mubr.bf16.mxu0 0
          %525 = vmatmul.mubr.bf16.gmra.mrb[0].mxu0 %v469
          %v526 = vpop.f32.mrb[0].mxu0
          %v527 = vadd.f32 %v416, %v526
          %v528 = vpop.f32.mrb[0].mxu0
          %v529 = vpop.f32.mrb[0].mxu0
          %v530 = vadd.f32 %v419, %v529
          %v531 = vpop.f32.mrb[0].mxu0
          %532 = vmatprep.mubr.bf16.mxu0 0
          %533 = vmatmul.mubr.bf16.gmra.mrb[0].mxu0 %v471
          %v534 = vpop.f32.mrb[0].mxu0
          %v535 = vadd.f32 %v424, %v534
          %v536 = vpop.f32.mrb[0].mxu0
          %v537 = vpop.f32.mrb[0].mxu0
          %v538 = vadd.f32 %v427, %v537
          %v539 = vpop.f32.mrb[0].mxu0
          %540 = vmatprep.mubr.bf16.mxu0 0
          %541 = vmatmul.mubr.bf16.gmra.mrb[0].mxu0 %v473
          %v542 = vpop.f32.mrb[0].mxu0
          %v543 = vadd.f32 %v432, %v542
          %v544 = vpop.f32.mrb[0].mxu0
          %v545 = vpop.f32.mrb[0].mxu0
          %v546 = vadd.f32 %v435, %v545
          %v547 = vpop.f32.mrb[0].mxu0
          %548 = vmatprep.mubr.bf16.mxu0 0
          %549 = vmatmul.mubr.bf16.gmra.mrb[0].mxu0 %v475
          %v550 = vpop.f32.mrb[0].mxu0
          %v551 = vadd.f32 %v440, %v550
          %v552 = vpop.f32.mrb[0].mxu0
          %v553 = vpop.f32.mrb[0].mxu0
          %v554 = vadd.f32 %v443, %v553
          %v555 = vpop.f32.mrb[0].mxu0
          %556 = vmatprep.mubr.bf16.mxu0 0
          %557 = vmatmul.mubr.bf16.gmra.mrb[0].mxu0 %v477
          %v558 = vpop.f32.mrb[0].mxu0
          %v559 = vadd.f32 %v448, %v558
          %v560 = vpop.f32.mrb[0].mxu0
          %v561 = vpop.f32.mrb[0].mxu0
          %v562 = vadd.f32 %v451, %v561
          %v563 = vpop.f32.mrb[0].mxu0
          %564 = vmatprep.mubr.bf16.mxu0 0
          %565 = vmatmul.mubr.bf16.gmra.mrb[0].mxu0 %v479
          %v566 = vpop.f32.mrb[0].mxu0
          %v567 = vadd.f32 %v456, %v566
          %v568 = vpop.f32.mrb[0].mxu0
          %v569 = vpop.f32.mrb[0].mxu0
          %v570 = vadd.f32 %v459, %v569
          %v571 = vpop.f32.mrb[0].mxu0
          %572 = vdwg.mxu0
          %v573 = vld [vmem:[%s222] sm:$0xe]
          %s574 = scalar_lea.vmem %s1, 16
          %v575 = vld [vmem:[%s574] sm:$0xf]
          %v576 = vld [vmem:[%s574 + $0x4] sm:$0x3]
          %v578 = vunpack.c.l.b16 %v573
          %v579 = vpack.c.b16 %v259, %v578
          %vm580 = vcmask 1046528
          %v581 = vrot.slane %v579, 1
          %v582 = vrot.slane %v274, 1
          %v583 = vsel %vm580, %v581, %v582
          %v584 = vrot.slane %v275, 1
          %v585 = vsel %vm580, %v582, %v584
          %v586 = vrot.slane %v276, 1
          %v587 = vsel %vm580, %v584, %v586
          %v588 = vrot.slane %v277, 1
          %v589 = vsel %vm580, %v586, %v588
          %v590 = vrot.slane %v278, 1
          %v591 = vsel %vm580, %v588, %v590
          %v592 = vrot.slane %v279, 1
          %v593 = vsel %vm580, %v590, %v592
          %v594 = vrot.slane %v280, 1
          %v595 = vsel %vm580, %v592, %v594
          %v598 = vunpack.c.l.b16 %v575
          %v599 = vunpack.c.l.b16 %v576
          %v600 = vpack.c.b16 %v599, %v598
          %v602 = vsel %vm347, %v583, 0
          %v605 = vsel %vm347, %v585, 0
          %v608 = vsel %vm347, %v587, 0
          %v611 = vsel %vm347, %v589, 0
          %v614 = vsel %vm347, %v591, 0
          %v617 = vsel %vm347, %v593, 0
          %v620 = vsel %vm347, %v595, 0
          %v623 = vsel %vm369, %v600, 0
          %625 = vmatprep.subr.bf16.mxu0 0
          %626 = vmatpush1.bf16.msra.mxu0 %v623
          %627 = vmatprep.subr.bf16.mxu0 0
          %628 = vmatpush1.bf16.msra.mxu0 0
          %629 = vmatprep.subr.bf16.mxu0 0
          %630 = vmatpush1.bf16.msra.mxu0 0
          %631 = vmatprep.subr.bf16.mxu0 0
          %632 = vmatpush1.bf16.msra.mxu0 0
          %633 = vmatprep.subr.bf16.mxu0 0
          %634 = vmatpush1.bf16.msra.mxu0 0
          %635 = vmatprep.subr.bf16.mxu0 0
          %636 = vmatpush1.bf16.msra.mxu0 0
          %637 = vmatprep.subr.bf16.mxu0 0
          %638 = vmatpush1.bf16.msra.mxu0 0
          %639 = vmatprep.subr.bf16.mxu0 0
          %640 = vmatpush1.bf16.msra.mxu0 0
          %641 = vmatprep.subr.bf16.mxu0 0
          %642 = vmatpush1.bf16.msra.mxu0 0
          %643 = vmatprep.subr.bf16.mxu0 0
          %644 = vmatpush1.bf16.msra.mxu0 0
          %645 = vmatprep.subr.bf16.mxu0 0
          %646 = vmatpush1.bf16.msra.mxu0 0
          %647 = vmatprep.subr.bf16.mxu0 0
          %648 = vmatpush1.bf16.msra.mxu0 0
          %649 = vmatprep.subr.bf16.mxu0 0
          %650 = vmatpush1.bf16.msra.mxu0 0
          %651 = vmatprep.subr.bf16.mxu0 0
          %652 = vmatpush1.bf16.msra.mxu0 0
          %653 = vmatprep.subr.bf16.mxu0 0
          %654 = vmatpush1.bf16.msra.mxu0 0
          %655 = vmatprep.subr.bf16.mxu0 0
          %656 = vmatpush1.bf16.msra.mxu0 0
          %657 = vmatprep.mubr.bf16.mxu0 0
          %658 = vmatmul.mubr.bf16.gmra.mrb[0].mxu0 %v602
          %v659 = vpop.f32.mrb[0].mxu0
          %v660 = vadd.f32 0.0, %v659
          %v661 = vpop.f32.mrb[0].mxu0
          %v662 = vpop.f32.mrb[0].mxu0
          %v663 = vadd.f32 0.0, %v662
          %v664 = vpop.f32.mrb[0].mxu0
          %665 = vmatprep.mubr.bf16.mxu0 0
          %666 = vmatmul.mubr.bf16.gmra.mrb[0].mxu0 %v605
          %v667 = vpop.f32.mrb[0].mxu0
          %v668 = vadd.f32 0.0, %v667
          %v669 = vpop.f32.mrb[0].mxu0
          %v670 = vpop.f32.mrb[0].mxu0
          %v671 = vadd.f32 0.0, %v670
          %v672 = vpop.f32.mrb[0].mxu0
          %673 = vmatprep.mubr.bf16.mxu0 0
          %674 = vmatmul.mubr.bf16.gmra.mrb[0].mxu0 %v608
          %v675 = vpop.f32.mrb[0].mxu0
          %v676 = vadd.f32 0.0, %v675
          %v677 = vpop.f32.mrb[0].mxu0
          %v678 = vpop.f32.mrb[0].mxu0
          %v679 = vadd.f32 0.0, %v678
          %v680 = vpop.f32.mrb[0].mxu0
          %681 = vmatprep.mubr.bf16.mxu0 0
          %682 = vmatmul.mubr.bf16.gmra.mrb[0].mxu0 %v611
          %v683 = vpop.f32.mrb[0].mxu0
          %v684 = vadd.f32 0.0, %v683
          %v685 = vpop.f32.mrb[0].mxu0
          %v686 = vpop.f32.mrb[0].mxu0
          %v687 = vadd.f32 0.0, %v686
          %v688 = vpop.f32.mrb[0].mxu0
          %689 = vmatprep.mubr.bf16.mxu0 0
          %690 = vmatmul.mubr.bf16.gmra.mrb[0].mxu0 %v614
          %v691 = vpop.f32.mrb[0].mxu0
          %v692 = vadd.f32 0.0, %v691
          %v693 = vpop.f32.mrb[0].mxu0
          %v694 = vpop.f32.mrb[0].mxu0
          %v695 = vadd.f32 0.0, %v694
          %v696 = vpop.f32.mrb[0].mxu0
          %697 = vmatprep.mubr.bf16.mxu0 0
          %698 = vmatmul.mubr.bf16.gmra.mrb[0].mxu0 %v617
          %v699 = vpop.f32.mrb[0].mxu0
          %v700 = vadd.f32 0.0, %v699
          %v701 = vpop.f32.mrb[0].mxu0
          %v702 = vpop.f32.mrb[0].mxu0
          %v703 = vadd.f32 0.0, %v702
          %v704 = vpop.f32.mrb[0].mxu0
          %705 = vmatprep.mubr.bf16.mxu0 0
          %706 = vmatmul.mubr.bf16.gmra.mrb[0].mxu0 %v620
          %v707 = vpop.f32.mrb[0].mxu0
          %v708 = vadd.f32 0.0, %v707
          %v709 = vpop.f32.mrb[0].mxu0
          %v710 = vpop.f32.mrb[0].mxu0
          %v711 = vadd.f32 0.0, %v710
          %v712 = vpop.f32.mrb[0].mxu0
          %713 = vdwg.mxu0
          %v714 = vadd.f32 %v519, %v660
          %v715 = vadd.f32 %v522, %v663
          %v716 = vadd.f32 %v527, %v668
          %v717 = vadd.f32 %v530, %v671
          %v718 = vadd.f32 %v535, %v676
          %v719 = vadd.f32 %v538, %v679
          %v720 = vadd.f32 %v543, %v684
          %v721 = vadd.f32 %v546, %v687
          %v722 = vadd.f32 %v551, %v692
          %v723 = vadd.f32 %v554, %v695
          %v724 = vadd.f32 %v559, %v700
          %v725 = vadd.f32 %v562, %v703
          %v726 = vadd.f32 %v567, %v708
          %v727 = vadd.f32 %v570, %v711
          %v728 = vld [vmem:[%s222 + $0x38] sm:$0x3]
          %s729 = scalar_lea.vmem %s1, 24
          %v730 = vld [vmem:[%s729] sm:$0xf]
          %v731 = vld [vmem:[%s729 + $0x4] sm:$0x3]
          %v733 = vunpack.c.l.b16 %v728
          %v734 = vpack.c.b16 %v733, %v733
          %vm735 = vsmask.f32 6400
          %v737 = vshrl.u32 %v579, 16
          %v739 = vrot.slane %v737, 1
          %v740 = vshll.u32 %v579, 16
          %v742 = vrot.slane %v740, 2
          %v743 = vor.u32 %v739, %v742
          %v744 = vrot.slane %v294, 1
          %v745 = vrot.slane %v290, 2
          %v746 = vor.u32 %v744, %v745
          %v747 = vsel %vm735, %v743, %v746
          %v748 = vrot.slane %v302, 1
          %v749 = vrot.slane %v298, 2
          %v750 = vor.u32 %v748, %v749
          %v751 = vsel %vm735, %v746, %v750
          %v752 = vrot.slane %v310, 1
          %v753 = vrot.slane %v306, 2
          %v754 = vor.u32 %v752, %v753
          %v755 = vsel %vm735, %v750, %v754
          %v756 = vrot.slane %v318, 1
          %v757 = vrot.slane %v314, 2
          %v758 = vor.u32 %v756, %v757
          %v759 = vsel %vm735, %v754, %v758
          %v760 = vrot.slane %v326, 1
          %v761 = vrot.slane %v322, 2
          %v762 = vor.u32 %v760, %v761
          %v763 = vsel %vm735, %v758, %v762
          %v764 = vrot.slane %v334, 1
          %v765 = vrot.slane %v330, 2
          %v766 = vor.u32 %v764, %v765
          %v767 = vsel %vm735, %v762, %v766
          %v769 = vshrl.u32 %v734, 16
          %v771 = vrot.slane %v769, 1
          %v772 = vshll.u32 %v734, 16
          %v774 = vrot.slane %v772, 2
          %v775 = vor.u32 %v771, %v774
          %v776 = vsel %vm735, %v766, %v775
          %v779 = vunpack.c.l.b16 %v730
          %v780 = vunpack.c.l.b16 %v731
          %v781 = vpack.c.b16 %v780, %v779
          %v783 = vsel %vm347, %v747, 0
          %v786 = vsel %vm347, %v751, 0
          %v789 = vsel %vm347, %v755, 0
          %v792 = vsel %vm347, %v759, 0
          %v795 = vsel %vm347, %v763, 0
          %v798 = vsel %vm347, %v767, 0
          %v801 = vsel %vm347, %v776, 0
          %v804 = vsel %vm369, %v781, 0
          %806 = vmatprep.subr.bf16.mxu0 0
          %807 = vmatpush1.bf16.msra.mxu0 %v804
          %808 = vmatprep.subr.bf16.mxu0 0
          %809 = vmatpush1.bf16.msra.mxu0 0
          %810 = vmatprep.subr.bf16.mxu0 0
          %811 = vmatpush1.bf16.msra.mxu0 0
          %812 = vmatprep.subr.bf16.mxu0 0
          %813 = vmatpush1.bf16.msra.mxu0 0
          %814 = vmatprep.subr.bf16.mxu0 0
          %815 = vmatpush1.bf16.msra.mxu0 0
          %816 = vmatprep.subr.bf16.mxu0 0
          %817 = vmatpush1.bf16.msra.mxu0 0
          %818 = vmatprep.subr.bf16.mxu0 0
          %819 = vmatpush1.bf16.msra.mxu0 0
          %820 = vmatprep.subr.bf16.mxu0 0
          %821 = vmatpush1.bf16.msra.mxu0 0
          %822 = vmatprep.subr.bf16.mxu0 0
          %823 = vmatpush1.bf16.msra.mxu0 0
          %824 = vmatprep.subr.bf16.mxu0 0
          %825 = vmatpush1.bf16.msra.mxu0 0
          %826 = vmatprep.subr.bf16.mxu0 0
          %827 = vmatpush1.bf16.msra.mxu0 0
          %828 = vmatprep.subr.bf16.mxu0 0
          %829 = vmatpush1.bf16.msra.mxu0 0
          %830 = vmatprep.subr.bf16.mxu0 0
          %831 = vmatpush1.bf16.msra.mxu0 0
          %832 = vmatprep.subr.bf16.mxu0 0
          %833 = vmatpush1.bf16.msra.mxu0 0
          %834 = vmatprep.subr.bf16.mxu0 0
          %835 = vmatpush1.bf16.msra.mxu0 0
          %836 = vmatprep.subr.bf16.mxu0 0
          %837 = vmatpush1.bf16.msra.mxu0 0
          %838 = vmatprep.mubr.bf16.mxu0 0
          %839 = vmatmul.mubr.bf16.gmra.mrb[0].mxu0 %v783
          %v840 = vpop.f32.mrb[0].mxu0
          %v841 = vadd.f32 0.0, %v840
          %v842 = vpop.f32.mrb[0].mxu0
          %v843 = vpop.f32.mrb[0].mxu0
          %v844 = vadd.f32 0.0, %v843
          %v845 = vpop.f32.mrb[0].mxu0
          %846 = vmatprep.mubr.bf16.mxu0 0
          %847 = vmatmul.mubr.bf16.gmra.mrb[0].mxu0 %v786
          %v848 = vpop.f32.mrb[0].mxu0
          %v849 = vadd.f32 0.0, %v848
          %v850 = vpop.f32.mrb[0].mxu0
          %v851 = vpop.f32.mrb[0].mxu0
          %v852 = vadd.f32 0.0, %v851
          %v853 = vpop.f32.mrb[0].mxu0
          %854 = vmatprep.mubr.bf16.mxu0 0
          %855 = vmatmul.mubr.bf16.gmra.mrb[0].mxu0 %v789
          %v856 = vpop.f32.mrb[0].mxu0
          %v857 = vadd.f32 0.0, %v856
          %v858 = vpop.f32.mrb[0].mxu0
          %v859 = vpop.f32.mrb[0].mxu0
          %v860 = vadd.f32 0.0, %v859
          %v861 = vpop.f32.mrb[0].mxu0
          %862 = vmatprep.mubr.bf16.mxu0 0
          %863 = vmatmul.mubr.bf16.gmra.mrb[0].mxu0 %v792
          %v864 = vpop.f32.mrb[0].mxu0
          %v865 = vadd.f32 0.0, %v864
          %v866 = vpop.f32.mrb[0].mxu0
          %v867 = vpop.f32.mrb[0].mxu0
          %v868 = vadd.f32 0.0, %v867
          %v869 = vpop.f32.mrb[0].mxu0
          %870 = vmatprep.mubr.bf16.mxu0 0
          %871 = vmatmul.mubr.bf16.gmra.mrb[0].mxu0 %v795
          %v872 = vpop.f32.mrb[0].mxu0
          %v873 = vadd.f32 0.0, %v872
          %v874 = vpop.f32.mrb[0].mxu0
          %v875 = vpop.f32.mrb[0].mxu0
          %v876 = vadd.f32 0.0, %v875
          %v877 = vpop.f32.mrb[0].mxu0
          %878 = vmatprep.mubr.bf16.mxu0 0
          %879 = vmatmul.mubr.bf16.gmra.mrb[0].mxu0 %v798
          %v880 = vpop.f32.mrb[0].mxu0
          %v881 = vadd.f32 0.0, %v880
          %v882 = vpop.f32.mrb[0].mxu0
          %v883 = vpop.f32.mrb[0].mxu0
          %v884 = vadd.f32 0.0, %v883
          %v885 = vpop.f32.mrb[0].mxu0
          %886 = vmatprep.mubr.bf16.mxu0 0
          %887 = vmatmul.mubr.bf16.gmra.mrb[0].mxu0 %v801
          %v888 = vpop.f32.mrb[0].mxu0
          %v889 = vadd.f32 0.0, %v888
          %v890 = vpop.f32.mrb[0].mxu0
          %v891 = vpop.f32.mrb[0].mxu0
          %v892 = vadd.f32 0.0, %v891
          %v893 = vpop.f32.mrb[0].mxu0
          %894 = vdwg.mxu0
          %v895 = vadd.f32 %v714, %v841
          %v896 = vadd.f32 %v715, %v844
          %v897 = vadd.f32 %v716, %v849
          %v898 = vadd.f32 %v717, %v852
          %v899 = vadd.f32 %v718, %v857
          %v900 = vadd.f32 %v719, %v860
          %v901 = vadd.f32 %v720, %v865
          %v902 = vadd.f32 %v721, %v868
          %v903 = vadd.f32 %v722, %v873
          %v904 = vadd.f32 %v723, %v876
          %v905 = vadd.f32 %v724, %v881
          %v906 = vadd.f32 %v725, %v884
          %v907 = vadd.f32 %v726, %v889
          %v908 = vadd.f32 %v727, %v892
          %s909 = sadd.s32 %s219, 1
          %s910 = smul.u32 %s909, 15
          %s911 = smul.addr %s910, 4
          %s912 = scalar_lea.vmem %s197, %s911
          %v913 = vld [vmem:[%s912] sm:$0xf]
          %v914 = vld [vmem:[%s912 + $0x4] sm:$0xf]
          %v915 = vld [vmem:[%s912 + $0x8] sm:$0xf]
          %v916 = vld [vmem:[%s912 + $0xc] sm:$0xf]
          %v917 = vld [vmem:[%s912 + $0x10] sm:$0xf]
          %v918 = vld [vmem:[%s912 + $0x14] sm:$0xf]
          %v919 = vld [vmem:[%s912 + $0x18] sm:$0xf]
          %v920 = vld [vmem:[%s912 + $0x1c] sm:$0xf]
          %v921 = vld [vmem:[%s912 + $0x20] sm:$0xf]
          %v922 = vld [vmem:[%s912 + $0x24] sm:$0xf]
          %v923 = vld [vmem:[%s912 + $0x28] sm:$0xf]
          %v924 = vld [vmem:[%s912 + $0x2c] sm:$0xf]
          %v925 = vld [vmem:[%s912 + $0x30] sm:$0xf]
          %v926 = vld [vmem:[%s912 + $0x34] sm:$0xf]
          %s927 = scalar_lea.vmem %s1, 32
          %v928 = vld [vmem:[%s927] sm:$0xf]
          %v929 = vld [vmem:[%s927 + $0x4] sm:$0x3]
          %v944 = vunpack.c.l.b16 %v913
          %v945 = vunpack.c.l.b16 %v914
          %v946 = vunpack.c.l.b16 %v915
          %v947 = vunpack.c.l.b16 %v916
          %v948 = vunpack.c.l.b16 %v917
          %v949 = vunpack.c.l.b16 %v918
          %v950 = vunpack.c.l.b16 %v919
          %v951 = vunpack.c.l.b16 %v920
          %v952 = vunpack.c.l.b16 %v921
          %v953 = vunpack.c.l.b16 %v922
          %v954 = vunpack.c.l.b16 %v923
          %v955 = vunpack.c.l.b16 %v924
          %v956 = vunpack.c.l.b16 %v925
          %v957 = vunpack.c.l.b16 %v926
          %v958 = vpack.c.b16 %v945, %v944
          %v959 = vpack.c.b16 %v947, %v946
          %v960 = vpack.c.b16 %v949, %v948
          %v961 = vpack.c.b16 %v951, %v950
          %v962 = vpack.c.b16 %v953, %v952
          %v963 = vpack.c.b16 %v955, %v954
          %v964 = vpack.c.b16 %v957, %v956
          %v967 = vunpack.c.l.b16 %v928
          %v968 = vunpack.c.l.b16 %v929
          %v969 = vpack.c.b16 %v968, %v967
          %v971 = vsel %vm347, %v958, 0
          %v974 = vsel %vm347, %v959, 0
          %v977 = vsel %vm347, %v960, 0
          %v980 = vsel %vm347, %v961, 0
          %v983 = vsel %vm347, %v962, 0
          %v986 = vsel %vm347, %v963, 0
          %v989 = vsel %vm347, %v964, 0
          %v992 = vsel %vm369, %v969, 0
          %994 = vmatprep.subr.bf16.mxu0 0
          %995 = vmatpush1.bf16.msra.mxu0 %v992
          %996 = vmatprep.subr.bf16.mxu0 0
          %997 = vmatpush1.bf16.msra.mxu0 0
          %998 = vmatprep.subr.bf16.mxu0 0
          %999 = vmatpush1.bf16.msra.mxu0 0
          %1000 = vmatprep.subr.bf16.mxu0 0
          %1001 = vmatpush1.bf16.msra.mxu0 0
          %1002 = vmatprep.subr.bf16.mxu0 0
          %1003 = vmatpush1.bf16.msra.mxu0 0
          %1004 = vmatprep.subr.bf16.mxu0 0
          %1005 = vmatpush1.bf16.msra.mxu0 0
          %1006 = vmatprep.subr.bf16.mxu0 0
          %1007 = vmatpush1.bf16.msra.mxu0 0
          %1008 = vmatprep.subr.bf16.mxu0 0
          %1009 = vmatpush1.bf16.msra.mxu0 0
          %1010 = vmatprep.subr.bf16.mxu0 0
          %1011 = vmatpush1.bf16.msra.mxu0 0
          %1012 = vmatprep.subr.bf16.mxu0 0
          %1013 = vmatpush1.bf16.msra.mxu0 0
          %1014 = vmatprep.subr.bf16.mxu0 0
          %1015 = vmatpush1.bf16.msra.mxu0 0
          %1016 = vmatprep.subr.bf16.mxu0 0
          %1017 = vmatpush1.bf16.msra.mxu0 0
          %1018 = vmatprep.subr.bf16.mxu0 0
          %1019 = vmatpush1.bf16.msra.mxu0 0
          %1020 = vmatprep.subr.bf16.mxu0 0
          %1021 = vmatpush1.bf16.msra.mxu0 0
          %1022 = vmatprep.subr.bf16.mxu0 0
          %1023 = vmatpush1.bf16.msra.mxu0 0
          %1024 = vmatprep.subr.bf16.mxu0 0
          %1025 = vmatpush1.bf16.msra.mxu0 0
          %1026 = vmatprep.mubr.bf16.mxu0 0
          %1027 = vmatmul.mubr.bf16.gmra.mrb[0].mxu0 %v971
          %v1028 = vpop.f32.mrb[0].mxu0
          %v1029 = vadd.f32 0.0, %v1028
          %v1030 = vpop.f32.mrb[0].mxu0
          %v1031 = vpop.f32.mrb[0].mxu0
          %v1032 = vadd.f32 0.0, %v1031
          %v1033 = vpop.f32.mrb[0].mxu0
          %1034 = vmatprep.mubr.bf16.mxu0 0
          %1035 = vmatmul.mubr.bf16.gmra.mrb[0].mxu0 %v974
          %v1036 = vpop.f32.mrb[0].mxu0
          %v1037 = vadd.f32 0.0, %v1036
          %v1038 = vpop.f32.mrb[0].mxu0
          %v1039 = vpop.f32.mrb[0].mxu0
          %v1040 = vadd.f32 0.0, %v1039
          %v1041 = vpop.f32.mrb[0].mxu0
          %1042 = vmatprep.mubr.bf16.mxu0 0
          %1043 = vmatmul.mubr.bf16.gmra.mrb[0].mxu0 %v977
          %v1044 = vpop.f32.mrb[0].mxu0
          %v1045 = vadd.f32 0.0, %v1044
          %v1046 = vpop.f32.mrb[0].mxu0
          %v1047 = vpop.f32.mrb[0].mxu0
          %v1048 = vadd.f32 0.0, %v1047
          %v1049 = vpop.f32.mrb[0].mxu0
          %1050 = vmatprep.mubr.bf16.mxu0 0
          %1051 = vmatmul.mubr.bf16.gmra.mrb[0].mxu0 %v980
          %v1052 = vpop.f32.mrb[0].mxu0
          %v1053 = vadd.f32 0.0, %v1052
          %v1054 = vpop.f32.mrb[0].mxu0
          %v1055 = vpop.f32.mrb[0].mxu0
          %v1056 = vadd.f32 0.0, %v1055
          %v1057 = vpop.f32.mrb[0].mxu0
          %1058 = vmatprep.mubr.bf16.mxu0 0
          %1059 = vmatmul.mubr.bf16.gmra.mrb[0].mxu0 %v983
          %v1060 = vpop.f32.mrb[0].mxu0
          %v1061 = vadd.f32 0.0, %v1060
          %v1062 = vpop.f32.mrb[0].mxu0
          %v1063 = vpop.f32.mrb[0].mxu0
          %v1064 = vadd.f32 0.0, %v1063
          %v1065 = vpop.f32.mrb[0].mxu0
          %1066 = vmatprep.mubr.bf16.mxu0 0
          %1067 = vmatmul.mubr.bf16.gmra.mrb[0].mxu0 %v986
          %v1068 = vpop.f32.mrb[0].mxu0
          %v1069 = vadd.f32 0.0, %v1068
          %v1070 = vpop.f32.mrb[0].mxu0
          %v1071 = vpop.f32.mrb[0].mxu0
          %v1072 = vadd.f32 0.0, %v1071
          %v1073 = vpop.f32.mrb[0].mxu0
          %1074 = vmatprep.mubr.bf16.mxu0 0
          %1075 = vmatmul.mubr.bf16.gmra.mrb[0].mxu0 %v989
          %v1076 = vpop.f32.mrb[0].mxu0
          %v1077 = vadd.f32 0.0, %v1076
          %v1078 = vpop.f32.mrb[0].mxu0
          %v1079 = vpop.f32.mrb[0].mxu0
          %v1080 = vadd.f32 0.0, %v1079
          %v1081 = vpop.f32.mrb[0].mxu0
          %1082 = vdwg.mxu0
          %v1083 = vadd.f32 %v895, %v1029
          %v1084 = vadd.f32 %v896, %v1032
          %v1085 = vadd.f32 %v897, %v1037
          %v1086 = vadd.f32 %v898, %v1040
          %v1087 = vadd.f32 %v899, %v1045
          %v1088 = vadd.f32 %v900, %v1048
          %v1089 = vadd.f32 %v901, %v1053
          %v1090 = vadd.f32 %v902, %v1056
          %v1091 = vadd.f32 %v903, %v1061
          %v1092 = vadd.f32 %v904, %v1064
          %v1093 = vadd.f32 %v905, %v1069
          %v1094 = vadd.f32 %v906, %v1072
          %v1095 = vadd.f32 %v907, %v1077
          %v1096 = vadd.f32 %v908, %v1080
          %v1097 = vld [vmem:[%s912] sm:$0xf]
          %v1098 = vld [vmem:[%s912 + $0x4] sm:$0xf]
          %v1099 = vld [vmem:[%s912 + $0x8] sm:$0xf]
          %v1100 = vld [vmem:[%s912 + $0xc] sm:$0xf]
          %v1101 = vld [vmem:[%s912 + $0x10] sm:$0xf]
          %v1102 = vld [vmem:[%s912 + $0x14] sm:$0xf]
          %v1103 = vld [vmem:[%s912 + $0x18] sm:$0xf]
          %v1104 = vld [vmem:[%s912 + $0x1c] sm:$0xf]
          %v1105 = vld [vmem:[%s912 + $0x20] sm:$0xf]
          %v1106 = vld [vmem:[%s912 + $0x24] sm:$0xf]
          %v1107 = vld [vmem:[%s912 + $0x28] sm:$0xf]
          %v1108 = vld [vmem:[%s912 + $0x2c] sm:$0xf]
          %v1109 = vld [vmem:[%s912 + $0x30] sm:$0xf]
          %v1110 = vld [vmem:[%s912 + $0x34] sm:$0xf]
          %v1111 = vld [vmem:[%s912 + $0x38] sm:$0x1]
          %s1112 = scalar_lea.vmem %s1, 40
          %v1113 = vld [vmem:[%s1112] sm:$0xf]
          %v1114 = vld [vmem:[%s1112 + $0x4] sm:$0x3]
          %v1130 = vunpack.c.l.b16 %v1097
          %v1131 = vunpack.c.l.b16 %v1098
          %v1132 = vunpack.c.l.b16 %v1099
          %v1133 = vunpack.c.l.b16 %v1100
          %v1134 = vunpack.c.l.b16 %v1101
          %v1135 = vunpack.c.l.b16 %v1102
          %v1136 = vunpack.c.l.b16 %v1103
          %v1137 = vunpack.c.l.b16 %v1104
          %v1138 = vunpack.c.l.b16 %v1105
          %v1139 = vunpack.c.l.b16 %v1106
          %v1140 = vunpack.c.l.b16 %v1107
          %v1141 = vunpack.c.l.b16 %v1108
          %v1142 = vunpack.c.l.b16 %v1109
          %v1143 = vunpack.c.l.b16 %v1110
          %v1144 = vunpack.c.l.b16 %v1111
          %v1145 = vpack.c.b16 %v1131, %v1130
          %v1146 = vpack.c.b16 %v1133, %v1132
          %v1147 = vpack.c.b16 %v1135, %v1134
          %v1148 = vpack.c.b16 %v1137, %v1136
          %v1149 = vpack.c.b16 %v1139, %v1138
          %v1150 = vpack.c.b16 %v1141, %v1140
          %v1151 = vpack.c.b16 %v1143, %v1142
          %v1152 = vpack.c.b16 %v1144, %v1144
          %v1154 = vshrl.u32 %v1145, 16
          %v1156 = vshll.u32 %v1145, 16
          %v1158 = vrot.slane %v1156, 1
          %v1159 = vor.u32 %v1154, %v1158
          %v1161 = vshll.u32 %v1146, 16
          %v1163 = vrot.slane %v1161, 1
          %v1164 = vsel %vm281, %v1159, %v1163
          %v1165 = vshrl.u32 %v1146, 16
          %v1167 = vor.u32 %v1165, %v1163
          %v1169 = vshll.u32 %v1147, 16
          %v1171 = vrot.slane %v1169, 1
          %v1172 = vsel %vm281, %v1167, %v1171
          %v1173 = vshrl.u32 %v1147, 16
          %v1175 = vor.u32 %v1173, %v1171
          %v1177 = vshll.u32 %v1148, 16
          %v1179 = vrot.slane %v1177, 1
          %v1180 = vsel %vm281, %v1175, %v1179
          %v1181 = vshrl.u32 %v1148, 16
          %v1183 = vor.u32 %v1181, %v1179
          %v1185 = vshll.u32 %v1149, 16
          %v1187 = vrot.slane %v1185, 1
          %v1188 = vsel %vm281, %v1183, %v1187
          %v1189 = vshrl.u32 %v1149, 16
          %v1191 = vor.u32 %v1189, %v1187
          %v1193 = vshll.u32 %v1150, 16
          %v1195 = vrot.slane %v1193, 1
          %v1196 = vsel %vm281, %v1191, %v1195
          %v1197 = vshrl.u32 %v1150, 16
          %v1199 = vor.u32 %v1197, %v1195
          %v1201 = vshll.u32 %v1151, 16
          %v1203 = vrot.slane %v1201, 1
          %v1204 = vsel %vm281, %v1199, %v1203
          %v1205 = vshrl.u32 %v1151, 16
          %v1207 = vor.u32 %v1205, %v1203
          %v1209 = vshll.u32 %v1152, 16
          %v1211 = vrot.slane %v1209, 1
          %v1212 = vsel %vm281, %v1207, %v1211
          %v1215 = vunpack.c.l.b16 %v1113
          %v1216 = vunpack.c.l.b16 %v1114
          %v1217 = vpack.c.b16 %v1216, %v1215
          %v1219 = vsel %vm347, %v1164, 0
          %v1222 = vsel %vm347, %v1172, 0
          %v1225 = vsel %vm347, %v1180, 0
          %v1228 = vsel %vm347, %v1188, 0
          %v1231 = vsel %vm347, %v1196, 0
          %v1234 = vsel %vm347, %v1204, 0
          %v1237 = vsel %vm347, %v1212, 0
          %v1240 = vsel %vm369, %v1217, 0
          %1242 = vmatprep.subr.bf16.mxu0 0
          %1243 = vmatpush1.bf16.msra.mxu0 %v1240
          %1244 = vmatprep.subr.bf16.mxu0 0
          %1245 = vmatpush1.bf16.msra.mxu0 0
          %1246 = vmatprep.subr.bf16.mxu0 0
          %1247 = vmatpush1.bf16.msra.mxu0 0
          %1248 = vmatprep.subr.bf16.mxu0 0
          %1249 = vmatpush1.bf16.msra.mxu0 0
          %1250 = vmatprep.subr.bf16.mxu0 0
          %1251 = vmatpush1.bf16.msra.mxu0 0
          %1252 = vmatprep.subr.bf16.mxu0 0
          %1253 = vmatpush1.bf16.msra.mxu0 0
          %1254 = vmatprep.subr.bf16.mxu0 0
          %1255 = vmatpush1.bf16.msra.mxu0 0
          %1256 = vmatprep.subr.bf16.mxu0 0
          %1257 = vmatpush1.bf16.msra.mxu0 0
          %1258 = vmatprep.subr.bf16.mxu0 0
          %1259 = vmatpush1.bf16.msra.mxu0 0
          %1260 = vmatprep.subr.bf16.mxu0 0
          %1261 = vmatpush1.bf16.msra.mxu0 0
          %1262 = vmatprep.subr.bf16.mxu0 0
          %1263 = vmatpush1.bf16.msra.mxu0 0
          %1264 = vmatprep.subr.bf16.mxu0 0
          %1265 = vmatpush1.bf16.msra.mxu0 0
          %1266 = vmatprep.subr.bf16.mxu0 0
          %1267 = vmatpush1.bf16.msra.mxu0 0
          %1268 = vmatprep.subr.bf16.mxu0 0
          %1269 = vmatpush1.bf16.msra.mxu0 0
          %1270 = vmatprep.subr.bf16.mxu0 0
          %1271 = vmatpush1.bf16.msra.mxu0 0
          %1272 = vmatprep.subr.bf16.mxu0 0
          %1273 = vmatpush1.bf16.msra.mxu0 0
          %1274 = vmatprep.mubr.bf16.mxu0 0
          %1275 = vmatmul.mubr.bf16.gmra.mrb[0].mxu0 %v1219
          %v1276 = vpop.f32.mrb[0].mxu0
          %v1277 = vadd.f32 0.0, %v1276
          %v1278 = vpop.f32.mrb[0].mxu0
          %v1279 = vpop.f32.mrb[0].mxu0
          %v1280 = vadd.f32 0.0, %v1279
          %v1281 = vpop.f32.mrb[0].mxu0
          %1282 = vmatprep.mubr.bf16.mxu0 0
          %1283 = vmatmul.mubr.bf16.gmra.mrb[0].mxu0 %v1222
          %v1284 = vpop.f32.mrb[0].mxu0
          %v1285 = vadd.f32 0.0, %v1284
          %v1286 = vpop.f32.mrb[0].mxu0
          %v1287 = vpop.f32.mrb[0].mxu0
          %v1288 = vadd.f32 0.0, %v1287
          %v1289 = vpop.f32.mrb[0].mxu0
          %1290 = vmatprep.mubr.bf16.mxu0 0
          %1291 = vmatmul.mubr.bf16.gmra.mrb[0].mxu0 %v1225
          %v1292 = vpop.f32.mrb[0].mxu0
          %v1293 = vadd.f32 0.0, %v1292
          %v1294 = vpop.f32.mrb[0].mxu0
          %v1295 = vpop.f32.mrb[0].mxu0
          %v1296 = vadd.f32 0.0, %v1295
          %v1297 = vpop.f32.mrb[0].mxu0
          %1298 = vmatprep.mubr.bf16.mxu0 0
          %1299 = vmatmul.mubr.bf16.gmra.mrb[0].mxu0 %v1228
          %v1300 = vpop.f32.mrb[0].mxu0
          %v1301 = vadd.f32 0.0, %v1300
          %v1302 = vpop.f32.mrb[0].mxu0
          %v1303 = vpop.f32.mrb[0].mxu0
          %v1304 = vadd.f32 0.0, %v1303
          %v1305 = vpop.f32.mrb[0].mxu0
          %1306 = vmatprep.mubr.bf16.mxu0 0
          %1307 = vmatmul.mubr.bf16.gmra.mrb[0].mxu0 %v1231
          %v1308 = vpop.f32.mrb[0].mxu0
          %v1309 = vadd.f32 0.0, %v1308
          %v1310 = vpop.f32.mrb[0].mxu0
          %v1311 = vpop.f32.mrb[0].mxu0
          %v1312 = vadd.f32 0.0, %v1311
          %v1313 = vpop.f32.mrb[0].mxu0
          %1314 = vmatprep.mubr.bf16.mxu0 0
          %1315 = vmatmul.mubr.bf16.gmra.mrb[0].mxu0 %v1234
          %v1316 = vpop.f32.mrb[0].mxu0
          %v1317 = vadd.f32 0.0, %v1316
          %v1318 = vpop.f32.mrb[0].mxu0
          %v1319 = vpop.f32.mrb[0].mxu0
          %v1320 = vadd.f32 0.0, %v1319
          %v1321 = vpop.f32.mrb[0].mxu0
          %1322 = vmatprep.mubr.bf16.mxu0 0
          %1323 = vmatmul.mubr.bf16.gmra.mrb[0].mxu0 %v1237
          %v1324 = vpop.f32.mrb[0].mxu0
          %v1325 = vadd.f32 0.0, %v1324
          %v1326 = vpop.f32.mrb[0].mxu0
          %v1327 = vpop.f32.mrb[0].mxu0
          %v1328 = vadd.f32 0.0, %v1327
          %v1329 = vpop.f32.mrb[0].mxu0
          %1330 = vdwg.mxu0
          %v1331 = vadd.f32 %v1083, %v1277
          %v1332 = vadd.f32 %v1084, %v1280
          %v1333 = vadd.f32 %v1085, %v1285
          %v1334 = vadd.f32 %v1086, %v1288
          %v1335 = vadd.f32 %v1087, %v1293
          %v1336 = vadd.f32 %v1088, %v1296
          %v1337 = vadd.f32 %v1089, %v1301
          %v1338 = vadd.f32 %v1090, %v1304
          %v1339 = vadd.f32 %v1091, %v1309
          %v1340 = vadd.f32 %v1092, %v1312
          %v1341 = vadd.f32 %v1093, %v1317
          %v1342 = vadd.f32 %v1094, %v1320
          %v1343 = vadd.f32 %v1095, %v1325
          %v1344 = vadd.f32 %v1096, %v1328
          %v1345 = vld [vmem:[%s912] sm:$0xe]
          %s1346 = scalar_lea.vmem %s1, 48
          %v1347 = vld [vmem:[%s1346] sm:$0xf]
          %v1348 = vld [vmem:[%s1346 + $0x4] sm:$0x3]
          %v1350 = vunpack.c.l.b16 %v1345
          %v1351 = vpack.c.b16 %v1131, %v1350
          %v1352 = vrot.slane %v1351, 1
          %v1353 = vrot.slane %v1146, 1
          %v1354 = vsel %vm580, %v1352, %v1353
          %v1355 = vrot.slane %v1147, 1
          %v1356 = vsel %vm580, %v1353, %v1355
          %v1357 = vrot.slane %v1148, 1
          %v1358 = vsel %vm580, %v1355, %v1357
          %v1359 = vrot.slane %v1149, 1
          %v1360 = vsel %vm580, %v1357, %v1359
          %v1361 = vrot.slane %v1150, 1
          %v1362 = vsel %vm580, %v1359, %v1361
          %v1363 = vrot.slane %v1151, 1
          %v1364 = vsel %vm580, %v1361, %v1363
          %v1365 = vrot.slane %v1152, 1
          %v1366 = vsel %vm580, %v1363, %v1365
          %v1369 = vunpack.c.l.b16 %v1347
          %v1370 = vunpack.c.l.b16 %v1348
          %v1371 = vpack.c.b16 %v1370, %v1369
          %v1373 = vsel %vm347, %v1354, 0
          %v1376 = vsel %vm347, %v1356, 0
          %v1379 = vsel %vm347, %v1358, 0
          %v1382 = vsel %vm347, %v1360, 0
          %v1385 = vsel %vm347, %v1362, 0
          %v1388 = vsel %vm347, %v1364, 0
          %v1391 = vsel %vm347, %v1366, 0
          %v1394 = vsel %vm369, %v1371, 0
          %1396 = vmatprep.subr.bf16.mxu0 0
          %1397 = vmatpush1.bf16.msra.mxu0 %v1394
          %1398 = vmatprep.subr.bf16.mxu0 0
          %1399 = vmatpush1.bf16.msra.mxu0 0
          %1400 = vmatprep.subr.bf16.mxu0 0
          %1401 = vmatpush1.bf16.msra.mxu0 0
          %1402 = vmatprep.subr.bf16.mxu0 0
          %1403 = vmatpush1.bf16.msra.mxu0 0
          %1404 = vmatprep.subr.bf16.mxu0 0
          %1405 = vmatpush1.bf16.msra.mxu0 0
          %1406 = vmatprep.subr.bf16.mxu0 0
          %1407 = vmatpush1.bf16.msra.mxu0 0
          %1408 = vmatprep.subr.bf16.mxu0 0
          %1409 = vmatpush1.bf16.msra.mxu0 0
          %1410 = vmatprep.subr.bf16.mxu0 0
          %1411 = vmatpush1.bf16.msra.mxu0 0
          %1412 = vmatprep.subr.bf16.mxu0 0
          %1413 = vmatpush1.bf16.msra.mxu0 0
          %1414 = vmatprep.subr.bf16.mxu0 0
          %1415 = vmatpush1.bf16.msra.mxu0 0
          %1416 = vmatprep.subr.bf16.mxu0 0
          %1417 = vmatpush1.bf16.msra.mxu0 0
          %1418 = vmatprep.subr.bf16.mxu0 0
          %1419 = vmatpush1.bf16.msra.mxu0 0
          %1420 = vmatprep.subr.bf16.mxu0 0
          %1421 = vmatpush1.bf16.msra.mxu0 0
          %1422 = vmatprep.subr.bf16.mxu0 0
          %1423 = vmatpush1.bf16.msra.mxu0 0
          %1424 = vmatprep.subr.bf16.mxu0 0
          %1425 = vmatpush1.bf16.msra.mxu0 0
          %1426 = vmatprep.subr.bf16.mxu0 0
          %1427 = vmatpush1.bf16.msra.mxu0 0
          %1428 = vmatprep.mubr.bf16.mxu0 0
          %1429 = vmatmul.mubr.bf16.gmra.mrb[0].mxu0 %v1373
          %v1430 = vpop.f32.mrb[0].mxu0
          %v1431 = vadd.f32 0.0, %v1430
          %v1432 = vpop.f32.mrb[0].mxu0
          %v1433 = vpop.f32.mrb[0].mxu0
          %v1434 = vadd.f32 0.0, %v1433
          %v1435 = vpop.f32.mrb[0].mxu0
          %1436 = vmatprep.mubr.bf16.mxu0 0
          %1437 = vmatmul.mubr.bf16.gmra.mrb[0].mxu0 %v1376
          %v1438 = vpop.f32.mrb[0].mxu0
          %v1439 = vadd.f32 0.0, %v1438
          %v1440 = vpop.f32.mrb[0].mxu0
          %v1441 = vpop.f32.mrb[0].mxu0
          %v1442 = vadd.f32 0.0, %v1441
          %v1443 = vpop.f32.mrb[0].mxu0
          %1444 = vmatprep.mubr.bf16.mxu0 0
          %1445 = vmatmul.mubr.bf16.gmra.mrb[0].mxu0 %v1379
          %v1446 = vpop.f32.mrb[0].mxu0
          %v1447 = vadd.f32 0.0, %v1446
          %v1448 = vpop.f32.mrb[0].mxu0
          %v1449 = vpop.f32.mrb[0].mxu0
          %v1450 = vadd.f32 0.0, %v1449
          %v1451 = vpop.f32.mrb[0].mxu0
          %1452 = vmatprep.mubr.bf16.mxu0 0
          %1453 = vmatmul.mubr.bf16.gmra.mrb[0].mxu0 %v1382
          %v1454 = vpop.f32.mrb[0].mxu0
          %v1455 = vadd.f32 0.0, %v1454
          %v1456 = vpop.f32.mrb[0].mxu0
          %v1457 = vpop.f32.mrb[0].mxu0
          %v1458 = vadd.f32 0.0, %v1457
          %v1459 = vpop.f32.mrb[0].mxu0
          %1460 = vmatprep.mubr.bf16.mxu0 0
          %1461 = vmatmul.mubr.bf16.gmra.mrb[0].mxu0 %v1385
          %v1462 = vpop.f32.mrb[0].mxu0
          %v1463 = vadd.f32 0.0, %v1462
          %v1464 = vpop.f32.mrb[0].mxu0
          %v1465 = vpop.f32.mrb[0].mxu0
          %v1466 = vadd.f32 0.0, %v1465
          %v1467 = vpop.f32.mrb[0].mxu0
          %1468 = vmatprep.mubr.bf16.mxu0 0
          %1469 = vmatmul.mubr.bf16.gmra.mrb[0].mxu0 %v1388
          %v1470 = vpop.f32.mrb[0].mxu0
          %v1471 = vadd.f32 0.0, %v1470
          %v1472 = vpop.f32.mrb[0].mxu0
          %v1473 = vpop.f32.mrb[0].mxu0
          %v1474 = vadd.f32 0.0, %v1473
          %v1475 = vpop.f32.mrb[0].mxu0
          %1476 = vmatprep.mubr.bf16.mxu0 0
          %1477 = vmatmul.mubr.bf16.gmra.mrb[0].mxu0 %v1391
          %v1478 = vpop.f32.mrb[0].mxu0
          %v1479 = vadd.f32 0.0, %v1478
          %v1480 = vpop.f32.mrb[0].mxu0
          %v1481 = vpop.f32.mrb[0].mxu0
          %v1482 = vadd.f32 0.0, %v1481
          %v1483 = vpop.f32.mrb[0].mxu0
          %1484 = vdwg.mxu0
          %v1485 = vadd.f32 %v1331, %v1431
          %v1486 = vadd.f32 %v1332, %v1434
          %v1487 = vadd.f32 %v1333, %v1439
          %v1488 = vadd.f32 %v1334, %v1442
          %v1489 = vadd.f32 %v1335, %v1447
          %v1490 = vadd.f32 %v1336, %v1450
          %v1491 = vadd.f32 %v1337, %v1455
          %v1492 = vadd.f32 %v1338, %v1458
          %v1493 = vadd.f32 %v1339, %v1463
          %v1494 = vadd.f32 %v1340, %v1466
          %v1495 = vadd.f32 %v1341, %v1471
          %v1496 = vadd.f32 %v1342, %v1474
          %v1497 = vadd.f32 %v1343, %v1479
          %v1498 = vadd.f32 %v1344, %v1482
          %v1499 = vld [vmem:[%s912 + $0x38] sm:$0x3]
          %s1500 = scalar_lea.vmem %s1, 56
          %v1501 = vld [vmem:[%s1500] sm:$0xf]
          %v1502 = vld [vmem:[%s1500 + $0x4] sm:$0x3]
          %v1504 = vunpack.c.l.b16 %v1499
          %v1505 = vpack.c.b16 %v1504, %v1504
          %v1507 = vshrl.u32 %v1351, 16
          %v1509 = vrot.slane %v1507, 1
          %v1510 = vshll.u32 %v1351, 16
          %v1512 = vrot.slane %v1510, 2
          %v1513 = vor.u32 %v1509, %v1512
          %v1514 = vrot.slane %v1165, 1
          %v1515 = vrot.slane %v1161, 2
          %v1516 = vor.u32 %v1514, %v1515
          %v1517 = vsel %vm735, %v1513, %v1516
          %v1518 = vrot.slane %v1173, 1
          %v1519 = vrot.slane %v1169, 2
          %v1520 = vor.u32 %v1518, %v1519
          %v1521 = vsel %vm735, %v1516, %v1520
          %v1522 = vrot.slane %v1181, 1
          %v1523 = vrot.slane %v1177, 2
          %v1524 = vor.u32 %v1522, %v1523
          %v1525 = vsel %vm735, %v1520, %v1524
          %v1526 = vrot.slane %v1189, 1
          %v1527 = vrot.slane %v1185, 2
          %v1528 = vor.u32 %v1526, %v1527
          %v1529 = vsel %vm735, %v1524, %v1528
          %v1530 = vrot.slane %v1197, 1
          %v1531 = vrot.slane %v1193, 2
          %v1532 = vor.u32 %v1530, %v1531
          %v1533 = vsel %vm735, %v1528, %v1532
          %v1534 = vrot.slane %v1205, 1
          %v1535 = vrot.slane %v1201, 2
          %v1536 = vor.u32 %v1534, %v1535
          %v1537 = vsel %vm735, %v1532, %v1536
          %v1539 = vshrl.u32 %v1505, 16
          %v1541 = vrot.slane %v1539, 1
          %v1542 = vshll.u32 %v1505, 16
          %v1544 = vrot.slane %v1542, 2
          %v1545 = vor.u32 %v1541, %v1544
          %v1546 = vsel %vm735, %v1536, %v1545
          %v1549 = vunpack.c.l.b16 %v1501
          %v1550 = vunpack.c.l.b16 %v1502
          %v1551 = vpack.c.b16 %v1550, %v1549
          %v1553 = vsel %vm347, %v1517, 0
          %v1556 = vsel %vm347, %v1521, 0
          %v1559 = vsel %vm347, %v1525, 0
          %v1562 = vsel %vm347, %v1529, 0
          %v1565 = vsel %vm347, %v1533, 0
          %v1568 = vsel %vm347, %v1537, 0
          %v1571 = vsel %vm347, %v1546, 0
          %v1574 = vsel %vm369, %v1551, 0
          %1576 = vmatprep.subr.bf16.mxu0 0
          %1577 = vmatpush1.bf16.msra.mxu0 %v1574
          %1578 = vmatprep.subr.bf16.mxu0 0
          %1579 = vmatpush1.bf16.msra.mxu0 0
          %1580 = vmatprep.subr.bf16.mxu0 0
          %1581 = vmatpush1.bf16.msra.mxu0 0
          %1582 = vmatprep.subr.bf16.mxu0 0
          %1583 = vmatpush1.bf16.msra.mxu0 0
          %1584 = vmatprep.subr.bf16.mxu0 0
          %1585 = vmatpush1.bf16.msra.mxu0 0
          %1586 = vmatprep.subr.bf16.mxu0 0
          %1587 = vmatpush1.bf16.msra.mxu0 0
          %1588 = vmatprep.subr.bf16.mxu0 0
          %1589 = vmatpush1.bf16.msra.mxu0 0
          %1590 = vmatprep.subr.bf16.mxu0 0
          %1591 = vmatpush1.bf16.msra.mxu0 0
          %1592 = vmatprep.subr.bf16.mxu0 0
          %1593 = vmatpush1.bf16.msra.mxu0 0
          %1594 = vmatprep.subr.bf16.mxu0 0
          %1595 = vmatpush1.bf16.msra.mxu0 0
          %1596 = vmatprep.subr.bf16.mxu0 0
          %1597 = vmatpush1.bf16.msra.mxu0 0
          %1598 = vmatprep.subr.bf16.mxu0 0
          %1599 = vmatpush1.bf16.msra.mxu0 0
          %1600 = vmatprep.subr.bf16.mxu0 0
          %1601 = vmatpush1.bf16.msra.mxu0 0
          %1602 = vmatprep.subr.bf16.mxu0 0
          %1603 = vmatpush1.bf16.msra.mxu0 0
          %1604 = vmatprep.subr.bf16.mxu0 0
          %1605 = vmatpush1.bf16.msra.mxu0 0
          %1606 = vmatprep.subr.bf16.mxu0 0
          %1607 = vmatpush1.bf16.msra.mxu0 0
          %1608 = vmatprep.mubr.bf16.mxu0 0
          %1609 = vmatmul.mubr.bf16.gmra.mrb[0].mxu0 %v1553
          %v1610 = vpop.f32.mrb[0].mxu0
          %v1611 = vadd.f32 0.0, %v1610
          %v1612 = vpop.f32.mrb[0].mxu0
          %v1613 = vpop.f32.mrb[0].mxu0
          %v1614 = vadd.f32 0.0, %v1613
          %v1615 = vpop.f32.mrb[0].mxu0
          %1616 = vmatprep.mubr.bf16.mxu0 0
          %1617 = vmatmul.mubr.bf16.gmra.mrb[0].mxu0 %v1556
          %v1618 = vpop.f32.mrb[0].mxu0
          %v1619 = vadd.f32 0.0, %v1618
          %v1620 = vpop.f32.mrb[0].mxu0
          %v1621 = vpop.f32.mrb[0].mxu0
          %v1622 = vadd.f32 0.0, %v1621
          %v1623 = vpop.f32.mrb[0].mxu0
          %1624 = vmatprep.mubr.bf16.mxu0 0
          %1625 = vmatmul.mubr.bf16.gmra.mrb[0].mxu0 %v1559
          %v1626 = vpop.f32.mrb[0].mxu0
          %v1627 = vadd.f32 0.0, %v1626
          %v1628 = vpop.f32.mrb[0].mxu0
          %v1629 = vpop.f32.mrb[0].mxu0
          %v1630 = vadd.f32 0.0, %v1629
          %v1631 = vpop.f32.mrb[0].mxu0
          %1632 = vmatprep.mubr.bf16.mxu0 0
          %1633 = vmatmul.mubr.bf16.gmra.mrb[0].mxu0 %v1562
          %v1634 = vpop.f32.mrb[0].mxu0
          %v1635 = vadd.f32 0.0, %v1634
          %v1636 = vpop.f32.mrb[0].mxu0
          %v1637 = vpop.f32.mrb[0].mxu0
          %v1638 = vadd.f32 0.0, %v1637
          %v1639 = vpop.f32.mrb[0].mxu0
          %1640 = vmatprep.mubr.bf16.mxu0 0
          %1641 = vmatmul.mubr.bf16.gmra.mrb[0].mxu0 %v1565
          %v1642 = vpop.f32.mrb[0].mxu0
          %v1643 = vadd.f32 0.0, %v1642
          %v1644 = vpop.f32.mrb[0].mxu0
          %v1645 = vpop.f32.mrb[0].mxu0
          %v1646 = vadd.f32 0.0, %v1645
          %v1647 = vpop.f32.mrb[0].mxu0
          %1648 = vmatprep.mubr.bf16.mxu0 0
          %1649 = vmatmul.mubr.bf16.gmra.mrb[0].mxu0 %v1568
          %v1650 = vpop.f32.mrb[0].mxu0
          %v1651 = vadd.f32 0.0, %v1650
          %v1652 = vpop.f32.mrb[0].mxu0
          %v1653 = vpop.f32.mrb[0].mxu0
          %v1654 = vadd.f32 0.0, %v1653
          %v1655 = vpop.f32.mrb[0].mxu0
          %1656 = vmatprep.mubr.bf16.mxu0 0
          %1657 = vmatmul.mubr.bf16.gmra.mrb[0].mxu0 %v1571
          %v1658 = vpop.f32.mrb[0].mxu0
          %v1659 = vadd.f32 0.0, %v1658
          %v1660 = vpop.f32.mrb[0].mxu0
          %v1661 = vpop.f32.mrb[0].mxu0
          %v1662 = vadd.f32 0.0, %v1661
          %v1663 = vpop.f32.mrb[0].mxu0
          %1664 = vdwg.mxu0
          %v1665 = vadd.f32 %v1485, %v1611
          %v1666 = vadd.f32 %v1486, %v1614
          %v1667 = vadd.f32 %v1487, %v1619
          %v1668 = vadd.f32 %v1488, %v1622
          %v1669 = vadd.f32 %v1489, %v1627
          %v1670 = vadd.f32 %v1490, %v1630
          %v1671 = vadd.f32 %v1491, %v1635
          %v1672 = vadd.f32 %v1492, %v1638
          %v1673 = vadd.f32 %v1493, %v1643
          %v1674 = vadd.f32 %v1494, %v1646
          %v1675 = vadd.f32 %v1495, %v1651
          %v1676 = vadd.f32 %v1496, %v1654
          %v1677 = vadd.f32 %v1497, %v1659
          %v1678 = vadd.f32 %v1498, %v1662
          %s1679 = sadd.s32 %s219, 2
          %s1680 = smul.u32 %s1679, 15
          %s1681 = smul.addr %s1680, 4
          %s1682 = scalar_lea.vmem %s197, %s1681
          %v1683 = vld [vmem:[%s1682] sm:$0xf]
          %v1684 = vld [vmem:[%s1682 + $0x4] sm:$0xf]
          %v1685 = vld [vmem:[%s1682 + $0x8] sm:$0xf]
          %v1686 = vld [vmem:[%s1682 + $0xc] sm:$0xf]
          %v1687 = vld [vmem:[%s1682 + $0x10] sm:$0xf]
          %v1688 = vld [vmem:[%s1682 + $0x14] sm:$0xf]
          %v1689 = vld [vmem:[%s1682 + $0x18] sm:$0xf]
          %v1690 = vld [vmem:[%s1682 + $0x1c] sm:$0xf]
          %v1691 = vld [vmem:[%s1682 + $0x20] sm:$0xf]
          %v1692 = vld [vmem:[%s1682 + $0x24] sm:$0xf]
          %v1693 = vld [vmem:[%s1682 + $0x28] sm:$0xf]
          %v1694 = vld [vmem:[%s1682 + $0x2c] sm:$0xf]
          %v1695 = vld [vmem:[%s1682 + $0x30] sm:$0xf]
          %v1696 = vld [vmem:[%s1682 + $0x34] sm:$0xf]
          %s1697 = scalar_lea.vmem %s1, 64
          %v1698 = vld [vmem:[%s1697] sm:$0xf]
          %v1699 = vld [vmem:[%s1697 + $0x4] sm:$0x3]
          %v1714 = vunpack.c.l.b16 %v1683
          %v1715 = vunpack.c.l.b16 %v1684
          %v1716 = vunpack.c.l.b16 %v1685
          %v1717 = vunpack.c.l.b16 %v1686
          %v1718 = vunpack.c.l.b16 %v1687
          %v1719 = vunpack.c.l.b16 %v1688
          %v1720 = vunpack.c.l.b16 %v1689
          %v1721 = vunpack.c.l.b16 %v1690
          %v1722 = vunpack.c.l.b16 %v1691
          %v1723 = vunpack.c.l.b16 %v1692
          %v1724 = vunpack.c.l.b16 %v1693
          %v1725 = vunpack.c.l.b16 %v1694
          %v1726 = vunpack.c.l.b16 %v1695
          %v1727 = vunpack.c.l.b16 %v1696
          %v1728 = vpack.c.b16 %v1715, %v1714
          %v1729 = vpack.c.b16 %v1717, %v1716
          %v1730 = vpack.c.b16 %v1719, %v1718
          %v1731 = vpack.c.b16 %v1721, %v1720
          %v1732 = vpack.c.b16 %v1723, %v1722
          %v1733 = vpack.c.b16 %v1725, %v1724
          %v1734 = vpack.c.b16 %v1727, %v1726
          %v1737 = vunpack.c.l.b16 %v1698
          %v1738 = vunpack.c.l.b16 %v1699
          %v1739 = vpack.c.b16 %v1738, %v1737
          %v1741 = vsel %vm347, %v1728, 0
          %v1744 = vsel %vm347, %v1729, 0
          %v1747 = vsel %vm347, %v1730, 0
          %v1750 = vsel %vm347, %v1731, 0
          %v1753 = vsel %vm347, %v1732, 0
          %v1756 = vsel %vm347, %v1733, 0
          %v1759 = vsel %vm347, %v1734, 0
          %v1762 = vsel %vm369, %v1739, 0
          %1764 = vmatprep.subr.bf16.mxu0 0
          %1765 = vmatpush1.bf16.msra.mxu0 %v1762
          %1766 = vmatprep.subr.bf16.mxu0 0
          %1767 = vmatpush1.bf16.msra.mxu0 0
          %1768 = vmatprep.subr.bf16.mxu0 0
          %1769 = vmatpush1.bf16.msra.mxu0 0
          %1770 = vmatprep.subr.bf16.mxu0 0
          %1771 = vmatpush1.bf16.msra.mxu0 0
          %1772 = vmatprep.subr.bf16.mxu0 0
          %1773 = vmatpush1.bf16.msra.mxu0 0
          %1774 = vmatprep.subr.bf16.mxu0 0
          %1775 = vmatpush1.bf16.msra.mxu0 0
          %1776 = vmatprep.subr.bf16.mxu0 0
          %1777 = vmatpush1.bf16.msra.mxu0 0
          %1778 = vmatprep.subr.bf16.mxu0 0
          %1779 = vmatpush1.bf16.msra.mxu0 0
          %1780 = vmatprep.subr.bf16.mxu0 0
          %1781 = vmatpush1.bf16.msra.mxu0 0
          %1782 = vmatprep.subr.bf16.mxu0 0
          %1783 = vmatpush1.bf16.msra.mxu0 0
          %1784 = vmatprep.subr.bf16.mxu0 0
          %1785 = vmatpush1.bf16.msra.mxu0 0
          %1786 = vmatprep.subr.bf16.mxu0 0
          %1787 = vmatpush1.bf16.msra.mxu0 0
          %1788 = vmatprep.subr.bf16.mxu0 0
          %1789 = vmatpush1.bf16.msra.mxu0 0
          %1790 = vmatprep.subr.bf16.mxu0 0
          %1791 = vmatpush1.bf16.msra.mxu0 0
          %1792 = vmatprep.subr.bf16.mxu0 0
          %1793 = vmatpush1.bf16.msra.mxu0 0
          %1794 = vmatprep.subr.bf16.mxu0 0
          %1795 = vmatpush1.bf16.msra.mxu0 0
          %1796 = vmatprep.mubr.bf16.mxu0 0
          %1797 = vmatmul.mubr.bf16.gmra.mrb[0].mxu0 %v1741
          %v1798 = vpop.f32.mrb[0].mxu0
          %v1799 = vadd.f32 0.0, %v1798
          %v1800 = vpop.f32.mrb[0].mxu0
          %v1801 = vpop.f32.mrb[0].mxu0
          %v1802 = vadd.f32 0.0, %v1801
          %v1803 = vpop.f32.mrb[0].mxu0
          %1804 = vmatprep.mubr.bf16.mxu0 0
          %1805 = vmatmul.mubr.bf16.gmra.mrb[0].mxu0 %v1744
          %v1806 = vpop.f32.mrb[0].mxu0
          %v1807 = vadd.f32 0.0, %v1806
          %v1808 = vpop.f32.mrb[0].mxu0
          %v1809 = vpop.f32.mrb[0].mxu0
          %v1810 = vadd.f32 0.0, %v1809
          %v1811 = vpop.f32.mrb[0].mxu0
          %1812 = vmatprep.mubr.bf16.mxu0 0
          %1813 = vmatmul.mubr.bf16.gmra.mrb[0].mxu0 %v1747
          %v1814 = vpop.f32.mrb[0].mxu0
          %v1815 = vadd.f32 0.0, %v1814
          %v1816 = vpop.f32.mrb[0].mxu0
          %v1817 = vpop.f32.mrb[0].mxu0
          %v1818 = vadd.f32 0.0, %v1817
          %v1819 = vpop.f32.mrb[0].mxu0
          %1820 = vmatprep.mubr.bf16.mxu0 0
          %1821 = vmatmul.mubr.bf16.gmra.mrb[0].mxu0 %v1750
          %v1822 = vpop.f32.mrb[0].mxu0
          %v1823 = vadd.f32 0.0, %v1822
          %v1824 = vpop.f32.mrb[0].mxu0
          %v1825 = vpop.f32.mrb[0].mxu0
          %v1826 = vadd.f32 0.0, %v1825
          %v1827 = vpop.f32.mrb[0].mxu0
          %1828 = vmatprep.mubr.bf16.mxu0 0
          %1829 = vmatmul.mubr.bf16.gmra.mrb[0].mxu0 %v1753
          %v1830 = vpop.f32.mrb[0].mxu0
          %v1831 = vadd.f32 0.0, %v1830
          %v1832 = vpop.f32.mrb[0].mxu0
          %v1833 = vpop.f32.mrb[0].mxu0
          %v1834 = vadd.f32 0.0, %v1833
          %v1835 = vpop.f32.mrb[0].mxu0
          %1836 = vmatprep.mubr.bf16.mxu0 0
          %1837 = vmatmul.mubr.bf16.gmra.mrb[0].mxu0 %v1756
          %v1838 = vpop.f32.mrb[0].mxu0
          %v1839 = vadd.f32 0.0, %v1838
          %v1840 = vpop.f32.mrb[0].mxu0
          %v1841 = vpop.f32.mrb[0].mxu0
          %v1842 = vadd.f32 0.0, %v1841
          %v1843 = vpop.f32.mrb[0].mxu0
          %1844 = vmatprep.mubr.bf16.mxu0 0
          %1845 = vmatmul.mubr.bf16.gmra.mrb[0].mxu0 %v1759
          %v1846 = vpop.f32.mrb[0].mxu0
          %v1847 = vadd.f32 0.0, %v1846
          %v1848 = vpop.f32.mrb[0].mxu0
          %v1849 = vpop.f32.mrb[0].mxu0
          %v1850 = vadd.f32 0.0, %v1849
          %v1851 = vpop.f32.mrb[0].mxu0
          %1852 = vdwg.mxu0
          %v1853 = vadd.f32 %v1665, %v1799
          %v1854 = vadd.f32 %v1666, %v1802
          %v1855 = vadd.f32 %v1667, %v1807
          %v1856 = vadd.f32 %v1668, %v1810
          %v1857 = vadd.f32 %v1669, %v1815
          %v1858 = vadd.f32 %v1670, %v1818
          %v1859 = vadd.f32 %v1671, %v1823
          %v1860 = vadd.f32 %v1672, %v1826
          %v1861 = vadd.f32 %v1673, %v1831
          %v1862 = vadd.f32 %v1674, %v1834
          %v1863 = vadd.f32 %v1675, %v1839
          %v1864 = vadd.f32 %v1676, %v1842
          %v1865 = vadd.f32 %v1677, %v1847
          %v1866 = vadd.f32 %v1678, %v1850
          %v1867 = vld [vmem:[%s1682] sm:$0xf]
          %v1868 = vld [vmem:[%s1682 + $0x4] sm:$0xf]
          %v1869 = vld [vmem:[%s1682 + $0x8] sm:$0xf]
          %v1870 = vld [vmem:[%s1682 + $0xc] sm:$0xf]
          %v1871 = vld [vmem:[%s1682 + $0x10] sm:$0xf]
          %v1872 = vld [vmem:[%s1682 + $0x14] sm:$0xf]
          %v1873 = vld [vmem:[%s1682 + $0x18] sm:$0xf]
          %v1874 = vld [vmem:[%s1682 + $0x1c] sm:$0xf]
          %v1875 = vld [vmem:[%s1682 + $0x20] sm:$0xf]
          %v1876 = vld [vmem:[%s1682 + $0x24] sm:$0xf]
          %v1877 = vld [vmem:[%s1682 + $0x28] sm:$0xf]
          %v1878 = vld [vmem:[%s1682 + $0x2c] sm:$0xf]
          %v1879 = vld [vmem:[%s1682 + $0x30] sm:$0xf]
          %v1880 = vld [vmem:[%s1682 + $0x34] sm:$0xf]
          %v1881 = vld [vmem:[%s1682 + $0x38] sm:$0x1]
          %s1882 = scalar_lea.vmem %s1, 72
          %v1883 = vld [vmem:[%s1882] sm:$0xf]
          %v1884 = vld [vmem:[%s1882 + $0x4] sm:$0x3]
          %v1900 = vunpack.c.l.b16 %v1867
          %v1901 = vunpack.c.l.b16 %v1868
          %v1902 = vunpack.c.l.b16 %v1869
          %v1903 = vunpack.c.l.b16 %v1870
          %v1904 = vunpack.c.l.b16 %v1871
          %v1905 = vunpack.c.l.b16 %v1872
          %v1906 = vunpack.c.l.b16 %v1873
          %v1907 = vunpack.c.l.b16 %v1874
          %v1908 = vunpack.c.l.b16 %v1875
          %v1909 = vunpack.c.l.b16 %v1876
          %v1910 = vunpack.c.l.b16 %v1877
          %v1911 = vunpack.c.l.b16 %v1878
          %v1912 = vunpack.c.l.b16 %v1879
          %v1913 = vunpack.c.l.b16 %v1880
          %v1914 = vunpack.c.l.b16 %v1881
          %v1915 = vpack.c.b16 %v1901, %v1900
          %v1916 = vpack.c.b16 %v1903, %v1902
          %v1917 = vpack.c.b16 %v1905, %v1904
          %v1918 = vpack.c.b16 %v1907, %v1906
          %v1919 = vpack.c.b16 %v1909, %v1908
          %v1920 = vpack.c.b16 %v1911, %v1910
          %v1921 = vpack.c.b16 %v1913, %v1912
          %v1922 = vpack.c.b16 %v1914, %v1914
          %v1924 = vshrl.u32 %v1915, 16
          %v1926 = vshll.u32 %v1915, 16
          %v1928 = vrot.slane %v1926, 1
          %v1929 = vor.u32 %v1924, %v1928
          %v1931 = vshll.u32 %v1916, 16
          %v1933 = vrot.slane %v1931, 1
          %v1934 = vsel %vm281, %v1929, %v1933
          %v1935 = vshrl.u32 %v1916, 16
          %v1937 = vor.u32 %v1935, %v1933
          %v1939 = vshll.u32 %v1917, 16
          %v1941 = vrot.slane %v1939, 1
          %v1942 = vsel %vm281, %v1937, %v1941
          %v1943 = vshrl.u32 %v1917, 16
          %v1945 = vor.u32 %v1943, %v1941
          %v1947 = vshll.u32 %v1918, 16
          %v1949 = vrot.slane %v1947, 1
          %v1950 = vsel %vm281, %v1945, %v1949
          %v1951 = vshrl.u32 %v1918, 16
          %v1953 = vor.u32 %v1951, %v1949
          %v1955 = vshll.u32 %v1919, 16
          %v1957 = vrot.slane %v1955, 1
          %v1958 = vsel %vm281, %v1953, %v1957
          %v1959 = vshrl.u32 %v1919, 16
          %v1961 = vor.u32 %v1959, %v1957
          %v1963 = vshll.u32 %v1920, 16
          %v1965 = vrot.slane %v1963, 1
          %v1966 = vsel %vm281, %v1961, %v1965
          %v1967 = vshrl.u32 %v1920, 16
          %v1969 = vor.u32 %v1967, %v1965
          %v1971 = vshll.u32 %v1921, 16
          %v1973 = vrot.slane %v1971, 1
          %v1974 = vsel %vm281, %v1969, %v1973
          %v1975 = vshrl.u32 %v1921, 16
          %v1977 = vor.u32 %v1975, %v1973
          %v1979 = vshll.u32 %v1922, 16
          %v1981 = vrot.slane %v1979, 1
          %v1982 = vsel %vm281, %v1977, %v1981
          %v1985 = vunpack.c.l.b16 %v1883
          %v1986 = vunpack.c.l.b16 %v1884
          %v1987 = vpack.c.b16 %v1986, %v1985
          %v1989 = vsel %vm347, %v1934, 0
          %v1992 = vsel %vm347, %v1942, 0
          %v1995 = vsel %vm347, %v1950, 0
          %v1998 = vsel %vm347, %v1958, 0
          %v2001 = vsel %vm347, %v1966, 0
          %v2004 = vsel %vm347, %v1974, 0
          %v2007 = vsel %vm347, %v1982, 0
          %v2010 = vsel %vm369, %v1987, 0
          %2012 = vmatprep.subr.bf16.mxu0 0
          %2013 = vmatpush1.bf16.msra.mxu0 %v2010
          %2014 = vmatprep.subr.bf16.mxu0 0
          %2015 = vmatpush1.bf16.msra.mxu0 0
          %2016 = vmatprep.subr.bf16.mxu0 0
          %2017 = vmatpush1.bf16.msra.mxu0 0
          %2018 = vmatprep.subr.bf16.mxu0 0
          %2019 = vmatpush1.bf16.msra.mxu0 0
          %2020 = vmatprep.subr.bf16.mxu0 0
          %2021 = vmatpush1.bf16.msra.mxu0 0
          %2022 = vmatprep.subr.bf16.mxu0 0
          %2023 = vmatpush1.bf16.msra.mxu0 0
          %2024 = vmatprep.subr.bf16.mxu0 0
          %2025 = vmatpush1.bf16.msra.mxu0 0
          %2026 = vmatprep.subr.bf16.mxu0 0
          %2027 = vmatpush1.bf16.msra.mxu0 0
          %2028 = vmatprep.subr.bf16.mxu0 0
          %2029 = vmatpush1.bf16.msra.mxu0 0
          %2030 = vmatprep.subr.bf16.mxu0 0
          %2031 = vmatpush1.bf16.msra.mxu0 0
          %2032 = vmatprep.subr.bf16.mxu0 0
          %2033 = vmatpush1.bf16.msra.mxu0 0
          %2034 = vmatprep.subr.bf16.mxu0 0
          %2035 = vmatpush1.bf16.msra.mxu0 0
          %2036 = vmatprep.subr.bf16.mxu0 0
          %2037 = vmatpush1.bf16.msra.mxu0 0
          %2038 = vmatprep.subr.bf16.mxu0 0
          %2039 = vmatpush1.bf16.msra.mxu0 0
          %2040 = vmatprep.subr.bf16.mxu0 0
          %2041 = vmatpush1.bf16.msra.mxu0 0
          %2042 = vmatprep.subr.bf16.mxu0 0
          %2043 = vmatpush1.bf16.msra.mxu0 0
          %2044 = vmatprep.mubr.bf16.mxu0 0
          %2045 = vmatmul.mubr.bf16.gmra.mrb[0].mxu0 %v1989
          %v2046 = vpop.f32.mrb[0].mxu0
          %v2047 = vadd.f32 0.0, %v2046
          %v2048 = vpop.f32.mrb[0].mxu0
          %v2049 = vpop.f32.mrb[0].mxu0
          %v2050 = vadd.f32 0.0, %v2049
          %v2051 = vpop.f32.mrb[0].mxu0
          %2052 = vmatprep.mubr.bf16.mxu0 0
          %2053 = vmatmul.mubr.bf16.gmra.mrb[0].mxu0 %v1992
          %v2054 = vpop.f32.mrb[0].mxu0
          %v2055 = vadd.f32 0.0, %v2054
          %v2056 = vpop.f32.mrb[0].mxu0
          %v2057 = vpop.f32.mrb[0].mxu0
          %v2058 = vadd.f32 0.0, %v2057
          %v2059 = vpop.f32.mrb[0].mxu0
          %2060 = vmatprep.mubr.bf16.mxu0 0
          %2061 = vmatmul.mubr.bf16.gmra.mrb[0].mxu0 %v1995
          %v2062 = vpop.f32.mrb[0].mxu0
          %v2063 = vadd.f32 0.0, %v2062
          %v2064 = vpop.f32.mrb[0].mxu0
          %v2065 = vpop.f32.mrb[0].mxu0
          %v2066 = vadd.f32 0.0, %v2065
          %v2067 = vpop.f32.mrb[0].mxu0
          %2068 = vmatprep.mubr.bf16.mxu0 0
          %2069 = vmatmul.mubr.bf16.gmra.mrb[0].mxu0 %v1998
          %v2070 = vpop.f32.mrb[0].mxu0
          %v2071 = vadd.f32 0.0, %v2070
          %v2072 = vpop.f32.mrb[0].mxu0
          %v2073 = vpop.f32.mrb[0].mxu0
          %v2074 = vadd.f32 0.0, %v2073
          %v2075 = vpop.f32.mrb[0].mxu0
          %2076 = vmatprep.mubr.bf16.mxu0 0
          %2077 = vmatmul.mubr.bf16.gmra.mrb[0].mxu0 %v2001
          %v2078 = vpop.f32.mrb[0].mxu0
          %v2079 = vadd.f32 0.0, %v2078
          %v2080 = vpop.f32.mrb[0].mxu0
          %v2081 = vpop.f32.mrb[0].mxu0
          %v2082 = vadd.f32 0.0, %v2081
          %v2083 = vpop.f32.mrb[0].mxu0
          %2084 = vmatprep.mubr.bf16.mxu0 0
          %2085 = vmatmul.mubr.bf16.gmra.mrb[0].mxu0 %v2004
          %v2086 = vpop.f32.mrb[0].mxu0
          %v2087 = vadd.f32 0.0, %v2086
          %v2088 = vpop.f32.mrb[0].mxu0
          %v2089 = vpop.f32.mrb[0].mxu0
          %v2090 = vadd.f32 0.0, %v2089
          %v2091 = vpop.f32.mrb[0].mxu0
          %2092 = vmatprep.mubr.bf16.mxu0 0
          %2093 = vmatmul.mubr.bf16.gmra.mrb[0].mxu0 %v2007
          %v2094 = vpop.f32.mrb[0].mxu0
          %v2095 = vadd.f32 0.0, %v2094
          %v2096 = vpop.f32.mrb[0].mxu0
          %v2097 = vpop.f32.mrb[0].mxu0
          %v2098 = vadd.f32 0.0, %v2097
          %v2099 = vpop.f32.mrb[0].mxu0
          %2100 = vdwg.mxu0
          %v2101 = vadd.f32 %v1853, %v2047
          %v2102 = vadd.f32 %v1854, %v2050
          %v2103 = vadd.f32 %v1855, %v2055
          %v2104 = vadd.f32 %v1856, %v2058
          %v2105 = vadd.f32 %v1857, %v2063
          %v2106 = vadd.f32 %v1858, %v2066
          %v2107 = vadd.f32 %v1859, %v2071
          %v2108 = vadd.f32 %v1860, %v2074
          %v2109 = vadd.f32 %v1861, %v2079
          %v2110 = vadd.f32 %v1862, %v2082
          %v2111 = vadd.f32 %v1863, %v2087
          %v2112 = vadd.f32 %v1864, %v2090
          %v2113 = vadd.f32 %v1865, %v2095
          %v2114 = vadd.f32 %v1866, %v2098
          %v2115 = vld [vmem:[%s1682] sm:$0xe]
          %s2116 = scalar_lea.vmem %s1, 80
          %v2117 = vld [vmem:[%s2116] sm:$0xf]
          %v2118 = vld [vmem:[%s2116 + $0x4] sm:$0x3]
          %v2120 = vunpack.c.l.b16 %v2115
          %v2121 = vpack.c.b16 %v1901, %v2120
          %v2122 = vrot.slane %v2121, 1
          %v2123 = vrot.slane %v1916, 1
          %v2124 = vsel %vm580, %v2122, %v2123
          %v2125 = vrot.slane %v1917, 1
          %v2126 = vsel %vm580, %v2123, %v2125
          %v2127 = vrot.slane %v1918, 1
          %v2128 = vsel %vm580, %v2125, %v2127
          %v2129 = vrot.slane %v1919, 1
          %v2130 = vsel %vm580, %v2127, %v2129
          %v2131 = vrot.slane %v1920, 1
          %v2132 = vsel %vm580, %v2129, %v2131
          %v2133 = vrot.slane %v1921, 1
          %v2134 = vsel %vm580, %v2131, %v2133
          %v2135 = vrot.slane %v1922, 1
          %v2136 = vsel %vm580, %v2133, %v2135
          %v2139 = vunpack.c.l.b16 %v2117
          %v2140 = vunpack.c.l.b16 %v2118
          %v2141 = vpack.c.b16 %v2140, %v2139
          %v2143 = vsel %vm347, %v2124, 0
          %v2146 = vsel %vm347, %v2126, 0
          %v2149 = vsel %vm347, %v2128, 0
          %v2152 = vsel %vm347, %v2130, 0
          %v2155 = vsel %vm347, %v2132, 0
          %v2158 = vsel %vm347, %v2134, 0
          %v2161 = vsel %vm347, %v2136, 0
          %v2164 = vsel %vm369, %v2141, 0
          %2166 = vmatprep.subr.bf16.mxu0 0
          %2167 = vmatpush1.bf16.msra.mxu0 %v2164
          %2168 = vmatprep.subr.bf16.mxu0 0
          %2169 = vmatpush1.bf16.msra.mxu0 0
          %2170 = vmatprep.subr.bf16.mxu0 0
          %2171 = vmatpush1.bf16.msra.mxu0 0
          %2172 = vmatprep.subr.bf16.mxu0 0
          %2173 = vmatpush1.bf16.msra.mxu0 0
          %2174 = vmatprep.subr.bf16.mxu0 0
          %2175 = vmatpush1.bf16.msra.mxu0 0
          %2176 = vmatprep.subr.bf16.mxu0 0
          %2177 = vmatpush1.bf16.msra.mxu0 0
          %2178 = vmatprep.subr.bf16.mxu0 0
          %2179 = vmatpush1.bf16.msra.mxu0 0
          %2180 = vmatprep.subr.bf16.mxu0 0
          %2181 = vmatpush1.bf16.msra.mxu0 0
          %2182 = vmatprep.subr.bf16.mxu0 0
          %2183 = vmatpush1.bf16.msra.mxu0 0
          %2184 = vmatprep.subr.bf16.mxu0 0
          %2185 = vmatpush1.bf16.msra.mxu0 0
          %2186 = vmatprep.subr.bf16.mxu0 0
          %2187 = vmatpush1.bf16.msra.mxu0 0
          %2188 = vmatprep.subr.bf16.mxu0 0
          %2189 = vmatpush1.bf16.msra.mxu0 0
          %2190 = vmatprep.subr.bf16.mxu0 0
          %2191 = vmatpush1.bf16.msra.mxu0 0
          %2192 = vmatprep.subr.bf16.mxu0 0
          %2193 = vmatpush1.bf16.msra.mxu0 0
          %2194 = vmatprep.subr.bf16.mxu0 0
          %2195 = vmatpush1.bf16.msra.mxu0 0
          %2196 = vmatprep.subr.bf16.mxu0 0
          %2197 = vmatpush1.bf16.msra.mxu0 0
          %2198 = vmatprep.mubr.bf16.mxu0 0
          %2199 = vmatmul.mubr.bf16.gmra.mrb[0].mxu0 %v2143
          %v2200 = vpop.f32.mrb[0].mxu0
          %v2201 = vadd.f32 0.0, %v2200
          %v2202 = vpop.f32.mrb[0].mxu0
          %v2203 = vpop.f32.mrb[0].mxu0
          %v2204 = vadd.f32 0.0, %v2203
          %v2205 = vpop.f32.mrb[0].mxu0
          %2206 = vmatprep.mubr.bf16.mxu0 0
          %2207 = vmatmul.mubr.bf16.gmra.mrb[0].mxu0 %v2146
          %v2208 = vpop.f32.mrb[0].mxu0
          %v2209 = vadd.f32 0.0, %v2208
          %v2210 = vpop.f32.mrb[0].mxu0
          %v2211 = vpop.f32.mrb[0].mxu0
          %v2212 = vadd.f32 0.0, %v2211
          %v2213 = vpop.f32.mrb[0].mxu0
          %2214 = vmatprep.mubr.bf16.mxu0 0
          %2215 = vmatmul.mubr.bf16.gmra.mrb[0].mxu0 %v2149
          %v2216 = vpop.f32.mrb[0].mxu0
          %v2217 = vadd.f32 0.0, %v2216
          %v2218 = vpop.f32.mrb[0].mxu0
          %v2219 = vpop.f32.mrb[0].mxu0
          %v2220 = vadd.f32 0.0, %v2219
          %v2221 = vpop.f32.mrb[0].mxu0
          %2222 = vmatprep.mubr.bf16.mxu0 0
          %2223 = vmatmul.mubr.bf16.gmra.mrb[0].mxu0 %v2152
          %v2224 = vpop.f32.mrb[0].mxu0
          %v2225 = vadd.f32 0.0, %v2224
          %v2226 = vpop.f32.mrb[0].mxu0
          %v2227 = vpop.f32.mrb[0].mxu0
          %v2228 = vadd.f32 0.0, %v2227
          %v2229 = vpop.f32.mrb[0].mxu0
          %2230 = vmatprep.mubr.bf16.mxu0 0
          %2231 = vmatmul.mubr.bf16.gmra.mrb[0].mxu0 %v2155
          %v2232 = vpop.f32.mrb[0].mxu0
          %v2233 = vadd.f32 0.0, %v2232
          %v2234 = vpop.f32.mrb[0].mxu0
          %v2235 = vpop.f32.mrb[0].mxu0
          %v2236 = vadd.f32 0.0, %v2235
          %v2237 = vpop.f32.mrb[0].mxu0
          %2238 = vmatprep.mubr.bf16.mxu0 0
          %2239 = vmatmul.mubr.bf16.gmra.mrb[0].mxu0 %v2158
          %v2240 = vpop.f32.mrb[0].mxu0
          %v2241 = vadd.f32 0.0, %v2240
          %v2242 = vpop.f32.mrb[0].mxu0
          %v2243 = vpop.f32.mrb[0].mxu0
          %v2244 = vadd.f32 0.0, %v2243
          %v2245 = vpop.f32.mrb[0].mxu0
          %2246 = vmatprep.mubr.bf16.mxu0 0
          %2247 = vmatmul.mubr.bf16.gmra.mrb[0].mxu0 %v2161
          %v2248 = vpop.f32.mrb[0].mxu0
          %v2249 = vadd.f32 0.0, %v2248
          %v2250 = vpop.f32.mrb[0].mxu0
          %v2251 = vpop.f32.mrb[0].mxu0
          %v2252 = vadd.f32 0.0, %v2251
          %v2253 = vpop.f32.mrb[0].mxu0
          %2254 = vdwg.mxu0
          %v2255 = vadd.f32 %v2101, %v2201
          %v2256 = vadd.f32 %v2102, %v2204
          %v2257 = vadd.f32 %v2103, %v2209
          %v2258 = vadd.f32 %v2104, %v2212
          %v2259 = vadd.f32 %v2105, %v2217
          %v2260 = vadd.f32 %v2106, %v2220
          %v2261 = vadd.f32 %v2107, %v2225
          %v2262 = vadd.f32 %v2108, %v2228
          %v2263 = vadd.f32 %v2109, %v2233
          %v2264 = vadd.f32 %v2110, %v2236
          %v2265 = vadd.f32 %v2111, %v2241
          %v2266 = vadd.f32 %v2112, %v2244
          %v2267 = vadd.f32 %v2113, %v2249
          %v2268 = vadd.f32 %v2114, %v2252
          %v2269 = vld [vmem:[%s1682 + $0x38] sm:$0x3]
          %s2270 = scalar_lea.vmem %s1, 88
          %v2271 = vld [vmem:[%s2270] sm:$0xf]
          %v2272 = vld [vmem:[%s2270 + $0x4] sm:$0x3]
          %v2274 = vunpack.c.l.b16 %v2269
          %v2275 = vpack.c.b16 %v2274, %v2274
          %v2277 = vshrl.u32 %v2121, 16
          %v2279 = vrot.slane %v2277, 1
          %v2280 = vshll.u32 %v2121, 16
          %v2282 = vrot.slane %v2280, 2
          %v2283 = vor.u32 %v2279, %v2282
          %v2284 = vrot.slane %v1935, 1
          %v2285 = vrot.slane %v1931, 2
          %v2286 = vor.u32 %v2284, %v2285
          %v2287 = vsel %vm735, %v2283, %v2286
          %v2288 = vrot.slane %v1943, 1
          %v2289 = vrot.slane %v1939, 2
          %v2290 = vor.u32 %v2288, %v2289
          %v2291 = vsel %vm735, %v2286, %v2290
          %v2292 = vrot.slane %v1951, 1
          %v2293 = vrot.slane %v1947, 2
          %v2294 = vor.u32 %v2292, %v2293
          %v2295 = vsel %vm735, %v2290, %v2294
          %v2296 = vrot.slane %v1959, 1
          %v2297 = vrot.slane %v1955, 2
          %v2298 = vor.u32 %v2296, %v2297
          %v2299 = vsel %vm735, %v2294, %v2298
          %v2300 = vrot.slane %v1967, 1
          %v2301 = vrot.slane %v1963, 2
          %v2302 = vor.u32 %v2300, %v2301
          %v2303 = vsel %vm735, %v2298, %v2302
          %v2304 = vrot.slane %v1975, 1
          %v2305 = vrot.slane %v1971, 2
          %v2306 = vor.u32 %v2304, %v2305
          %v2307 = vsel %vm735, %v2302, %v2306
          %v2309 = vshrl.u32 %v2275, 16
          %v2311 = vrot.slane %v2309, 1
          %v2312 = vshll.u32 %v2275, 16
          %v2314 = vrot.slane %v2312, 2
          %v2315 = vor.u32 %v2311, %v2314
          %v2316 = vsel %vm735, %v2306, %v2315
          %v2319 = vunpack.c.l.b16 %v2271
          %v2320 = vunpack.c.l.b16 %v2272
          %v2321 = vpack.c.b16 %v2320, %v2319
          %v2323 = vsel %vm347, %v2287, 0
          %v2326 = vsel %vm347, %v2291, 0
          %v2329 = vsel %vm347, %v2295, 0
          %v2332 = vsel %vm347, %v2299, 0
          %v2335 = vsel %vm347, %v2303, 0
          %v2338 = vsel %vm347, %v2307, 0
          %v2341 = vsel %vm347, %v2316, 0
          %v2344 = vsel %vm369, %v2321, 0
          %2346 = vmatprep.subr.bf16.mxu0 0
          %2347 = vmatpush1.bf16.msra.mxu0 %v2344
          %2348 = vmatprep.subr.bf16.mxu0 0
          %2349 = vmatpush1.bf16.msra.mxu0 0
          %2350 = vmatprep.subr.bf16.mxu0 0
          %2351 = vmatpush1.bf16.msra.mxu0 0
          %2352 = vmatprep.subr.bf16.mxu0 0
          %2353 = vmatpush1.bf16.msra.mxu0 0
          %2354 = vmatprep.subr.bf16.mxu0 0
          %2355 = vmatpush1.bf16.msra.mxu0 0
          %2356 = vmatprep.subr.bf16.mxu0 0
          %2357 = vmatpush1.bf16.msra.mxu0 0
          %2358 = vmatprep.subr.bf16.mxu0 0
          %2359 = vmatpush1.bf16.msra.mxu0 0
          %2360 = vmatprep.subr.bf16.mxu0 0
          %2361 = vmatpush1.bf16.msra.mxu0 0
          %2362 = vmatprep.subr.bf16.mxu0 0
          %2363 = vmatpush1.bf16.msra.mxu0 0
          %2364 = vmatprep.subr.bf16.mxu0 0
          %2365 = vmatpush1.bf16.msra.mxu0 0
          %2366 = vmatprep.subr.bf16.mxu0 0
          %2367 = vmatpush1.bf16.msra.mxu0 0
          %2368 = vmatprep.subr.bf16.mxu0 0
          %2369 = vmatpush1.bf16.msra.mxu0 0
          %2370 = vmatprep.subr.bf16.mxu0 0
          %2371 = vmatpush1.bf16.msra.mxu0 0
          %2372 = vmatprep.subr.bf16.mxu0 0
          %2373 = vmatpush1.bf16.msra.mxu0 0
          %2374 = vmatprep.subr.bf16.mxu0 0
          %2375 = vmatpush1.bf16.msra.mxu0 0
          %2376 = vmatprep.subr.bf16.mxu0 0
          %2377 = vmatpush1.bf16.msra.mxu0 0
          %2378 = vmatprep.mubr.bf16.mxu0 0
          %2379 = vmatmul.mubr.bf16.gmra.mrb[0].mxu0 %v2323
          %v2380 = vpop.f32.mrb[0].mxu0
          %v2381 = vadd.f32 0.0, %v2380
          %v2382 = vpop.f32.mrb[0].mxu0
          %v2383 = vpop.f32.mrb[0].mxu0
          %v2384 = vadd.f32 0.0, %v2383
          %v2385 = vpop.f32.mrb[0].mxu0
          %2386 = vmatprep.mubr.bf16.mxu0 0
          %2387 = vmatmul.mubr.bf16.gmra.mrb[0].mxu0 %v2326
          %v2388 = vpop.f32.mrb[0].mxu0
          %v2389 = vadd.f32 0.0, %v2388
          %v2390 = vpop.f32.mrb[0].mxu0
          %v2391 = vpop.f32.mrb[0].mxu0
          %v2392 = vadd.f32 0.0, %v2391
          %v2393 = vpop.f32.mrb[0].mxu0
          %2394 = vmatprep.mubr.bf16.mxu0 0
          %2395 = vmatmul.mubr.bf16.gmra.mrb[0].mxu0 %v2329
          %v2396 = vpop.f32.mrb[0].mxu0
          %v2397 = vadd.f32 0.0, %v2396
          %v2398 = vpop.f32.mrb[0].mxu0
          %v2399 = vpop.f32.mrb[0].mxu0
          %v2400 = vadd.f32 0.0, %v2399
          %v2401 = vpop.f32.mrb[0].mxu0
          %2402 = vmatprep.mubr.bf16.mxu0 0
          %2403 = vmatmul.mubr.bf16.gmra.mrb[0].mxu0 %v2332
          %v2404 = vpop.f32.mrb[0].mxu0
          %v2405 = vadd.f32 0.0, %v2404
          %v2406 = vpop.f32.mrb[0].mxu0
          %v2407 = vpop.f32.mrb[0].mxu0
          %v2408 = vadd.f32 0.0, %v2407
          %v2409 = vpop.f32.mrb[0].mxu0
          %2410 = vmatprep.mubr.bf16.mxu0 0
          %2411 = vmatmul.mubr.bf16.gmra.mrb[0].mxu0 %v2335
          %v2412 = vpop.f32.mrb[0].mxu0
          %v2413 = vadd.f32 0.0, %v2412
          %v2414 = vpop.f32.mrb[0].mxu0
          %v2415 = vpop.f32.mrb[0].mxu0
          %v2416 = vadd.f32 0.0, %v2415
          %v2417 = vpop.f32.mrb[0].mxu0
          %2418 = vmatprep.mubr.bf16.mxu0 0
          %2419 = vmatmul.mubr.bf16.gmra.mrb[0].mxu0 %v2338
          %v2420 = vpop.f32.mrb[0].mxu0
          %v2421 = vadd.f32 0.0, %v2420
          %v2422 = vpop.f32.mrb[0].mxu0
          %v2423 = vpop.f32.mrb[0].mxu0
          %v2424 = vadd.f32 0.0, %v2423
          %v2425 = vpop.f32.mrb[0].mxu0
          %2426 = vmatprep.mubr.bf16.mxu0 0
          %2427 = vmatmul.mubr.bf16.gmra.mrb[0].mxu0 %v2341
          %v2428 = vpop.f32.mrb[0].mxu0
          %v2429 = vadd.f32 0.0, %v2428
          %v2430 = vpop.f32.mrb[0].mxu0
          %v2431 = vpop.f32.mrb[0].mxu0
          %v2432 = vadd.f32 0.0, %v2431
          %v2433 = vpop.f32.mrb[0].mxu0
          %2434 = vdwg.mxu0
          %v2435 = vadd.f32 %v2255, %v2381
          %v2436 = vadd.f32 %v2256, %v2384
          %v2437 = vadd.f32 %v2257, %v2389
          %v2438 = vadd.f32 %v2258, %v2392
          %v2439 = vadd.f32 %v2259, %v2397
          %v2440 = vadd.f32 %v2260, %v2400
          %v2441 = vadd.f32 %v2261, %v2405
          %v2442 = vadd.f32 %v2262, %v2408
          %v2443 = vadd.f32 %v2263, %v2413
          %v2444 = vadd.f32 %v2264, %v2416
          %v2445 = vadd.f32 %v2265, %v2421
          %v2446 = vadd.f32 %v2266, %v2424
          %v2447 = vadd.f32 %v2267, %v2429
          %v2448 = vadd.f32 %v2268, %v2432
          %s2449 = sadd.s32 %s219, 3
          %s2450 = smul.u32 %s2449, 15
          %s2451 = smul.addr %s2450, 4
          %s2452 = scalar_lea.vmem %s197, %s2451
          %v2453 = vld [vmem:[%s2452] sm:$0xf]
          %v2454 = vld [vmem:[%s2452 + $0x4] sm:$0xf]
          %v2455 = vld [vmem:[%s2452 + $0x8] sm:$0xf]
          %v2456 = vld [vmem:[%s2452 + $0xc] sm:$0xf]
          %v2457 = vld [vmem:[%s2452 + $0x10] sm:$0xf]
          %v2458 = vld [vmem:[%s2452 + $0x14] sm:$0xf]
          %v2459 = vld [vmem:[%s2452 + $0x18] sm:$0xf]
          %v2460 = vld [vmem:[%s2452 + $0x1c] sm:$0xf]
          %v2461 = vld [vmem:[%s2452 + $0x20] sm:$0xf]
          %v2462 = vld [vmem:[%s2452 + $0x24] sm:$0xf]
          %v2463 = vld [vmem:[%s2452 + $0x28] sm:$0xf]
          %v2464 = vld [vmem:[%s2452 + $0x2c] sm:$0xf]
          %v2465 = vld [vmem:[%s2452 + $0x30] sm:$0xf]
          %v2466 = vld [vmem:[%s2452 + $0x34] sm:$0xf]
          %s2467 = scalar_lea.vmem %s1, 96
          %v2468 = vld [vmem:[%s2467] sm:$0xf]
          %v2469 = vld [vmem:[%s2467 + $0x4] sm:$0x3]
          %v2484 = vunpack.c.l.b16 %v2453
          %v2485 = vunpack.c.l.b16 %v2454
          %v2486 = vunpack.c.l.b16 %v2455
          %v2487 = vunpack.c.l.b16 %v2456
          %v2488 = vunpack.c.l.b16 %v2457
          %v2489 = vunpack.c.l.b16 %v2458
          %v2490 = vunpack.c.l.b16 %v2459
          %v2491 = vunpack.c.l.b16 %v2460
          %v2492 = vunpack.c.l.b16 %v2461
          %v2493 = vunpack.c.l.b16 %v2462
          %v2494 = vunpack.c.l.b16 %v2463
          %v2495 = vunpack.c.l.b16 %v2464
          %v2496 = vunpack.c.l.b16 %v2465
          %v2497 = vunpack.c.l.b16 %v2466
          %v2498 = vpack.c.b16 %v2485, %v2484
          %v2499 = vpack.c.b16 %v2487, %v2486
          %v2500 = vpack.c.b16 %v2489, %v2488
          %v2501 = vpack.c.b16 %v2491, %v2490
          %v2502 = vpack.c.b16 %v2493, %v2492
          %v2503 = vpack.c.b16 %v2495, %v2494
          %v2504 = vpack.c.b16 %v2497, %v2496
          %v2507 = vunpack.c.l.b16 %v2468
          %v2508 = vunpack.c.l.b16 %v2469
          %v2509 = vpack.c.b16 %v2508, %v2507
          %v2511 = vsel %vm347, %v2498, 0
          %v2514 = vsel %vm347, %v2499, 0
          %v2517 = vsel %vm347, %v2500, 0
          %v2520 = vsel %vm347, %v2501, 0
          %v2523 = vsel %vm347, %v2502, 0
          %v2526 = vsel %vm347, %v2503, 0
          %v2529 = vsel %vm347, %v2504, 0
          %v2532 = vsel %vm369, %v2509, 0
          %2534 = vmatprep.subr.bf16.mxu0 0
          %2535 = vmatpush1.bf16.msra.mxu0 %v2532
          %2536 = vmatprep.subr.bf16.mxu0 0
          %2537 = vmatpush1.bf16.msra.mxu0 0
          %2538 = vmatprep.subr.bf16.mxu0 0
          %2539 = vmatpush1.bf16.msra.mxu0 0
          %2540 = vmatprep.subr.bf16.mxu0 0
          %2541 = vmatpush1.bf16.msra.mxu0 0
          %2542 = vmatprep.subr.bf16.mxu0 0
          %2543 = vmatpush1.bf16.msra.mxu0 0
          %2544 = vmatprep.subr.bf16.mxu0 0
          %2545 = vmatpush1.bf16.msra.mxu0 0
          %2546 = vmatprep.subr.bf16.mxu0 0
          %2547 = vmatpush1.bf16.msra.mxu0 0
          %2548 = vmatprep.subr.bf16.mxu0 0
          %2549 = vmatpush1.bf16.msra.mxu0 0
          %2550 = vmatprep.subr.bf16.mxu0 0
          %2551 = vmatpush1.bf16.msra.mxu0 0
          %2552 = vmatprep.subr.bf16.mxu0 0
          %2553 = vmatpush1.bf16.msra.mxu0 0
          %2554 = vmatprep.subr.bf16.mxu0 0
          %2555 = vmatpush1.bf16.msra.mxu0 0
          %2556 = vmatprep.subr.bf16.mxu0 0
          %2557 = vmatpush1.bf16.msra.mxu0 0
          %2558 = vmatprep.subr.bf16.mxu0 0
          %2559 = vmatpush1.bf16.msra.mxu0 0
          %2560 = vmatprep.subr.bf16.mxu0 0
          %2561 = vmatpush1.bf16.msra.mxu0 0
          %2562 = vmatprep.subr.bf16.mxu0 0
          %2563 = vmatpush1.bf16.msra.mxu0 0
          %2564 = vmatprep.subr.bf16.mxu0 0
          %2565 = vmatpush1.bf16.msra.mxu0 0
          %2566 = vmatprep.mubr.bf16.mxu0 0
          %2567 = vmatmul.mubr.bf16.gmra.mrb[0].mxu0 %v2511
          %v2568 = vpop.f32.mrb[0].mxu0
          %v2569 = vadd.f32 0.0, %v2568
          %v2570 = vpop.f32.mrb[0].mxu0
          %v2571 = vpop.f32.mrb[0].mxu0
          %v2572 = vadd.f32 0.0, %v2571
          %v2573 = vpop.f32.mrb[0].mxu0
          %2574 = vmatprep.mubr.bf16.mxu0 0
          %2575 = vmatmul.mubr.bf16.gmra.mrb[0].mxu0 %v2514
          %v2576 = vpop.f32.mrb[0].mxu0
          %v2577 = vadd.f32 0.0, %v2576
          %v2578 = vpop.f32.mrb[0].mxu0
          %v2579 = vpop.f32.mrb[0].mxu0
          %v2580 = vadd.f32 0.0, %v2579
          %v2581 = vpop.f32.mrb[0].mxu0
          %2582 = vmatprep.mubr.bf16.mxu0 0
          %2583 = vmatmul.mubr.bf16.gmra.mrb[0].mxu0 %v2517
          %v2584 = vpop.f32.mrb[0].mxu0
          %v2585 = vadd.f32 0.0, %v2584
          %v2586 = vpop.f32.mrb[0].mxu0
          %v2587 = vpop.f32.mrb[0].mxu0
          %v2588 = vadd.f32 0.0, %v2587
          %v2589 = vpop.f32.mrb[0].mxu0
          %2590 = vmatprep.mubr.bf16.mxu0 0
          %2591 = vmatmul.mubr.bf16.gmra.mrb[0].mxu0 %v2520
          %v2592 = vpop.f32.mrb[0].mxu0
          %v2593 = vadd.f32 0.0, %v2592
          %v2594 = vpop.f32.mrb[0].mxu0
          %v2595 = vpop.f32.mrb[0].mxu0
          %v2596 = vadd.f32 0.0, %v2595
          %v2597 = vpop.f32.mrb[0].mxu0
          %2598 = vmatprep.mubr.bf16.mxu0 0
          %2599 = vmatmul.mubr.bf16.gmra.mrb[0].mxu0 %v2523
          %v2600 = vpop.f32.mrb[0].mxu0
          %v2601 = vadd.f32 0.0, %v2600
          %v2602 = vpop.f32.mrb[0].mxu0
          %v2603 = vpop.f32.mrb[0].mxu0
          %v2604 = vadd.f32 0.0, %v2603
          %v2605 = vpop.f32.mrb[0].mxu0
          %2606 = vmatprep.mubr.bf16.mxu0 0
          %2607 = vmatmul.mubr.bf16.gmra.mrb[0].mxu0 %v2526
          %v2608 = vpop.f32.mrb[0].mxu0
          %v2609 = vadd.f32 0.0, %v2608
          %v2610 = vpop.f32.mrb[0].mxu0
          %v2611 = vpop.f32.mrb[0].mxu0
          %v2612 = vadd.f32 0.0, %v2611
          %v2613 = vpop.f32.mrb[0].mxu0
          %2614 = vmatprep.mubr.bf16.mxu0 0
          %2615 = vmatmul.mubr.bf16.gmra.mrb[0].mxu0 %v2529
          %v2616 = vpop.f32.mrb[0].mxu0
          %v2617 = vadd.f32 0.0, %v2616
          %v2618 = vpop.f32.mrb[0].mxu0
          %v2619 = vpop.f32.mrb[0].mxu0
          %v2620 = vadd.f32 0.0, %v2619
          %v2621 = vpop.f32.mrb[0].mxu0
          %2622 = vdwg.mxu0
          %v2623 = vadd.f32 %v2435, %v2569
          %v2624 = vadd.f32 %v2436, %v2572
          %v2625 = vadd.f32 %v2437, %v2577
          %v2626 = vadd.f32 %v2438, %v2580
          %v2627 = vadd.f32 %v2439, %v2585
          %v2628 = vadd.f32 %v2440, %v2588
          %v2629 = vadd.f32 %v2441, %v2593
          %v2630 = vadd.f32 %v2442, %v2596
          %v2631 = vadd.f32 %v2443, %v2601
          %v2632 = vadd.f32 %v2444, %v2604
          %v2633 = vadd.f32 %v2445, %v2609
          %v2634 = vadd.f32 %v2446, %v2612
          %v2635 = vadd.f32 %v2447, %v2617
          %v2636 = vadd.f32 %v2448, %v2620
          %v2637 = vld [vmem:[%s2452] sm:$0xf]
          %v2638 = vld [vmem:[%s2452 + $0x4] sm:$0xf]
          %v2639 = vld [vmem:[%s2452 + $0x8] sm:$0xf]
          %v2640 = vld [vmem:[%s2452 + $0xc] sm:$0xf]
          %v2641 = vld [vmem:[%s2452 + $0x10] sm:$0xf]
          %v2642 = vld [vmem:[%s2452 + $0x14] sm:$0xf]
          %v2643 = vld [vmem:[%s2452 + $0x18] sm:$0xf]
          %v2644 = vld [vmem:[%s2452 + $0x1c] sm:$0xf]
          %v2645 = vld [vmem:[%s2452 + $0x20] sm:$0xf]
          %v2646 = vld [vmem:[%s2452 + $0x24] sm:$0xf]
          %v2647 = vld [vmem:[%s2452 + $0x28] sm:$0xf]
          %v2648 = vld [vmem:[%s2452 + $0x2c] sm:$0xf]
          %v2649 = vld [vmem:[%s2452 + $0x30] sm:$0xf]
          %v2650 = vld [vmem:[%s2452 + $0x34] sm:$0xf]
          %v2651 = vld [vmem:[%s2452 + $0x38] sm:$0x1]
          %s2652 = scalar_lea.vmem %s1, 104
          %v2653 = vld [vmem:[%s2652] sm:$0xf]
          %v2654 = vld [vmem:[%s2652 + $0x4] sm:$0x3]
          %v2670 = vunpack.c.l.b16 %v2637
          %v2671 = vunpack.c.l.b16 %v2638
          %v2672 = vunpack.c.l.b16 %v2639
          %v2673 = vunpack.c.l.b16 %v2640
          %v2674 = vunpack.c.l.b16 %v2641
          %v2675 = vunpack.c.l.b16 %v2642
          %v2676 = vunpack.c.l.b16 %v2643
          %v2677 = vunpack.c.l.b16 %v2644
          %v2678 = vunpack.c.l.b16 %v2645
          %v2679 = vunpack.c.l.b16 %v2646
          %v2680 = vunpack.c.l.b16 %v2647
          %v2681 = vunpack.c.l.b16 %v2648
          %v2682 = vunpack.c.l.b16 %v2649
          %v2683 = vunpack.c.l.b16 %v2650
          %v2684 = vunpack.c.l.b16 %v2651
          %v2685 = vpack.c.b16 %v2671, %v2670
          %v2686 = vpack.c.b16 %v2673, %v2672
          %v2687 = vpack.c.b16 %v2675, %v2674
          %v2688 = vpack.c.b16 %v2677, %v2676
          %v2689 = vpack.c.b16 %v2679, %v2678
          %v2690 = vpack.c.b16 %v2681, %v2680
          %v2691 = vpack.c.b16 %v2683, %v2682
          %v2692 = vpack.c.b16 %v2684, %v2684
          %v2694 = vshrl.u32 %v2685, 16
          %v2696 = vshll.u32 %v2685, 16
          %v2698 = vrot.slane %v2696, 1
          %v2699 = vor.u32 %v2694, %v2698
          %v2701 = vshll.u32 %v2686, 16
          %v2703 = vrot.slane %v2701, 1
          %v2704 = vsel %vm281, %v2699, %v2703
          %v2705 = vshrl.u32 %v2686, 16
          %v2707 = vor.u32 %v2705, %v2703
          %v2709 = vshll.u32 %v2687, 16
          %v2711 = vrot.slane %v2709, 1
          %v2712 = vsel %vm281, %v2707, %v2711
          %v2713 = vshrl.u32 %v2687, 16
          %v2715 = vor.u32 %v2713, %v2711
          %v2717 = vshll.u32 %v2688, 16
          %v2719 = vrot.slane %v2717, 1
          %v2720 = vsel %vm281, %v2715, %v2719
          %v2721 = vshrl.u32 %v2688, 16
          %v2723 = vor.u32 %v2721, %v2719
          %v2725 = vshll.u32 %v2689, 16
          %v2727 = vrot.slane %v2725, 1
          %v2728 = vsel %vm281, %v2723, %v2727
          %v2729 = vshrl.u32 %v2689, 16
          %v2731 = vor.u32 %v2729, %v2727
          %v2733 = vshll.u32 %v2690, 16
          %v2735 = vrot.slane %v2733, 1
          %v2736 = vsel %vm281, %v2731, %v2735
          %v2737 = vshrl.u32 %v2690, 16
          %v2739 = vor.u32 %v2737, %v2735
          %v2741 = vshll.u32 %v2691, 16
          %v2743 = vrot.slane %v2741, 1
          %v2744 = vsel %vm281, %v2739, %v2743
          %v2745 = vshrl.u32 %v2691, 16
          %v2747 = vor.u32 %v2745, %v2743
          %v2749 = vshll.u32 %v2692, 16
          %v2751 = vrot.slane %v2749, 1
          %v2752 = vsel %vm281, %v2747, %v2751
          %v2755 = vunpack.c.l.b16 %v2653
          %v2756 = vunpack.c.l.b16 %v2654
          %v2757 = vpack.c.b16 %v2756, %v2755
          %v2759 = vsel %vm347, %v2704, 0
          %v2762 = vsel %vm347, %v2712, 0
          %v2765 = vsel %vm347, %v2720, 0
          %v2768 = vsel %vm347, %v2728, 0
          %v2771 = vsel %vm347, %v2736, 0
          %v2774 = vsel %vm347, %v2744, 0
          %v2777 = vsel %vm347, %v2752, 0
          %v2780 = vsel %vm369, %v2757, 0
          %2782 = vmatprep.subr.bf16.mxu0 0
          %2783 = vmatpush1.bf16.msra.mxu0 %v2780
          %2784 = vmatprep.subr.bf16.mxu0 0
          %2785 = vmatpush1.bf16.msra.mxu0 0
          %2786 = vmatprep.subr.bf16.mxu0 0
          %2787 = vmatpush1.bf16.msra.mxu0 0
          %2788 = vmatprep.subr.bf16.mxu0 0
          %2789 = vmatpush1.bf16.msra.mxu0 0
          %2790 = vmatprep.subr.bf16.mxu0 0
          %2791 = vmatpush1.bf16.msra.mxu0 0
          %2792 = vmatprep.subr.bf16.mxu0 0
          %2793 = vmatpush1.bf16.msra.mxu0 0
          %2794 = vmatprep.subr.bf16.mxu0 0
          %2795 = vmatpush1.bf16.msra.mxu0 0
          %2796 = vmatprep.subr.bf16.mxu0 0
          %2797 = vmatpush1.bf16.msra.mxu0 0
          %2798 = vmatprep.subr.bf16.mxu0 0
          %2799 = vmatpush1.bf16.msra.mxu0 0
          %2800 = vmatprep.subr.bf16.mxu0 0
          %2801 = vmatpush1.bf16.msra.mxu0 0
          %2802 = vmatprep.subr.bf16.mxu0 0
          %2803 = vmatpush1.bf16.msra.mxu0 0
          %2804 = vmatprep.subr.bf16.mxu0 0
          %2805 = vmatpush1.bf16.msra.mxu0 0
          %2806 = vmatprep.subr.bf16.mxu0 0
          %2807 = vmatpush1.bf16.msra.mxu0 0
          %2808 = vmatprep.subr.bf16.mxu0 0
          %2809 = vmatpush1.bf16.msra.mxu0 0
          %2810 = vmatprep.subr.bf16.mxu0 0
          %2811 = vmatpush1.bf16.msra.mxu0 0
          %2812 = vmatprep.subr.bf16.mxu0 0
          %2813 = vmatpush1.bf16.msra.mxu0 0
          %2814 = vmatprep.mubr.bf16.mxu0 0
          %2815 = vmatmul.mubr.bf16.gmra.mrb[0].mxu0 %v2759
          %v2816 = vpop.f32.mrb[0].mxu0
          %v2817 = vadd.f32 0.0, %v2816
          %v2818 = vpop.f32.mrb[0].mxu0
          %v2819 = vpop.f32.mrb[0].mxu0
          %v2820 = vadd.f32 0.0, %v2819
          %v2821 = vpop.f32.mrb[0].mxu0
          %2822 = vmatprep.mubr.bf16.mxu0 0
          %2823 = vmatmul.mubr.bf16.gmra.mrb[0].mxu0 %v2762
          %v2824 = vpop.f32.mrb[0].mxu0
          %v2825 = vadd.f32 0.0, %v2824
          %v2826 = vpop.f32.mrb[0].mxu0
          %v2827 = vpop.f32.mrb[0].mxu0
          %v2828 = vadd.f32 0.0, %v2827
          %v2829 = vpop.f32.mrb[0].mxu0
          %2830 = vmatprep.mubr.bf16.mxu0 0
          %2831 = vmatmul.mubr.bf16.gmra.mrb[0].mxu0 %v2765
          %v2832 = vpop.f32.mrb[0].mxu0
          %v2833 = vadd.f32 0.0, %v2832
          %v2834 = vpop.f32.mrb[0].mxu0
          %v2835 = vpop.f32.mrb[0].mxu0
          %v2836 = vadd.f32 0.0, %v2835
          %v2837 = vpop.f32.mrb[0].mxu0
          %2838 = vmatprep.mubr.bf16.mxu0 0
          %2839 = vmatmul.mubr.bf16.gmra.mrb[0].mxu0 %v2768
          %v2840 = vpop.f32.mrb[0].mxu0
          %v2841 = vadd.f32 0.0, %v2840
          %v2842 = vpop.f32.mrb[0].mxu0
          %v2843 = vpop.f32.mrb[0].mxu0
          %v2844 = vadd.f32 0.0, %v2843
          %v2845 = vpop.f32.mrb[0].mxu0
          %2846 = vmatprep.mubr.bf16.mxu0 0
          %2847 = vmatmul.mubr.bf16.gmra.mrb[0].mxu0 %v2771
          %v2848 = vpop.f32.mrb[0].mxu0
          %v2849 = vadd.f32 0.0, %v2848
          %v2850 = vpop.f32.mrb[0].mxu0
          %v2851 = vpop.f32.mrb[0].mxu0
          %v2852 = vadd.f32 0.0, %v2851
          %v2853 = vpop.f32.mrb[0].mxu0
          %2854 = vmatprep.mubr.bf16.mxu0 0
          %2855 = vmatmul.mubr.bf16.gmra.mrb[0].mxu0 %v2774
          %v2856 = vpop.f32.mrb[0].mxu0
          %v2857 = vadd.f32 0.0, %v2856
          %v2858 = vpop.f32.mrb[0].mxu0
          %v2859 = vpop.f32.mrb[0].mxu0
          %v2860 = vadd.f32 0.0, %v2859
          %v2861 = vpop.f32.mrb[0].mxu0
          %2862 = vmatprep.mubr.bf16.mxu0 0
          %2863 = vmatmul.mubr.bf16.gmra.mrb[0].mxu0 %v2777
          %v2864 = vpop.f32.mrb[0].mxu0
          %v2865 = vadd.f32 0.0, %v2864
          %v2866 = vpop.f32.mrb[0].mxu0
          %v2867 = vpop.f32.mrb[0].mxu0
          %v2868 = vadd.f32 0.0, %v2867
          %v2869 = vpop.f32.mrb[0].mxu0
          %2870 = vdwg.mxu0
          %v2871 = vadd.f32 %v2623, %v2817
          %v2872 = vadd.f32 %v2624, %v2820
          %v2873 = vadd.f32 %v2625, %v2825
          %v2874 = vadd.f32 %v2626, %v2828
          %v2875 = vadd.f32 %v2627, %v2833
          %v2876 = vadd.f32 %v2628, %v2836
          %v2877 = vadd.f32 %v2629, %v2841
          %v2878 = vadd.f32 %v2630, %v2844
          %v2879 = vadd.f32 %v2631, %v2849
          %v2880 = vadd.f32 %v2632, %v2852
          %v2881 = vadd.f32 %v2633, %v2857
          %v2882 = vadd.f32 %v2634, %v2860
          %v2883 = vadd.f32 %v2635, %v2865
          %v2884 = vadd.f32 %v2636, %v2868
          %v2885 = vld [vmem:[%s2452] sm:$0xe]
          %s2886 = scalar_lea.vmem %s1, 112
          %v2887 = vld [vmem:[%s2886] sm:$0xf]
          %v2888 = vld [vmem:[%s2886 + $0x4] sm:$0x3]
          %v2890 = vunpack.c.l.b16 %v2885
          %v2891 = vpack.c.b16 %v2671, %v2890
          %v2892 = vrot.slane %v2891, 1
          %v2893 = vrot.slane %v2686, 1
          %v2894 = vsel %vm580, %v2892, %v2893
          %v2895 = vrot.slane %v2687, 1
          %v2896 = vsel %vm580, %v2893, %v2895
          %v2897 = vrot.slane %v2688, 1
          %v2898 = vsel %vm580, %v2895, %v2897
          %v2899 = vrot.slane %v2689, 1
          %v2900 = vsel %vm580, %v2897, %v2899
          %v2901 = vrot.slane %v2690, 1
          %v2902 = vsel %vm580, %v2899, %v2901
          %v2903 = vrot.slane %v2691, 1
          %v2904 = vsel %vm580, %v2901, %v2903
          %v2905 = vrot.slane %v2692, 1
          %v2906 = vsel %vm580, %v2903, %v2905
          %v2909 = vunpack.c.l.b16 %v2887
          %v2910 = vunpack.c.l.b16 %v2888
          %v2911 = vpack.c.b16 %v2910, %v2909
          %v2913 = vsel %vm347, %v2894, 0
          %v2916 = vsel %vm347, %v2896, 0
          %v2919 = vsel %vm347, %v2898, 0
          %v2922 = vsel %vm347, %v2900, 0
          %v2925 = vsel %vm347, %v2902, 0
          %v2928 = vsel %vm347, %v2904, 0
          %v2931 = vsel %vm347, %v2906, 0
          %v2934 = vsel %vm369, %v2911, 0
          %2936 = vmatprep.subr.bf16.mxu0 0
          %2937 = vmatpush1.bf16.msra.mxu0 %v2934
          %2938 = vmatprep.subr.bf16.mxu0 0
          %2939 = vmatpush1.bf16.msra.mxu0 0
          %2940 = vmatprep.subr.bf16.mxu0 0
          %2941 = vmatpush1.bf16.msra.mxu0 0
          %2942 = vmatprep.subr.bf16.mxu0 0
          %2943 = vmatpush1.bf16.msra.mxu0 0
          %2944 = vmatprep.subr.bf16.mxu0 0
          %2945 = vmatpush1.bf16.msra.mxu0 0
          %2946 = vmatprep.subr.bf16.mxu0 0
          %2947 = vmatpush1.bf16.msra.mxu0 0
          %2948 = vmatprep.subr.bf16.mxu0 0
          %2949 = vmatpush1.bf16.msra.mxu0 0
          %2950 = vmatprep.subr.bf16.mxu0 0
          %2951 = vmatpush1.bf16.msra.mxu0 0
          %2952 = vmatprep.subr.bf16.mxu0 0
          %2953 = vmatpush1.bf16.msra.mxu0 0
          %2954 = vmatprep.subr.bf16.mxu0 0
          %2955 = vmatpush1.bf16.msra.mxu0 0
          %2956 = vmatprep.subr.bf16.mxu0 0
          %2957 = vmatpush1.bf16.msra.mxu0 0
          %2958 = vmatprep.subr.bf16.mxu0 0
          %2959 = vmatpush1.bf16.msra.mxu0 0
          %2960 = vmatprep.subr.bf16.mxu0 0
          %2961 = vmatpush1.bf16.msra.mxu0 0
          %2962 = vmatprep.subr.bf16.mxu0 0
          %2963 = vmatpush1.bf16.msra.mxu0 0
          %2964 = vmatprep.subr.bf16.mxu0 0
          %2965 = vmatpush1.bf16.msra.mxu0 0
          %2966 = vmatprep.subr.bf16.mxu0 0
          %2967 = vmatpush1.bf16.msra.mxu0 0
          %2968 = vmatprep.mubr.bf16.mxu0 0
          %2969 = vmatmul.mubr.bf16.gmra.mrb[0].mxu0 %v2913
          %v2970 = vpop.f32.mrb[0].mxu0
          %v2971 = vadd.f32 0.0, %v2970
          %v2972 = vpop.f32.mrb[0].mxu0
          %v2973 = vpop.f32.mrb[0].mxu0
          %v2974 = vadd.f32 0.0, %v2973
          %v2975 = vpop.f32.mrb[0].mxu0
          %2976 = vmatprep.mubr.bf16.mxu0 0
          %2977 = vmatmul.mubr.bf16.gmra.mrb[0].mxu0 %v2916
          %v2978 = vpop.f32.mrb[0].mxu0
          %v2979 = vadd.f32 0.0, %v2978
          %v2980 = vpop.f32.mrb[0].mxu0
          %v2981 = vpop.f32.mrb[0].mxu0
          %v2982 = vadd.f32 0.0, %v2981
          %v2983 = vpop.f32.mrb[0].mxu0
          %2984 = vmatprep.mubr.bf16.mxu0 0
          %2985 = vmatmul.mubr.bf16.gmra.mrb[0].mxu0 %v2919
          %v2986 = vpop.f32.mrb[0].mxu0
          %v2987 = vadd.f32 0.0, %v2986
          %v2988 = vpop.f32.mrb[0].mxu0
          %v2989 = vpop.f32.mrb[0].mxu0
          %v2990 = vadd.f32 0.0, %v2989
          %v2991 = vpop.f32.mrb[0].mxu0
          %2992 = vmatprep.mubr.bf16.mxu0 0
          %2993 = vmatmul.mubr.bf16.gmra.mrb[0].mxu0 %v2922
          %v2994 = vpop.f32.mrb[0].mxu0
          %v2995 = vadd.f32 0.0, %v2994
          %v2996 = vpop.f32.mrb[0].mxu0
          %v2997 = vpop.f32.mrb[0].mxu0
          %v2998 = vadd.f32 0.0, %v2997
          %v2999 = vpop.f32.mrb[0].mxu0
          %3000 = vmatprep.mubr.bf16.mxu0 0
          %3001 = vmatmul.mubr.bf16.gmra.mrb[0].mxu0 %v2925
          %v3002 = vpop.f32.mrb[0].mxu0
          %v3003 = vadd.f32 0.0, %v3002
          %v3004 = vpop.f32.mrb[0].mxu0
          %v3005 = vpop.f32.mrb[0].mxu0
          %v3006 = vadd.f32 0.0, %v3005
          %v3007 = vpop.f32.mrb[0].mxu0
          %3008 = vmatprep.mubr.bf16.mxu0 0
          %3009 = vmatmul.mubr.bf16.gmra.mrb[0].mxu0 %v2928
          %v3010 = vpop.f32.mrb[0].mxu0
          %v3011 = vadd.f32 0.0, %v3010
          %v3012 = vpop.f32.mrb[0].mxu0
          %v3013 = vpop.f32.mrb[0].mxu0
          %v3014 = vadd.f32 0.0, %v3013
          %v3015 = vpop.f32.mrb[0].mxu0
          %3016 = vmatprep.mubr.bf16.mxu0 0
          %3017 = vmatmul.mubr.bf16.gmra.mrb[0].mxu0 %v2931
          %v3018 = vpop.f32.mrb[0].mxu0
          %v3019 = vadd.f32 0.0, %v3018
          %v3020 = vpop.f32.mrb[0].mxu0
          %v3021 = vpop.f32.mrb[0].mxu0
          %v3022 = vadd.f32 0.0, %v3021
          %v3023 = vpop.f32.mrb[0].mxu0
          %3024 = vdwg.mxu0
          %v3025 = vadd.f32 %v2871, %v2971
          %v3026 = vadd.f32 %v2872, %v2974
          %v3027 = vadd.f32 %v2873, %v2979
          %v3028 = vadd.f32 %v2874, %v2982
          %v3029 = vadd.f32 %v2875, %v2987
          %v3030 = vadd.f32 %v2876, %v2990
          %v3031 = vadd.f32 %v2877, %v2995
          %v3032 = vadd.f32 %v2878, %v2998
          %v3033 = vadd.f32 %v2879, %v3003
          %v3034 = vadd.f32 %v2880, %v3006
          %v3035 = vadd.f32 %v2881, %v3011
          %v3036 = vadd.f32 %v2882, %v3014
          %v3037 = vadd.f32 %v2883, %v3019
          %v3038 = vadd.f32 %v2884, %v3022
          %v3039 = vld [vmem:[%s2452 + $0x38] sm:$0x3]
          %s3040 = scalar_lea.vmem %s1, 120
          %v3041 = vld [vmem:[%s3040] sm:$0xf]
          %v3042 = vld [vmem:[%s3040 + $0x4] sm:$0x3]
          %v3044 = vunpack.c.l.b16 %v3039
          %v3045 = vpack.c.b16 %v3044, %v3044
          %v3047 = vshrl.u32 %v2891, 16
          %v3049 = vrot.slane %v3047, 1
          %v3050 = vshll.u32 %v2891, 16
          %v3052 = vrot.slane %v3050, 2
          %v3053 = vor.u32 %v3049, %v3052
          %v3054 = vrot.slane %v2705, 1
          %v3055 = vrot.slane %v2701, 2
          %v3056 = vor.u32 %v3054, %v3055
          %v3057 = vsel %vm735, %v3053, %v3056
          %v3058 = vrot.slane %v2713, 1
          %v3059 = vrot.slane %v2709, 2
          %v3060 = vor.u32 %v3058, %v3059
          %v3061 = vsel %vm735, %v3056, %v3060
          %v3062 = vrot.slane %v2721, 1
          %v3063 = vrot.slane %v2717, 2
          %v3064 = vor.u32 %v3062, %v3063
          %v3065 = vsel %vm735, %v3060, %v3064
          %v3066 = vrot.slane %v2729, 1
          %v3067 = vrot.slane %v2725, 2
          %v3068 = vor.u32 %v3066, %v3067
          %v3069 = vsel %vm735, %v3064, %v3068
          %v3070 = vrot.slane %v2737, 1
          %v3071 = vrot.slane %v2733, 2
          %v3072 = vor.u32 %v3070, %v3071
          %v3073 = vsel %vm735, %v3068, %v3072
          %v3074 = vrot.slane %v2745, 1
          %v3075 = vrot.slane %v2741, 2
          %v3076 = vor.u32 %v3074, %v3075
          %v3077 = vsel %vm735, %v3072, %v3076
          %v3079 = vshrl.u32 %v3045, 16
          %v3081 = vrot.slane %v3079, 1
          %v3082 = vshll.u32 %v3045, 16
          %v3084 = vrot.slane %v3082, 2
          %v3085 = vor.u32 %v3081, %v3084
          %v3086 = vsel %vm735, %v3076, %v3085
          %v3089 = vunpack.c.l.b16 %v3041
          %v3090 = vunpack.c.l.b16 %v3042
          %v3091 = vpack.c.b16 %v3090, %v3089
          %v3093 = vsel %vm347, %v3057, 0
          %v3096 = vsel %vm347, %v3061, 0
          %v3099 = vsel %vm347, %v3065, 0
          %v3102 = vsel %vm347, %v3069, 0
          %v3105 = vsel %vm347, %v3073, 0
          %v3108 = vsel %vm347, %v3077, 0
          %v3111 = vsel %vm347, %v3086, 0
          %v3114 = vsel %vm369, %v3091, 0
          %3116 = vmatprep.subr.bf16.mxu0 0
          %3117 = vmatpush1.bf16.msra.mxu0 %v3114
          %3118 = vmatprep.subr.bf16.mxu0 0
          %3119 = vmatpush1.bf16.msra.mxu0 0
          %3120 = vmatprep.subr.bf16.mxu0 0
          %3121 = vmatpush1.bf16.msra.mxu0 0
          %3122 = vmatprep.subr.bf16.mxu0 0
          %3123 = vmatpush1.bf16.msra.mxu0 0
          %3124 = vmatprep.subr.bf16.mxu0 0
          %3125 = vmatpush1.bf16.msra.mxu0 0
          %3126 = vmatprep.subr.bf16.mxu0 0
          %3127 = vmatpush1.bf16.msra.mxu0 0
          %3128 = vmatprep.subr.bf16.mxu0 0
          %3129 = vmatpush1.bf16.msra.mxu0 0
          %3130 = vmatprep.subr.bf16.mxu0 0
          %3131 = vmatpush1.bf16.msra.mxu0 0
          %3132 = vmatprep.subr.bf16.mxu0 0
          %3133 = vmatpush1.bf16.msra.mxu0 0
          %3134 = vmatprep.subr.bf16.mxu0 0
          %3135 = vmatpush1.bf16.msra.mxu0 0
          %3136 = vmatprep.subr.bf16.mxu0 0
          %3137 = vmatpush1.bf16.msra.mxu0 0
          %3138 = vmatprep.subr.bf16.mxu0 0
          %3139 = vmatpush1.bf16.msra.mxu0 0
          %3140 = vmatprep.subr.bf16.mxu0 0
          %3141 = vmatpush1.bf16.msra.mxu0 0
          %3142 = vmatprep.subr.bf16.mxu0 0
          %3143 = vmatpush1.bf16.msra.mxu0 0
          %3144 = vmatprep.subr.bf16.mxu0 0
          %3145 = vmatpush1.bf16.msra.mxu0 0
          %3146 = vmatprep.subr.bf16.mxu0 0
          %3147 = vmatpush1.bf16.msra.mxu0 0
          %3148 = vmatprep.mubr.bf16.mxu0 0
          %3149 = vmatmul.mubr.bf16.gmra.mrb[0].mxu0 %v3093
          %v3150 = vpop.f32.mrb[0].mxu0
          %v3151 = vadd.f32 0.0, %v3150
          %v3152 = vpop.f32.mrb[0].mxu0
          %v3153 = vpop.f32.mrb[0].mxu0
          %v3154 = vadd.f32 0.0, %v3153
          %v3155 = vpop.f32.mrb[0].mxu0
          %3156 = vmatprep.mubr.bf16.mxu0 0
          %3157 = vmatmul.mubr.bf16.gmra.mrb[0].mxu0 %v3096
          %v3158 = vpop.f32.mrb[0].mxu0
          %v3159 = vadd.f32 0.0, %v3158
          %v3160 = vpop.f32.mrb[0].mxu0
          %v3161 = vpop.f32.mrb[0].mxu0
          %v3162 = vadd.f32 0.0, %v3161
          %v3163 = vpop.f32.mrb[0].mxu0
          %3164 = vmatprep.mubr.bf16.mxu0 0
          %3165 = vmatmul.mubr.bf16.gmra.mrb[0].mxu0 %v3099
          %v3166 = vpop.f32.mrb[0].mxu0
          %v3167 = vadd.f32 0.0, %v3166
          %v3168 = vpop.f32.mrb[0].mxu0
          %v3169 = vpop.f32.mrb[0].mxu0
          %v3170 = vadd.f32 0.0, %v3169
          %v3171 = vpop.f32.mrb[0].mxu0
          %3172 = vmatprep.mubr.bf16.mxu0 0
          %3173 = vmatmul.mubr.bf16.gmra.mrb[0].mxu0 %v3102
          %v3174 = vpop.f32.mrb[0].mxu0
          %v3175 = vadd.f32 0.0, %v3174
          %v3176 = vpop.f32.mrb[0].mxu0
          %v3177 = vpop.f32.mrb[0].mxu0
          %v3178 = vadd.f32 0.0, %v3177
          %v3179 = vpop.f32.mrb[0].mxu0
          %3180 = vmatprep.mubr.bf16.mxu0 0
          %3181 = vmatmul.mubr.bf16.gmra.mrb[0].mxu0 %v3105
          %v3182 = vpop.f32.mrb[0].mxu0
          %v3183 = vadd.f32 0.0, %v3182
          %v3184 = vpop.f32.mrb[0].mxu0
          %v3185 = vpop.f32.mrb[0].mxu0
          %v3186 = vadd.f32 0.0, %v3185
          %v3187 = vpop.f32.mrb[0].mxu0
          %3188 = vmatprep.mubr.bf16.mxu0 0
          %3189 = vmatmul.mubr.bf16.gmra.mrb[0].mxu0 %v3108
          %v3190 = vpop.f32.mrb[0].mxu0
          %v3191 = vadd.f32 0.0, %v3190
          %v3192 = vpop.f32.mrb[0].mxu0
          %v3193 = vpop.f32.mrb[0].mxu0
          %v3194 = vadd.f32 0.0, %v3193
          %v3195 = vpop.f32.mrb[0].mxu0
          %3196 = vmatprep.mubr.bf16.mxu0 0
          %3197 = vmatmul.mubr.bf16.gmra.mrb[0].mxu0 %v3111
          %v3198 = vpop.f32.mrb[0].mxu0
          %v3199 = vadd.f32 0.0, %v3198
          %v3200 = vpop.f32.mrb[0].mxu0
          %v3201 = vpop.f32.mrb[0].mxu0
          %v3202 = vadd.f32 0.0, %v3201
          %v3203 = vpop.f32.mrb[0].mxu0
          %3204 = vdwg.mxu0
          %v3205 = vadd.f32 %v3025, %v3151
          %v3206 = vadd.f32 %v3026, %v3154
          %v3207 = vadd.f32 %v3027, %v3159
          %v3208 = vadd.f32 %v3028, %v3162
          %v3209 = vadd.f32 %v3029, %v3167
          %v3210 = vadd.f32 %v3030, %v3170
          %v3211 = vadd.f32 %v3031, %v3175
          %v3212 = vadd.f32 %v3032, %v3178
          %v3213 = vadd.f32 %v3033, %v3183
          %v3214 = vadd.f32 %v3034, %v3186
          %v3215 = vadd.f32 %v3035, %v3191
          %v3216 = vadd.f32 %v3036, %v3194
          %v3217 = vadd.f32 %v3037, %v3199
          %v3218 = vadd.f32 %v3038, %v3202
          %v3219 = vpack.c.bf16 %v3206, %v3205
          %v3220 = vpack.c.bf16 %v3208, %v3207
          %v3221 = vpack.c.bf16 %v3210, %v3209
          %v3222 = vpack.c.bf16 %v3212, %v3211
          %v3223 = vpack.c.bf16 %v3214, %v3213
          %v3224 = vpack.c.bf16 %v3216, %v3215
          %v3225 = vpack.c.bf16 %v3218, %v3217
          %v3233 = vunpack.c.l.b16 %v3219
          %v3234 = vunpack.c.h.b16 %v3219
          %v3235 = vunpack.c.l.b16 %v3220
          %v3236 = vunpack.c.h.b16 %v3220
          %v3237 = vunpack.c.l.b16 %v3221
          %v3238 = vunpack.c.h.b16 %v3221
          %v3239 = vunpack.c.l.b16 %v3222
          %v3240 = vunpack.c.h.b16 %v3222
          %v3241 = vunpack.c.l.b16 %v3223
          %v3242 = vunpack.c.h.b16 %v3223
          %v3243 = vunpack.c.l.b16 %v3224
          %v3244 = vunpack.c.h.b16 %v3224
          %v3245 = vunpack.c.l.b16 %v3225
          %v3246 = vunpack.c.h.b16 %v3225
          %v3247 = vpack.c.b16 %v3233, %v3233
          %v3248 = vpack.c.b16 %v3234, %v3234
          %v3249 = vpack.c.b16 %v3235, %v3235
          %v3250 = vpack.c.b16 %v3236, %v3236
          %v3251 = vpack.c.b16 %v3237, %v3237
          %v3252 = vpack.c.b16 %v3238, %v3238
          %v3253 = vpack.c.b16 %v3239, %v3239
          %v3254 = vpack.c.b16 %v3240, %v3240
          %v3255 = vpack.c.b16 %v3241, %v3241
          %v3256 = vpack.c.b16 %v3242, %v3242
          %v3257 = vpack.c.b16 %v3243, %v3243
          %v3258 = vpack.c.b16 %v3244, %v3244
          %v3259 = vpack.c.b16 %v3245, %v3245
          %v3260 = vpack.c.b16 %v3246, %v3246
          %s3275 = smul.u32 %s212, 14
          %s3276 = smul.addr %s3275, 4
          %s3277 = scalar_lea.vmem %s207, %s3276
          %vm3278 = vcmask 519168
          %3279 = vst.msk [vmem:[%s3277] sm:$0xf] %vm3278, %v3247
          %3280 = vst.msk [vmem:[%s3277 + $0x4] sm:$0xf] %vm3278, %v3248
          %3281 = vst.msk [vmem:[%s3277 + $0x8] sm:$0xf] %vm3278, %v3249
          %3282 = vst.msk [vmem:[%s3277 + $0xc] sm:$0xf] %vm3278, %v3250
          %3283 = vst.msk [vmem:[%s3277 + $0x10] sm:$0xf] %vm3278, %v3251
          %3284 = vst.msk [vmem:[%s3277 + $0x14] sm:$0xf] %vm3278, %v3252
          %3285 = vst.msk [vmem:[%s3277 + $0x18] sm:$0xf] %vm3278, %v3253
          %3286 = vst.msk [vmem:[%s3277 + $0x1c] sm:$0xf] %vm3278, %v3254
          %3287 = vst.msk [vmem:[%s3277 + $0x20] sm:$0xf] %vm3278, %v3255
          %3288 = vst.msk [vmem:[%s3277 + $0x24] sm:$0xf] %vm3278, %v3256
          %3289 = vst.msk [vmem:[%s3277 + $0x28] sm:$0xf] %vm3278, %v3257
          %3290 = vst.msk [vmem:[%s3277 + $0x2c] sm:$0xf] %vm3278, %v3258
          %3291 = vst.msk [vmem:[%s3277 + $0x30] sm:$0xf] %vm3278, %v3259
          %3292 = vst.msk [vmem:[%s3277 + $0x34] sm:$0xf] %vm3278, %v3260
          %vm3293 = vcmask 523264
          %v3294 = vsel %vm3293, %v3205, 0.0
          %v3295 = vsel %vm3293, %v3206, 0.0
          %v3296 = vadd.f32 %v3294, %v3295
          %v3297 = vsel %vm3293, %v3207, 0.0
          %v3298 = vadd.f32 %v3296, %v3297
          %v3299 = vsel %vm3293, %v3208, 0.0
          %v3300 = vadd.f32 %v3298, %v3299
          %v3301 = vsel %vm3293, %v3209, 0.0
          %v3302 = vadd.f32 %v3300, %v3301
          %v3303 = vsel %vm3293, %v3210, 0.0
          %v3304 = vadd.f32 %v3302, %v3303
          %v3305 = vsel %vm3293, %v3211, 0.0
          %v3306 = vadd.f32 %v3304, %v3305
          %v3307 = vsel %vm3293, %v3212, 0.0
          %v3308 = vadd.f32 %v3306, %v3307
          %v3309 = vsel %vm3293, %v3213, 0.0
          %v3310 = vadd.f32 %v3308, %v3309
          %v3311 = vsel %vm3293, %v3214, 0.0
          %v3312 = vadd.f32 %v3310, %v3311
          %v3313 = vsel %vm3293, %v3215, 0.0
          %v3314 = vadd.f32 %v3312, %v3313
          %v3315 = vsel %vm3293, %v3216, 0.0
          %v3316 = vadd.f32 %v3314, %v3315
          %v3317 = vsel %vm3293, %v3217, 0.0
          %v3318 = vadd.f32 %v3316, %v3317
          %v3319 = vsel %vm3293, %v3218, 0.0
          %v3320 = vadd.f32 %v3318, %v3319
          %v3321 = vrot.slane %v3320, 4
          %v3322 = vadd.f32 %v3320, %v3321
          %v3323 = vrot.slane %v3322, 2
          %v3324 = vadd.f32 %v3322, %v3323
          %v3325 = vrot.slane %v3324, 1
          %v3326 = vadd.f32 %v3324, %v3325
          %v3327 = vadd.f32 %v217, %v3326
          %v3328 = vmul.f32 %v3205, %v3205
          %v3329 = vmul.f32 %v3206, %v3206
          %v3330 = vmul.f32 %v3207, %v3207
          %v3331 = vmul.f32 %v3208, %v3208
          %v3332 = vmul.f32 %v3209, %v3209
          %v3333 = vmul.f32 %v3210, %v3210
          %v3334 = vmul.f32 %v3211, %v3211
          %v3335 = vmul.f32 %v3212, %v3212
          %v3336 = vmul.f32 %v3213, %v3213
          %v3337 = vmul.f32 %v3214, %v3214
          %v3338 = vmul.f32 %v3215, %v3215
          %v3339 = vmul.f32 %v3216, %v3216
          %v3340 = vmul.f32 %v3217, %v3217
          %v3341 = vmul.f32 %v3218, %v3218
          %v3342 = vsel %vm3293, %v3328, 0.0
          %v3343 = vsel %vm3293, %v3329, 0.0
          %v3344 = vadd.f32 %v3342, %v3343
          %v3345 = vsel %vm3293, %v3330, 0.0
          %v3346 = vadd.f32 %v3344, %v3345
          %v3347 = vsel %vm3293, %v3331, 0.0
          %v3348 = vadd.f32 %v3346, %v3347
          %v3349 = vsel %vm3293, %v3332, 0.0
          %v3350 = vadd.f32 %v3348, %v3349
          %v3351 = vsel %vm3293, %v3333, 0.0
          %v3352 = vadd.f32 %v3350, %v3351
          %v3353 = vsel %vm3293, %v3334, 0.0
          %v3354 = vadd.f32 %v3352, %v3353
          %v3355 = vsel %vm3293, %v3335, 0.0
          %v3356 = vadd.f32 %v3354, %v3355
          %v3357 = vsel %vm3293, %v3336, 0.0
          %v3358 = vadd.f32 %v3356, %v3357
          %v3359 = vsel %vm3293, %v3337, 0.0
          %v3360 = vadd.f32 %v3358, %v3359
          %v3361 = vsel %vm3293, %v3338, 0.0
          %v3362 = vadd.f32 %v3360, %v3361
          %v3363 = vsel %vm3293, %v3339, 0.0
          %v3364 = vadd.f32 %v3362, %v3363
          %v3365 = vsel %vm3293, %v3340, 0.0
          %v3366 = vadd.f32 %v3364, %v3365
          %v3367 = vsel %vm3293, %v3341, 0.0
          %v3368 = vadd.f32 %v3366, %v3367
          %v3369 = vrot.slane %v3368, 4
          %v3370 = vadd.f32 %v3368, %v3369
          %v3371 = vrot.slane %v3370, 2
          %v3372 = vadd.f32 %v3370, %v3371
          %v3373 = vrot.slane %v3372, 1
          %v3374 = vadd.f32 %v3372, %v3373
          %v3375 = vadd.f32 %v218, %v3374
        $region33: #{tpu_custom_call.1} parent=27 // loop_footer
          %s216 = sadd.s32 1, %s212
        $region34: #{tpu_custom_call.1} parent=27 // loop_footer_branch
          %211 = sbr.rel target = $region30
        $region35: #{tpu_custom_call.1} parent=27 // loop_exit
          _
        %vm3376 = vcmask 516096
        %3377 = vst.msk [vmem:[%s192] sm:$0x1] %vm3376, %v217
        %3378 = vst.msk [vmem:[%s192 + $0x1] sm:$0x1] %vm3376, %v218
        %s3379 = smul.u32 8, %s23
        %p3380 = scmp.lt.s32.totalorder %s22, 1
        %s3381 = scalar_select %p3380, %s22, 1
        %p3382 = scmp.lt.s32.totalorder %s3379, 111
        %s3383 = scalar_select %p3382, %s3379, 111
        %s3384 = smul.addr %s3383, 14
        %s3385 = smul.addr %s3381, 1568
        %s3386 = sadd.s32 %s3384, %s3385
        %s3387 = smul.addr %s3386, 4
        %s3388 = scalar_lea.vmem %s2, %s3387
        %s3389 = sand.u32 %s115, 1
        %s3390 = scalar_lea.sflag [#allocation3], %s3389
        %s3391 = sand.u32 %s115, 1
        %s3392 = smul.addr %s3391, 2
        %s3393 = scalar_lea.vmem [#allocation2], %s3392
        // Predicated region
        $region36: #{tpu_custom_call.1} parent=27 // pred_check
          %p3394 = pneg %p97
        $region37: #{tpu_custom_call.1} parent=27 // pred_check_branch
          %3396 = sbr.rel (%p3394) target = $region39
        $region38: #{tpu_custom_call.1} parent=27 // pred_region
          %s3397 = smul.u32 8, %s23
        $region39: #{tpu_custom_call.1} parent=27 // pred_fallthru
          _
        // Predicated region
        $region40: #{tpu_custom_call.1} parent=27 // pred_check
          %p3398 = pneg %p125
        $region41: #{tpu_custom_call.1} parent=27 // pred_check_branch
          %3400 = sbr.rel (%p3398) target = $region43
        $region42: #{tpu_custom_call.1} parent=27 // pred_region
          %s3402 = ssub.s32 32, 32
          %3403 = vsyncadd %s3390, %s3402
          %s3404 = smul.addr %s22, 14
          %s3405 = sadd.s32 %s23, %s3404
          %s3406 = smul.addr %s3405, 32
          %s3407 = scalar_lea.hbm %s3, %s3406
          %s3409 = sshll.u32 %s3393, 4
          %s3410 = int_to_ptr.vmem [resolvable:$true] %s3409
          %3412 = dma.vmem_to_hbm [thread:$0]  %s3410, 32, %s3407, %s3390
        $region43: #{tpu_custom_call.1} parent=27 // pred_fallthru
          _
      $region28: #{tpu_custom_call.1} parent=5 // pred_fallthru
        _
      %p3413 = scmp.le.s32.totalorder 2, %s13
      // Predicated region
      $region44: #{tpu_custom_call.1} parent=5 // pred_check
        %p3414 = pneg %p3413
      $region45: #{tpu_custom_call.1} parent=5 // pred_check_branch
        %3416 = sbr.rel (%p3414) target = $region47
      $region46: #{tpu_custom_call.1} parent=5 // pred_region
        %s3417 = ssub.s32 %s13, 2
        // Predicated region
        $region48: #{tpu_custom_call.1} parent=46 // pred_check
          %p3418 = pneg %p103
        $region49: #{tpu_custom_call.1} parent=46 // pred_check_branch
          %3420 = sbr.rel (%p3418) target = $region51
        $region50: #{tpu_custom_call.1} parent=46 // pred_region
          %s3421 = smul.u32 8, %s25
          %p3422 = scmp.lt.s32.totalorder %s24, 1
          %s3423 = scalar_select %p3422, %s24, 1
          %p3424 = scmp.lt.s32.totalorder %s3421, 111
          %s3425 = scalar_select %p3424, %s3421, 111
          %s3426 = smul.addr %s3425, 14
          %s3427 = smul.addr %s3423, 1568
          %s3428 = sadd.s32 %s3426, %s3427
          %s3429 = smul.addr %s3428, 4
          %s3430 = scalar_lea.vmem %s2, %s3429
        $region51: #{tpu_custom_call.1} parent=46 // pred_fallthru
          _
        // Predicated region
        $region52: #{tpu_custom_call.1} parent=46 // pred_check
          %p3431 = pneg %p131
        $region53: #{tpu_custom_call.1} parent=46 // pred_check_branch
          %3433 = sbr.rel (%p3431) target = $region55
        $region54: #{tpu_custom_call.1} parent=46 // pred_region
          %s3434 = sand.u32 %s116, 1
          %s3435 = scalar_lea.sflag [#allocation3], %s3434
          %s3436 = sand.u32 %s116, 1
          %s3437 = smul.addr %s3436, 2
          %s3438 = scalar_lea.vmem [#allocation2], %s3437
          %3439 = dma.done %s3435, 32
        $region55: #{tpu_custom_call.1} parent=46 // pred_fallthru
          _
      $region47: #{tpu_custom_call.1} parent=5 // pred_fallthru
        _
    $region6: #{tpu_custom_call.1} parent=1 // loop_footer
      %s17 = sadd.s32 1, %s13
    $region7: #{tpu_custom_call.1} parent=1 // loop_footer_branch
      %12 = sbr.rel target = $region3
    $region8: #{tpu_custom_call.1} parent=1 // loop_exit
      _
    %3440 = vsyncpa [#allocation3], 1
    %s3441 = scalar_lea.sflag [#allocation3], 1
    %3442 = vsyncpa %s3441, 1

</llo_original>
